<compile_context>
chip_gen: v6e
topology: v6e:2x2x1
jax: 0.10.0
libtpu: 0.0.40
codegen_flags: <defaults>
</compile_context>

<pallas_src>
import functools

import jax
import jax.numpy as jnp
from jax.experimental import pallas as pl
from jax.experimental.pallas import tpu as pltpu


def _banded_weight(w_hwio, w_in):
    """(KH, KW, Cin, Cout) conv weight -> (KH, w_in*Cin, Wo*Cout) banded matmul weight.

    out[kh, (wo+kw)*Cin + ci, wo*Cout + co] = w_hwio[kh, kw, ci, co]
    so that  X[r, :] @ out[kh]  computes, for every output column wo, the
    cross-correlation over (kw, ci) of row r of the (W, Cin) feature map.
    Only used for conv1 (64 KiB); conv2 stays compact.
    """
    kh, kw, cin, cout = w_hwio.shape
    wo = w_in - kw + 1
    # shift[k, x, w] = 1  iff  x == w + k   (places each kw-tap on its diagonal)
    shift = jnp.stack(
        [jnp.eye(w_in, wo, k=-k, dtype=w_hwio.dtype) for k in range(kw)]
    )
    wb = jnp.einsum("hkio,kxw->hxiwo", w_hwio, shift)
    return wb.reshape(kh, w_in * cin, wo * cout)


def _fused_conv_kernel(x_ref, w1_ref, b1_ref, w2_ref, b2_ref, o_ref, act1_ref, *,
                       kh_taps, c1, c2, ho1, ho2, wo2, kw2):
    """Fused conv1+conv2 for ONE image (grid step = one batch element).

    x_ref:    (1, H,  W*Cin)      bf16   input slab for this image
    w1_ref:   (KH, W*Cin, Wo1*C1) bf16   banded conv1 weights (64 KiB)
    b1_ref:   (1, Wo1*C1)         f32
    w2_ref:   (KH, KW*C1, C2)     bf16   COMPACT conv2 weights (36 KiB)
    b2_ref:   (1, C2)             f32
    o_ref:    (1, Ho2, Wo2*C2)    f32    lane-dense output block (12 x 1536)
    act1_ref: (Ho1, Wo1*C1)       bf16   VMEM scratch holding conv1 activation
    """
    # ---- conv1: act1[r, :] = sum_kh  x[r + kh, :] @ w1b[kh]  (+ b1), f32 acc.
    acc1 = jnp.dot(x_ref[0, pl.ds(0, ho1), :], w1_ref[0],
                   preferred_element_type=jnp.float32)
    for kh in range(1, kh_taps):
        acc1 = acc1 + jnp.dot(x_ref[0, pl.ds(kh, ho1), :], w1_ref[kh],
                              preferred_element_type=jnp.float32)
    # Single cast of the whole activation (no per-tap re-casting downstream).
    act1_ref[...] = (acc1 + b1_ref[...]).astype(act1_ref.dtype)

    # ---- conv2: per 128-wide output column block wo, contract a 48-lane window
    # of act1 against the compact (48, 128) weight; tiny (12,128) f32 accumulator.
    for wo in range(wo2):
        acc2 = jnp.dot(act1_ref[pl.ds(0, ho2), pl.ds(wo * c1, kw2 * c1)],
                       w2_ref[0], preferred_element_type=jnp.float32)
        for kh in range(1, kh_taps):
            lhs = act1_ref[pl.ds(kh, ho2), pl.ds(wo * c1, kw2 * c1)]
            acc2 = acc2 + jnp.dot(lhs, w2_ref[kh],
                                  preferred_element_type=jnp.float32)
        o_ref[0, :, pl.ds(wo * c2, c2)] = acc2 + b2_ref[...]


def prepare_params(w1, b1, w2, b2, *, width):
    """One-time weight re-layout (done at 'module init', not per forward call)."""
    kh1, kw1, cin, c1 = w1.shape
    kh2, kw2, c1b, c2 = w2.shape
    assert c1b == c1
    wo1 = width - kw1 + 1
    # conv1: small banded weight (64 KiB bf16) — fine to ship from HBM.
    w1b = _banded_weight(w1.astype(jnp.float32), width).astype(jnp.bfloat16)
    b1t = jnp.tile(b1.astype(jnp.float32), wo1).reshape(1, -1)
    # conv2: COMPACT weight, (KH, KW*C1, C2); lane index = kw*C1 + ci.
    w2c = w2.astype(jnp.bfloat16).reshape(kh2, kw2 * c1, c2)
    b2t = b2.astype(jnp.float32).reshape(1, c2)
    return w1b, b1t, w2c, b2t


@jax.jit
def mynet1_forward(x_nchw, w1b, b1t, w2c, b2t):
    n, cin, h, w = x_nchw.shape
    kh = w1b.shape[0]                       # 3x3 kernels
    kh2, kwc1, c2 = w2c.shape
    ho1, wo1 = h - kh + 1, w - kh + 1
    c1 = w1b.shape[2] // wo1
    kw2 = kwc1 // c1
    ho2, wo2 = ho1 - kh2 + 1, wo1 - kw2 + 1
    assert w1b.shape[1] == w * cin

    # NCHW -> (N, H, W*Cin) bf16 slab (cast hoisted out of the kernel).
    x3 = jnp.transpose(x_nchw, (0, 2, 3, 1)).reshape(n, h, w * cin).astype(jnp.bfloat16)

    kernel = functools.partial(
        _fused_conv_kernel, kh_taps=kh, c1=c1, c2=c2,
        ho1=ho1, ho2=ho2, wo2=wo2, kw2=kw2)

    out3 = pl.pallas_call(
        kernel,
        out_shape=jax.ShapeDtypeStruct((n, ho2, wo2 * c2), jnp.float32),
        grid=(n,),                          # one grid step per image; parallel on v7x
        in_specs=[
            pl.BlockSpec((1, h, w * cin), lambda i: (i, 0, 0)),
            pl.BlockSpec((kh, w * cin, wo1 * c1), lambda i: (0, 0, 0)),
            pl.BlockSpec((1, wo1 * c1), lambda i: (0, 0)),
            pl.BlockSpec((kh2, kwc1, c2), lambda i: (0, 0, 0)),
            pl.BlockSpec((1, c2), lambda i: (0, 0)),
        ],
        out_specs=pl.BlockSpec((1, ho2, wo2 * c2), lambda i: (i, 0, 0)),
        scratch_shapes=[pltpu.VMEM((ho1, wo1 * c1), jnp.bfloat16)],
        compiler_params=pltpu.CompilerParams(dimension_semantics=("parallel",)),
    )(x3, w1b, b1t, w2c, b2t)

    # (N, Ho2, Wo2*C2) -> NCHW.  Every emitted row is a valid conv output row.
    out = out3.reshape(n, ho2, wo2, c2)
    return jnp.transpose(out, (0, 3, 1, 2))


def init_params(key):
    """Deterministic synthetic params (shapes from myNet1.__init__), HWIO weights."""
    k1, k2, k3, k4 = jax.random.split(key, 4)
    # conv1: Conv2d(3, 16, 3)   -> weight HWIO (3, 3, 3, 16),  bias (16,)
    # conv2: Conv2d(16, 128, 3) -> weight HWIO (3, 3, 16, 128), bias (128,)
    w1 = jax.random.normal(k1, (3, 3, 3, 16), jnp.float32) * (1.0 / (3 * 3 * 3) ** 0.5)
    b1 = jax.random.normal(k2, (16,), jnp.float32) * 0.05
    w2 = jax.random.normal(k3, (3, 3, 16, 128), jnp.float32) * (1.0 / (3 * 3 * 16) ** 0.5)
    b2 = jax.random.normal(k4, (128,), jnp.float32) * 0.05
    return (w1, b1), (w2, b2)


def _reference_forward(x_nchw, w1, b1, w2, b2):
    """Pure-JAX f32 reference (lax conv) for correctness checking."""
    dn = ("NCHW", "HWIO", "NCHW")
    y = jax.lax.conv_general_dilated(x_nchw, w1, (1, 1), "VALID", dimension_numbers=dn)
    y = y + b1.reshape(1, -1, 1, 1)
    y = jax.lax.conv_general_dilated(y, w2, (1, 1), "VALID", dimension_numbers=dn)
    y = y + b2.reshape(1, -1, 1, 1)
    return y


if __name__ == "__main__":
    key = jax.random.PRNGKey(0)
    kx, kp = jax.random.split(key)

    # Small input consistent with the module: batch=2, 3 channels, 16x16 spatial.
    x = jax.random.normal(kx, (2, 3, 16, 16), jnp.float32)
    (w1, b1), (w2, b2) = init_params(kp)

    packed = prepare_params(w1, b1, w2, b2, width=x.shape[-1])
    out = mynet1_forward(x, *packed)
    out = jax.block_until_ready(out)
    assert out.shape == (2, 128, 12, 12), out.shape

    ref = _reference_forward(x, w1, b1, w2, b2)
    # bf16 MXU operands / f32 accumulate over K<=144 -> ~1e-2 expected error.
    assert jnp.allclose(out, ref, atol=3e-2, rtol=3e-2), "mismatch vs lax conv reference"

    print("KERNEL_OK")
</pallas_src>

<mosaic_0001>
module attributes {stable_mosaic.version = 11 : i64} {
  func.func @_fused_conv_kernel(%arg0: i32, %arg1: memref<1x16x48xbf16, #tpu.memory_space<vmem>>, %arg2: memref<3x48x224xbf16, #tpu.memory_space<vmem>>, %arg3: memref<1x224xf32, #tpu.memory_space<vmem>>, %arg4: memref<3x48x128xbf16, #tpu.memory_space<vmem>>, %arg5: memref<1x128xf32, #tpu.memory_space<vmem>>, %arg6: memref<1x12x1536xf32, #tpu.memory_space<vmem>>, %arg7: memref<14x224xbf16, #tpu.memory_space<vmem>>) attributes {dimension_semantics = [#tpu.dimension_semantics<parallel>], iteration_bounds = array<i64: 2>, scalar_prefetch = 0 : i64, scratch_operands = 1 : i64, tpu.core_type = #tpu.core_type<tc>, window_params = [{transform_indices = @transform_0, window_bounds = array<i64: 1, 16, 48>}, {pipeline_mode = #tpu.pipeline_mode<synchronous>, transform_indices = @transform_1, window_bounds = array<i64: 3, 48, 224>}, {pipeline_mode = #tpu.pipeline_mode<synchronous>, transform_indices = @transform_2, window_bounds = array<i64: 1, 224>}, {pipeline_mode = #tpu.pipeline_mode<synchronous>, transform_indices = @transform_3, window_bounds = array<i64: 3, 48, 128>}, {pipeline_mode = #tpu.pipeline_mode<synchronous>, transform_indices = @transform_4, window_bounds = array<i64: 1, 128>}, {transform_indices = @transform_5, window_bounds = array<i64: 1, 12, 1536>}]} {
    %c0 = arith.constant 0 : index
    %c0_0 = arith.constant 0 : index
    %c0_1 = arith.constant 0 : index
    %0 = vector.load %arg1[%c0, %c0_0, %c0_1] : memref<1x16x48xbf16, #tpu.memory_space<vmem>>, vector<1x14x48xbf16>
    %1 = vector.shape_cast %0 : vector<1x14x48xbf16> to vector<14x48xbf16>
    %c0_2 = arith.constant 0 : index
    %c0_3 = arith.constant 0 : index
    %c0_4 = arith.constant 0 : index
    %2 = vector.load %arg2[%c0_2, %c0_3, %c0_4] : memref<3x48x224xbf16, #tpu.memory_space<vmem>>, vector<1x48x224xbf16>
    %3 = vector.shape_cast %2 : vector<1x48x224xbf16> to vector<48x224xbf16>
    %cst = arith.constant dense<0.000000e+00> : vector<14x224xf32>
    %4 = tpu.matmul %1, %3, %cst {dimension_numbers = #tpu.dot_dimension_numbers<[1], [0], [0], [1], [0, 0, 1, 1], [], []>} : vector<14x48xbf16>, vector<48x224xbf16>, vector<14x224xf32> -> vector<14x224xf32>
    %c0_5 = arith.constant 0 : index
    %c1 = arith.constant 1 : index
    %c0_6 = arith.constant 0 : index
    %5 = vector.load %arg1[%c0_5, %c1, %c0_6] : memref<1x16x48xbf16, #tpu.memory_space<vmem>>, vector<1x14x48xbf16>
    %6 = vector.shape_cast %5 : vector<1x14x48xbf16> to vector<14x48xbf16>
    %c1_7 = arith.constant 1 : index
    %c0_8 = arith.constant 0 : index
    %c0_9 = arith.constant 0 : index
    %7 = vector.load %arg2[%c1_7, %c0_8, %c0_9] : memref<3x48x224xbf16, #tpu.memory_space<vmem>>, vector<1x48x224xbf16>
    %8 = vector.shape_cast %7 : vector<1x48x224xbf16> to vector<48x224xbf16>
    %cst_10 = arith.constant dense<0.000000e+00> : vector<14x224xf32>
    %9 = tpu.matmul %6, %8, %cst_10 {dimension_numbers = #tpu.dot_dimension_numbers<[1], [0], [0], [1], [0, 0, 1, 1], [], []>} : vector<14x48xbf16>, vector<48x224xbf16>, vector<14x224xf32> -> vector<14x224xf32>
    %10 = arith.addf %4, %9 : vector<14x224xf32>
    %c0_11 = arith.constant 0 : index
    %c2 = arith.constant 2 : index
    %c0_12 = arith.constant 0 : index
    %11 = vector.load %arg1[%c0_11, %c2, %c0_12] : memref<1x16x48xbf16, #tpu.memory_space<vmem>>, vector<1x14x48xbf16>
    %12 = vector.shape_cast %11 : vector<1x14x48xbf16> to vector<14x48xbf16>
    %c2_13 = arith.constant 2 : index
    %c0_14 = arith.constant 0 : index
    %c0_15 = arith.constant 0 : index
    %13 = vector.load %arg2[%c2_13, %c0_14, %c0_15] : memref<3x48x224xbf16, #tpu.memory_space<vmem>>, vector<1x48x224xbf16>
    %14 = vector.shape_cast %13 : vector<1x48x224xbf16> to vector<48x224xbf16>
    %cst_16 = arith.constant dense<0.000000e+00> : vector<14x224xf32>
    %15 = tpu.matmul %12, %14, %cst_16 {dimension_numbers = #tpu.dot_dimension_numbers<[1], [0], [0], [1], [0, 0, 1, 1], [], []>} : vector<14x48xbf16>, vector<48x224xbf16>, vector<14x224xf32> -> vector<14x224xf32>
    %16 = arith.addf %10, %15 : vector<14x224xf32>
    %c0_17 = arith.constant 0 : index
    %c0_18 = arith.constant 0 : index
    %17 = vector.load %arg3[%c0_17, %c0_18] : memref<1x224xf32, #tpu.memory_space<vmem>>, vector<1x224xf32>
    %18 = vector.broadcast %17 : vector<1x224xf32> to vector<14x224xf32>
    %19 = arith.addf %16, %18 : vector<14x224xf32>
    %20 = arith.truncf %19 : vector<14x224xf32> to vector<14x224xbf16>
    %c0_19 = arith.constant 0 : index
    %c0_20 = arith.constant 0 : index
    %21 = vector.load %arg7[%c0_19, %c0_20] : memref<14x224xbf16, #tpu.memory_space<vmem>>, vector<14x224xbf16>
    tpu.vector_store %arg7[%c0_19, %c0_20], %20 {strides = array<i32>} : memref<14x224xbf16, #tpu.memory_space<vmem>>, vector<14x224xbf16>,
    %c0_21 = arith.constant 0 : index
    %c0_22 = arith.constant 0 : index
    %22 = vector.load %arg7[%c0_21, %c0_22] : memref<14x224xbf16, #tpu.memory_space<vmem>>, vector<12x48xbf16>
    %c0_23 = arith.constant 0 : index
    %c0_24 = arith.constant 0 : index
    %c0_25 = arith.constant 0 : index
    %23 = vector.load %arg4[%c0_23, %c0_24, %c0_25] : memref<3x48x128xbf16, #tpu.memory_space<vmem>>, vector<1x48x128xbf16>
    %24 = vector.shape_cast %23 : vector<1x48x128xbf16> to vector<48x128xbf16>
    %cst_26 = arith.constant dense<0.000000e+00> : vector<12x128xf32>
    %25 = tpu.matmul %22, %24, %cst_26 {dimension_numbers = #tpu.dot_dimension_numbers<[1], [0], [0], [1], [0, 0, 1, 1], [], []>} : vector<12x48xbf16>, vector<48x128xbf16>, vector<12x128xf32> -> vector<12x128xf32>
    %c1_27 = arith.constant 1 : index
    %c0_28 = arith.constant 0 : index
    %26 = vector.load %arg7[%c1_27, %c0_28] : memref<14x224xbf16, #tpu.memory_space<vmem>>, vector<12x48xbf16>
    %c1_29 = arith.constant 1 : index
    %c0_30 = arith.constant 0 : index
    %c0_31 = arith.constant 0 : index
    %27 = vector.load %arg4[%c1_29, %c0_30, %c0_31] : memref<3x48x128xbf16, #tpu.memory_space<vmem>>, vector<1x48x128xbf16>
    %28 = vector.shape_cast %27 : vector<1x48x128xbf16> to vector<48x128xbf16>
    %cst_32 = arith.constant dense<0.000000e+00> : vector<12x128xf32>
    %29 = tpu.matmul %26, %28, %cst_32 {dimension_numbers = #tpu.dot_dimension_numbers<[1], [0], [0], [1], [0, 0, 1, 1], [], []>} : vector<12x48xbf16>, vector<48x128xbf16>, vector<12x128xf32> -> vector<12x128xf32>
    %30 = arith.addf %25, %29 : vector<12x128xf32>
    %c2_33 = arith.constant 2 : index
    %c0_34 = arith.constant 0 : index
    %31 = vector.load %arg7[%c2_33, %c0_34] : memref<14x224xbf16, #tpu.memory_space<vmem>>, vector<12x48xbf16>
    %c2_35 = arith.constant 2 : index
    %c0_36 = arith.constant 0 : index
    %c0_37 = arith.constant 0 : index
    %32 = vector.load %arg4[%c2_35, %c0_36, %c0_37] : memref<3x48x128xbf16, #tpu.memory_space<vmem>>, vector<1x48x128xbf16>
    %33 = vector.shape_cast %32 : vector<1x48x128xbf16> to vector<48x128xbf16>
    %cst_38 = arith.constant dense<0.000000e+00> : vector<12x128xf32>
    %34 = tpu.matmul %31, %33, %cst_38 {dimension_numbers = #tpu.dot_dimension_numbers<[1], [0], [0], [1], [0, 0, 1, 1], [], []>} : vector<12x48xbf16>, vector<48x128xbf16>, vector<12x128xf32> -> vector<12x128xf32>
    %35 = arith.addf %30, %34 : vector<12x128xf32>
    %c0_39 = arith.constant 0 : index
    %c0_40 = arith.constant 0 : index
    %36 = vector.load %arg5[%c0_39, %c0_40] : memref<1x128xf32, #tpu.memory_space<vmem>>, vector<1x128xf32>
    %37 = vector.broadcast %36 : vector<1x128xf32> to vector<12x128xf32>
    %38 = arith.addf %35, %37 : vector<12x128xf32>
    %c0_41 = arith.constant 0 : index
    %c0_42 = arith.constant 0 : index
    %c0_43 = arith.constant 0 : index
    %39 = vector.load %arg6[%c0_41, %c0_42, %c0_43] : memref<1x12x1536xf32, #tpu.memory_space<vmem>>, vector<1x12x128xf32>
    %40 = vector.shape_cast %39 : vector<1x12x128xf32> to vector<12x128xf32>
    %41 = vector.shape_cast %38 : vector<12x128xf32> to vector<1x12x128xf32>
    tpu.vector_store %arg6[%c0_41, %c0_42, %c0_43], %41 {strides = array<i32>} : memref<1x12x1536xf32, #tpu.memory_space<vmem>>, vector<1x12x128xf32>,
    %c0_44 = arith.constant 0 : index
    %c16 = arith.constant 16 : index
    %42 = vector.load %arg7[%c0_44, %c16] : memref<14x224xbf16, #tpu.memory_space<vmem>>, vector<12x48xbf16>
    %c0_45 = arith.constant 0 : index
    %c0_46 = arith.constant 0 : index
    %c0_47 = arith.constant 0 : index
    %43 = vector.load %arg4[%c0_45, %c0_46, %c0_47] : memref<3x48x128xbf16, #tpu.memory_space<vmem>>, vector<1x48x128xbf16>
    %44 = vector.shape_cast %43 : vector<1x48x128xbf16> to vector<48x128xbf16>
    %cst_48 = arith.constant dense<0.000000e+00> : vector<12x128xf32>
    %45 = tpu.matmul %42, %44, %cst_48 {dimension_numbers = #tpu.dot_dimension_numbers<[1], [0], [0], [1], [0, 0, 1, 1], [], []>} : vector<12x48xbf16>, vector<48x128xbf16>, vector<12x128xf32> -> vector<12x128xf32>
    %c1_49 = arith.constant 1 : index
    %c16_50 = arith.constant 16 : index
    %46 = vector.load %arg7[%c1_49, %c16_50] : memref<14x224xbf16, #tpu.memory_space<vmem>>, vector<12x48xbf16>
    %c1_51 = arith.constant 1 : index
    %c0_52 = arith.constant 0 : index
    %c0_53 = arith.constant 0 : index
    %47 = vector.load %arg4[%c1_51, %c0_52, %c0_53] : memref<3x48x128xbf16, #tpu.memory_space<vmem>>, vector<1x48x128xbf16>
    %48 = vector.shape_cast %47 : vector<1x48x128xbf16> to vector<48x128xbf16>
    %cst_54 = arith.constant dense<0.000000e+00> : vector<12x128xf32>
    %49 = tpu.matmul %46, %48, %cst_54 {dimension_numbers = #tpu.dot_dimension_numbers<[1], [0], [0], [1], [0, 0, 1, 1], [], []>} : vector<12x48xbf16>, vector<48x128xbf16>, vector<12x128xf32> -> vector<12x128xf32>
    %50 = arith.addf %45, %49 : vector<12x128xf32>
    %c2_55 = arith.constant 2 : index
    %c16_56 = arith.constant 16 : index
    %51 = vector.load %arg7[%c2_55, %c16_56] : memref<14x224xbf16, #tpu.memory_space<vmem>>, vector<12x48xbf16>
    %c2_57 = arith.constant 2 : index
    %c0_58 = arith.constant 0 : index
    %c0_59 = arith.constant 0 : index
    %52 = vector.load %arg4[%c2_57, %c0_58, %c0_59] : memref<3x48x128xbf16, #tpu.memory_space<vmem>>, vector<1x48x128xbf16>
    %53 = vector.shape_cast %52 : vector<1x48x128xbf16> to vector<48x128xbf16>
    %cst_60 = arith.constant dense<0.000000e+00> : vector<12x128xf32>
    %54 = tpu.matmul %51, %53, %cst_60 {dimension_numbers = #tpu.dot_dimension_numbers<[1], [0], [0], [1], [0, 0, 1, 1], [], []>} : vector<12x48xbf16>, vector<48x128xbf16>, vector<12x128xf32> -> vector<12x128xf32>
    %55 = arith.addf %50, %54 : vector<12x128xf32>
    %c0_61 = arith.constant 0 : index
    %c0_62 = arith.constant 0 : index
    %56 = vector.load %arg5[%c0_61, %c0_62] : memref<1x128xf32, #tpu.memory_space<vmem>>, vector<1x128xf32>
    %57 = vector.broadcast %56 : vector<1x128xf32> to vector<12x128xf32>
    %58 = arith.addf %55, %57 : vector<12x128xf32>
    %c0_63 = arith.constant 0 : index
    %c0_64 = arith.constant 0 : index
    %c128 = arith.constant 128 : index
    %59 = vector.load %arg6[%c0_63, %c0_64, %c128] : memref<1x12x1536xf32, #tpu.memory_space<vmem>>, vector<1x12x128xf32>
    %60 = vector.shape_cast %59 : vector<1x12x128xf32> to vector<12x128xf32>
    %61 = vector.shape_cast %58 : vector<12x128xf32> to vector<1x12x128xf32>
    tpu.vector_store %arg6[%c0_63, %c0_64, %c128], %61 {strides = array<i32>} : memref<1x12x1536xf32, #tpu.memory_space<vmem>>, vector<1x12x128xf32>,
    %c0_65 = arith.constant 0 : index
    %c32 = arith.constant 32 : index
    %62 = vector.load %arg7[%c0_65, %c32] : memref<14x224xbf16, #tpu.memory_space<vmem>>, vector<12x48xbf16>
    %c0_66 = arith.constant 0 : index
    %c0_67 = arith.constant 0 : index
    %c0_68 = arith.constant 0 : index
    %63 = vector.load %arg4[%c0_66, %c0_67, %c0_68] : memref<3x48x128xbf16, #tpu.memory_space<vmem>>, vector<1x48x128xbf16>
    %64 = vector.shape_cast %63 : vector<1x48x128xbf16> to vector<48x128xbf16>
    %cst_69 = arith.constant dense<0.000000e+00> : vector<12x128xf32>
    %65 = tpu.matmul %62, %64, %cst_69 {dimension_numbers = #tpu.dot_dimension_numbers<[1], [0], [0], [1], [0, 0, 1, 1], [], []>} : vector<12x48xbf16>, vector<48x128xbf16>, vector<12x128xf32> -> vector<12x128xf32>
    %c1_70 = arith.constant 1 : index
    %c32_71 = arith.constant 32 : index
    %66 = vector.load %arg7[%c1_70, %c32_71] : memref<14x224xbf16, #tpu.memory_space<vmem>>, vector<12x48xbf16>
    %c1_72 = arith.constant 1 : index
    %c0_73 = arith.constant 0 : index
    %c0_74 = arith.constant 0 : index
    %67 = vector.load %arg4[%c1_72, %c0_73, %c0_74] : memref<3x48x128xbf16, #tpu.memory_space<vmem>>, vector<1x48x128xbf16>
    %68 = vector.shape_cast %67 : vector<1x48x128xbf16> to vector<48x128xbf16>
    %cst_75 = arith.constant dense<0.000000e+00> : vector<12x128xf32>
    %69 = tpu.matmul %66, %68, %cst_75 {dimension_numbers = #tpu.dot_dimension_numbers<[1], [0], [0], [1], [0, 0, 1, 1], [], []>} : vector<12x48xbf16>, vector<48x128xbf16>, vector<12x128xf32> -> vector<12x128xf32>
    %70 = arith.addf %65, %69 : vector<12x128xf32>
    %c2_76 = arith.constant 2 : index
    %c32_77 = arith.constant 32 : index
    %71 = vector.load %arg7[%c2_76, %c32_77] : memref<14x224xbf16, #tpu.memory_space<vmem>>, vector<12x48xbf16>
    %c2_78 = arith.constant 2 : index
    %c0_79 = arith.constant 0 : index
    %c0_80 = arith.constant 0 : index
    %72 = vector.load %arg4[%c2_78, %c0_79, %c0_80] : memref<3x48x128xbf16, #tpu.memory_space<vmem>>, vector<1x48x128xbf16>
    %73 = vector.shape_cast %72 : vector<1x48x128xbf16> to vector<48x128xbf16>
    %cst_81 = arith.constant dense<0.000000e+00> : vector<12x128xf32>
    %74 = tpu.matmul %71, %73, %cst_81 {dimension_numbers = #tpu.dot_dimension_numbers<[1], [0], [0], [1], [0, 0, 1, 1], [], []>} : vector<12x48xbf16>, vector<48x128xbf16>, vector<12x128xf32> -> vector<12x128xf32>
    %75 = arith.addf %70, %74 : vector<12x128xf32>
    %c0_82 = arith.constant 0 : index
    %c0_83 = arith.constant 0 : index
    %76 = vector.load %arg5[%c0_82, %c0_83] : memref<1x128xf32, #tpu.memory_space<vmem>>, vector<1x128xf32>
    %77 = vector.broadcast %76 : vector<1x128xf32> to vector<12x128xf32>
    %78 = arith.addf %75, %77 : vector<12x128xf32>
    %c0_84 = arith.constant 0 : index
    %c0_85 = arith.constant 0 : index
    %c256 = arith.constant 256 : index
    %79 = vector.load %arg6[%c0_84, %c0_85, %c256] : memref<1x12x1536xf32, #tpu.memory_space<vmem>>, vector<1x12x128xf32>
    %80 = vector.shape_cast %79 : vector<1x12x128xf32> to vector<12x128xf32>
    %81 = vector.shape_cast %78 : vector<12x128xf32> to vector<1x12x128xf32>
    tpu.vector_store %arg6[%c0_84, %c0_85, %c256], %81 {strides = array<i32>} : memref<1x12x1536xf32, #tpu.memory_space<vmem>>, vector<1x12x128xf32>,
    %c0_86 = arith.constant 0 : index
    %c48 = arith.constant 48 : index
    %82 = vector.load %arg7[%c0_86, %c48] : memref<14x224xbf16, #tpu.memory_space<vmem>>, vector<12x48xbf16>
    %c0_87 = arith.constant 0 : index
    %c0_88 = arith.constant 0 : index
    %c0_89 = arith.constant 0 : index
    %83 = vector.load %arg4[%c0_87, %c0_88, %c0_89] : memref<3x48x128xbf16, #tpu.memory_space<vmem>>, vector<1x48x128xbf16>
    %84 = vector.shape_cast %83 : vector<1x48x128xbf16> to vector<48x128xbf16>
    %cst_90 = arith.constant dense<0.000000e+00> : vector<12x128xf32>
    %85 = tpu.matmul %82, %84, %cst_90 {dimension_numbers = #tpu.dot_dimension_numbers<[1], [0], [0], [1], [0, 0, 1, 1], [], []>} : vector<12x48xbf16>, vector<48x128xbf16>, vector<12x128xf32> -> vector<12x128xf32>
    %c1_91 = arith.constant 1 : index
    %c48_92 = arith.constant 48 : index
    %86 = vector.load %arg7[%c1_91, %c48_92] : memref<14x224xbf16, #tpu.memory_space<vmem>>, vector<12x48xbf16>
    %c1_93 = arith.constant 1 : index
    %c0_94 = arith.constant 0 : index
    %c0_95 = arith.constant 0 : index
    %87 = vector.load %arg4[%c1_93, %c0_94, %c0_95] : memref<3x48x128xbf16, #tpu.memory_space<vmem>>, vector<1x48x128xbf16>
    %88 = vector.shape_cast %87 : vector<1x48x128xbf16> to vector<48x128xbf16>
    %cst_96 = arith.constant dense<0.000000e+00> : vector<12x128xf32>
    %89 = tpu.matmul %86, %88, %cst_96 {dimension_numbers = #tpu.dot_dimension_numbers<[1], [0], [0], [1], [0, 0, 1, 1], [], []>} : vector<12x48xbf16>, vector<48x128xbf16>, vector<12x128xf32> -> vector<12x128xf32>
    %90 = arith.addf %85, %89 : vector<12x128xf32>
    %c2_97 = arith.constant 2 : index
    %c48_98 = arith.constant 48 : index
    %91 = vector.load %arg7[%c2_97, %c48_98] : memref<14x224xbf16, #tpu.memory_space<vmem>>, vector<12x48xbf16>
    %c2_99 = arith.constant 2 : index
    %c0_100 = arith.constant 0 : index
    %c0_101 = arith.constant 0 : index
    %92 = vector.load %arg4[%c2_99, %c0_100, %c0_101] : memref<3x48x128xbf16, #tpu.memory_space<vmem>>, vector<1x48x128xbf16>
    %93 = vector.shape_cast %92 : vector<1x48x128xbf16> to vector<48x128xbf16>
    %cst_102 = arith.constant dense<0.000000e+00> : vector<12x128xf32>
    %94 = tpu.matmul %91, %93, %cst_102 {dimension_numbers = #tpu.dot_dimension_numbers<[1], [0], [0], [1], [0, 0, 1, 1], [], []>} : vector<12x48xbf16>, vector<48x128xbf16>, vector<12x128xf32> -> vector<12x128xf32>
    %95 = arith.addf %90, %94 : vector<12x128xf32>
    %c0_103 = arith.constant 0 : index
    %c0_104 = arith.constant 0 : index
    %96 = vector.load %arg5[%c0_103, %c0_104] : memref<1x128xf32, #tpu.memory_space<vmem>>, vector<1x128xf32>
    %97 = vector.broadcast %96 : vector<1x128xf32> to vector<12x128xf32>
    %98 = arith.addf %95, %97 : vector<12x128xf32>
    %c0_105 = arith.constant 0 : index
    %c0_106 = arith.constant 0 : index
    %c384 = arith.constant 384 : index
    %99 = vector.load %arg6[%c0_105, %c0_106, %c384] : memref<1x12x1536xf32, #tpu.memory_space<vmem>>, vector<1x12x128xf32>
    %100 = vector.shape_cast %99 : vector<1x12x128xf32> to vector<12x128xf32>
    %101 = vector.shape_cast %98 : vector<12x128xf32> to vector<1x12x128xf32>
    tpu.vector_store %arg6[%c0_105, %c0_106, %c384], %101 {strides = array<i32>} : memref<1x12x1536xf32, #tpu.memory_space<vmem>>, vector<1x12x128xf32>,
    %c0_107 = arith.constant 0 : index
    %c64 = arith.constant 64 : index
    %102 = vector.load %arg7[%c0_107, %c64] : memref<14x224xbf16, #tpu.memory_space<vmem>>, vector<12x48xbf16>
    %c0_108 = arith.constant 0 : index
    %c0_109 = arith.constant 0 : index
    %c0_110 = arith.constant 0 : index
    %103 = vector.load %arg4[%c0_108, %c0_109, %c0_110] : memref<3x48x128xbf16, #tpu.memory_space<vmem>>, vector<1x48x128xbf16>
    %104 = vector.shape_cast %103 : vector<1x48x128xbf16> to vector<48x128xbf16>
    %cst_111 = arith.constant dense<0.000000e+00> : vector<12x128xf32>
    %105 = tpu.matmul %102, %104, %cst_111 {dimension_numbers = #tpu.dot_dimension_numbers<[1], [0], [0], [1], [0, 0, 1, 1], [], []>} : vector<12x48xbf16>, vector<48x128xbf16>, vector<12x128xf32> -> vector<12x128xf32>
    %c1_112 = arith.constant 1 : index
    %c64_113 = arith.constant 64 : index
    %106 = vector.load %arg7[%c1_112, %c64_113] : memref<14x224xbf16, #tpu.memory_space<vmem>>, vector<12x48xbf16>
    %c1_114 = arith.constant 1 : index
    %c0_115 = arith.constant 0 : index
    %c0_116 = arith.constant 0 : index
    %107 = vector.load %arg4[%c1_114, %c0_115, %c0_116] : memref<3x48x128xbf16, #tpu.memory_space<vmem>>, vector<1x48x128xbf16>
    %108 = vector.shape_cast %107 : vector<1x48x128xbf16> to vector<48x128xbf16>
    %cst_117 = arith.constant dense<0.000000e+00> : vector<12x128xf32>
    %109 = tpu.matmul %106, %108, %cst_117 {dimension_numbers = #tpu.dot_dimension_numbers<[1], [0], [0], [1], [0, 0, 1, 1], [], []>} : vector<12x48xbf16>, vector<48x128xbf16>, vector<12x128xf32> -> vector<12x128xf32>
    %110 = arith.addf %105, %109 : vector<12x128xf32>
    %c2_118 = arith.constant 2 : index
    %c64_119 = arith.constant 64 : index
    %111 = vector.load %arg7[%c2_118, %c64_119] : memref<14x224xbf16, #tpu.memory_space<vmem>>, vector<12x48xbf16>
    %c2_120 = arith.constant 2 : index
    %c0_121 = arith.constant 0 : index
    %c0_122 = arith.constant 0 : index
    %112 = vector.load %arg4[%c2_120, %c0_121, %c0_122] : memref<3x48x128xbf16, #tpu.memory_space<vmem>>, vector<1x48x128xbf16>
    %113 = vector.shape_cast %112 : vector<1x48x128xbf16> to vector<48x128xbf16>
    %cst_123 = arith.constant dense<0.000000e+00> : vector<12x128xf32>
    %114 = tpu.matmul %111, %113, %cst_123 {dimension_numbers = #tpu.dot_dimension_numbers<[1], [0], [0], [1], [0, 0, 1, 1], [], []>} : vector<12x48xbf16>, vector<48x128xbf16>, vector<12x128xf32> -> vector<12x128xf32>
    %115 = arith.addf %110, %114 : vector<12x128xf32>
    %c0_124 = arith.constant 0 : index
    %c0_125 = arith.constant 0 : index
    %116 = vector.load %arg5[%c0_124, %c0_125] : memref<1x128xf32, #tpu.memory_space<vmem>>, vector<1x128xf32>
    %117 = vector.broadcast %116 : vector<1x128xf32> to vector<12x128xf32>
    %118 = arith.addf %115, %117 : vector<12x128xf32>
    %c0_126 = arith.constant 0 : index
    %c0_127 = arith.constant 0 : index
    %c512 = arith.constant 512 : index
    %119 = vector.load %arg6[%c0_126, %c0_127, %c512] : memref<1x12x1536xf32, #tpu.memory_space<vmem>>, vector<1x12x128xf32>
    %120 = vector.shape_cast %119 : vector<1x12x128xf32> to vector<12x128xf32>
    %121 = vector.shape_cast %118 : vector<12x128xf32> to vector<1x12x128xf32>
    tpu.vector_store %arg6[%c0_126, %c0_127, %c512], %121 {strides = array<i32>} : memref<1x12x1536xf32, #tpu.memory_space<vmem>>, vector<1x12x128xf32>,
    %c0_128 = arith.constant 0 : index
    %c80 = arith.constant 80 : index
    %122 = vector.load %arg7[%c0_128, %c80] : memref<14x224xbf16, #tpu.memory_space<vmem>>, vector<12x48xbf16>
    %c0_129 = arith.constant 0 : index
    %c0_130 = arith.constant 0 : index
    %c0_131 = arith.constant 0 : index
    %123 = vector.load %arg4[%c0_129, %c0_130, %c0_131] : memref<3x48x128xbf16, #tpu.memory_space<vmem>>, vector<1x48x128xbf16>
    %124 = vector.shape_cast %123 : vector<1x48x128xbf16> to vector<48x128xbf16>
    %cst_132 = arith.constant dense<0.000000e+00> : vector<12x128xf32>
    %125 = tpu.matmul %122, %124, %cst_132 {dimension_numbers = #tpu.dot_dimension_numbers<[1], [0], [0], [1], [0, 0, 1, 1], [], []>} : vector<12x48xbf16>, vector<48x128xbf16>, vector<12x128xf32> -> vector<12x128xf32>
    %c1_133 = arith.constant 1 : index
    %c80_134 = arith.constant 80 : index
    %126 = vector.load %arg7[%c1_133, %c80_134] : memref<14x224xbf16, #tpu.memory_space<vmem>>, vector<12x48xbf16>
    %c1_135 = arith.constant 1 : index
    %c0_136 = arith.constant 0 : index
    %c0_137 = arith.constant 0 : index
    %127 = vector.load %arg4[%c1_135, %c0_136, %c0_137] : memref<3x48x128xbf16, #tpu.memory_space<vmem>>, vector<1x48x128xbf16>
    %128 = vector.shape_cast %127 : vector<1x48x128xbf16> to vector<48x128xbf16>
    %cst_138 = arith.constant dense<0.000000e+00> : vector<12x128xf32>
    %129 = tpu.matmul %126, %128, %cst_138 {dimension_numbers = #tpu.dot_dimension_numbers<[1], [0], [0], [1], [0, 0, 1, 1], [], []>} : vector<12x48xbf16>, vector<48x128xbf16>, vector<12x128xf32> -> vector<12x128xf32>
    %130 = arith.addf %125, %129 : vector<12x128xf32>
    %c2_139 = arith.constant 2 : index
    %c80_140 = arith.constant 80 : index
    %131 = vector.load %arg7[%c2_139, %c80_140] : memref<14x224xbf16, #tpu.memory_space<vmem>>, vector<12x48xbf16>
    %c2_141 = arith.constant 2 : index
    %c0_142 = arith.constant 0 : index
    %c0_143 = arith.constant 0 : index
    %132 = vector.load %arg4[%c2_141, %c0_142, %c0_143] : memref<3x48x128xbf16, #tpu.memory_space<vmem>>, vector<1x48x128xbf16>
    %133 = vector.shape_cast %132 : vector<1x48x128xbf16> to vector<48x128xbf16>
    %cst_144 = arith.constant dense<0.000000e+00> : vector<12x128xf32>
    %134 = tpu.matmul %131, %133, %cst_144 {dimension_numbers = #tpu.dot_dimension_numbers<[1], [0], [0], [1], [0, 0, 1, 1], [], []>} : vector<12x48xbf16>, vector<48x128xbf16>, vector<12x128xf32> -> vector<12x128xf32>
    %135 = arith.addf %130, %134 : vector<12x128xf32>
    %c0_145 = arith.constant 0 : index
    %c0_146 = arith.constant 0 : index
    %136 = vector.load %arg5[%c0_145, %c0_146] : memref<1x128xf32, #tpu.memory_space<vmem>>, vector<1x128xf32>
    %137 = vector.broadcast %136 : vector<1x128xf32> to vector<12x128xf32>
    %138 = arith.addf %135, %137 : vector<12x128xf32>
    %c0_147 = arith.constant 0 : index
    %c0_148 = arith.constant 0 : index
    %c640 = arith.constant 640 : index
    %139 = vector.load %arg6[%c0_147, %c0_148, %c640] : memref<1x12x1536xf32, #tpu.memory_space<vmem>>, vector<1x12x128xf32>
    %140 = vector.shape_cast %139 : vector<1x12x128xf32> to vector<12x128xf32>
    %141 = vector.shape_cast %138 : vector<12x128xf32> to vector<1x12x128xf32>
    tpu.vector_store %arg6[%c0_147, %c0_148, %c640], %141 {strides = array<i32>} : memref<1x12x1536xf32, #tpu.memory_space<vmem>>, vector<1x12x128xf32>,
    %c0_149 = arith.constant 0 : index
    %c96 = arith.constant 96 : index
    %142 = vector.load %arg7[%c0_149, %c96] : memref<14x224xbf16, #tpu.memory_space<vmem>>, vector<12x48xbf16>
    %c0_150 = arith.constant 0 : index
    %c0_151 = arith.constant 0 : index
    %c0_152 = arith.constant 0 : index
    %143 = vector.load %arg4[%c0_150, %c0_151, %c0_152] : memref<3x48x128xbf16, #tpu.memory_space<vmem>>, vector<1x48x128xbf16>
    %144 = vector.shape_cast %143 : vector<1x48x128xbf16> to vector<48x128xbf16>
    %cst_153 = arith.constant dense<0.000000e+00> : vector<12x128xf32>
    %145 = tpu.matmul %142, %144, %cst_153 {dimension_numbers = #tpu.dot_dimension_numbers<[1], [0], [0], [1], [0, 0, 1, 1], [], []>} : vector<12x48xbf16>, vector<48x128xbf16>, vector<12x128xf32> -> vector<12x128xf32>
    %c1_154 = arith.constant 1 : index
    %c96_155 = arith.constant 96 : index
    %146 = vector.load %arg7[%c1_154, %c96_155] : memref<14x224xbf16, #tpu.memory_space<vmem>>, vector<12x48xbf16>
    %c1_156 = arith.constant 1 : index
    %c0_157 = arith.constant 0 : index
    %c0_158 = arith.constant 0 : index
    %147 = vector.load %arg4[%c1_156, %c0_157, %c0_158] : memref<3x48x128xbf16, #tpu.memory_space<vmem>>, vector<1x48x128xbf16>
    %148 = vector.shape_cast %147 : vector<1x48x128xbf16> to vector<48x128xbf16>
    %cst_159 = arith.constant dense<0.000000e+00> : vector<12x128xf32>
    %149 = tpu.matmul %146, %148, %cst_159 {dimension_numbers = #tpu.dot_dimension_numbers<[1], [0], [0], [1], [0, 0, 1, 1], [], []>} : vector<12x48xbf16>, vector<48x128xbf16>, vector<12x128xf32> -> vector<12x128xf32>
    %150 = arith.addf %145, %149 : vector<12x128xf32>
    %c2_160 = arith.constant 2 : index
    %c96_161 = arith.constant 96 : index
    %151 = vector.load %arg7[%c2_160, %c96_161] : memref<14x224xbf16, #tpu.memory_space<vmem>>, vector<12x48xbf16>
    %c2_162 = arith.constant 2 : index
    %c0_163 = arith.constant 0 : index
    %c0_164 = arith.constant 0 : index
    %152 = vector.load %arg4[%c2_162, %c0_163, %c0_164] : memref<3x48x128xbf16, #tpu.memory_space<vmem>>, vector<1x48x128xbf16>
    %153 = vector.shape_cast %152 : vector<1x48x128xbf16> to vector<48x128xbf16>
    %cst_165 = arith.constant dense<0.000000e+00> : vector<12x128xf32>
    %154 = tpu.matmul %151, %153, %cst_165 {dimension_numbers = #tpu.dot_dimension_numbers<[1], [0], [0], [1], [0, 0, 1, 1], [], []>} : vector<12x48xbf16>, vector<48x128xbf16>, vector<12x128xf32> -> vector<12x128xf32>
    %155 = arith.addf %150, %154 : vector<12x128xf32>
    %c0_166 = arith.constant 0 : index
    %c0_167 = arith.constant 0 : index
    %156 = vector.load %arg5[%c0_166, %c0_167] : memref<1x128xf32, #tpu.memory_space<vmem>>, vector<1x128xf32>
    %157 = vector.broadcast %156 : vector<1x128xf32> to vector<12x128xf32>
    %158 = arith.addf %155, %157 : vector<12x128xf32>
    %c0_168 = arith.constant 0 : index
    %c0_169 = arith.constant 0 : index
    %c768 = arith.constant 768 : index
    %159 = vector.load %arg6[%c0_168, %c0_169, %c768] : memref<1x12x1536xf32, #tpu.memory_space<vmem>>, vector<1x12x128xf32>
    %160 = vector.shape_cast %159 : vector<1x12x128xf32> to vector<12x128xf32>
    %161 = vector.shape_cast %158 : vector<12x128xf32> to vector<1x12x128xf32>
    tpu.vector_store %arg6[%c0_168, %c0_169, %c768], %161 {strides = array<i32>} : memref<1x12x1536xf32, #tpu.memory_space<vmem>>, vector<1x12x128xf32>,
    %c0_170 = arith.constant 0 : index
    %c112 = arith.constant 112 : index
    %162 = vector.load %arg7[%c0_170, %c112] : memref<14x224xbf16, #tpu.memory_space<vmem>>, vector<12x48xbf16>
    %c0_171 = arith.constant 0 : index
    %c0_172 = arith.constant 0 : index
    %c0_173 = arith.constant 0 : index
    %163 = vector.load %arg4[%c0_171, %c0_172, %c0_173] : memref<3x48x128xbf16, #tpu.memory_space<vmem>>, vector<1x48x128xbf16>
    %164 = vector.shape_cast %163 : vector<1x48x128xbf16> to vector<48x128xbf16>
    %cst_174 = arith.constant dense<0.000000e+00> : vector<12x128xf32>
    %165 = tpu.matmul %162, %164, %cst_174 {dimension_numbers = #tpu.dot_dimension_numbers<[1], [0], [0], [1], [0, 0, 1, 1], [], []>} : vector<12x48xbf16>, vector<48x128xbf16>, vector<12x128xf32> -> vector<12x128xf32>
    %c1_175 = arith.constant 1 : index
    %c112_176 = arith.constant 112 : index
    %166 = vector.load %arg7[%c1_175, %c112_176] : memref<14x224xbf16, #tpu.memory_space<vmem>>, vector<12x48xbf16>
    %c1_177 = arith.constant 1 : index
    %c0_178 = arith.constant 0 : index
    %c0_179 = arith.constant 0 : index
    %167 = vector.load %arg4[%c1_177, %c0_178, %c0_179] : memref<3x48x128xbf16, #tpu.memory_space<vmem>>, vector<1x48x128xbf16>
    %168 = vector.shape_cast %167 : vector<1x48x128xbf16> to vector<48x128xbf16>
    %cst_180 = arith.constant dense<0.000000e+00> : vector<12x128xf32>
    %169 = tpu.matmul %166, %168, %cst_180 {dimension_numbers = #tpu.dot_dimension_numbers<[1], [0], [0], [1], [0, 0, 1, 1], [], []>} : vector<12x48xbf16>, vector<48x128xbf16>, vector<12x128xf32> -> vector<12x128xf32>
    %170 = arith.addf %165, %169 : vector<12x128xf32>
    %c2_181 = arith.constant 2 : index
    %c112_182 = arith.constant 112 : index
    %171 = vector.load %arg7[%c2_181, %c112_182] : memref<14x224xbf16, #tpu.memory_space<vmem>>, vector<12x48xbf16>
    %c2_183 = arith.constant 2 : index
    %c0_184 = arith.constant 0 : index
    %c0_185 = arith.constant 0 : index
    %172 = vector.load %arg4[%c2_183, %c0_184, %c0_185] : memref<3x48x128xbf16, #tpu.memory_space<vmem>>, vector<1x48x128xbf16>
    %173 = vector.shape_cast %172 : vector<1x48x128xbf16> to vector<48x128xbf16>
    %cst_186 = arith.constant dense<0.000000e+00> : vector<12x128xf32>
    %174 = tpu.matmul %171, %173, %cst_186 {dimension_numbers = #tpu.dot_dimension_numbers<[1], [0], [0], [1], [0, 0, 1, 1], [], []>} : vector<12x48xbf16>, vector<48x128xbf16>, vector<12x128xf32> -> vector<12x128xf32>
    %175 = arith.addf %170, %174 : vector<12x128xf32>
    %c0_187 = arith.constant 0 : index
    %c0_188 = arith.constant 0 : index
    %176 = vector.load %arg5[%c0_187, %c0_188] : memref<1x128xf32, #tpu.memory_space<vmem>>, vector<1x128xf32>
    %177 = vector.broadcast %176 : vector<1x128xf32> to vector<12x128xf32>
    %178 = arith.addf %175, %177 : vector<12x128xf32>
    %c0_189 = arith.constant 0 : index
    %c0_190 = arith.constant 0 : index
    %c896 = arith.constant 896 : index
    %179 = vector.load %arg6[%c0_189, %c0_190, %c896] : memref<1x12x1536xf32, #tpu.memory_space<vmem>>, vector<1x12x128xf32>
    %180 = vector.shape_cast %179 : vector<1x12x128xf32> to vector<12x128xf32>
    %181 = vector.shape_cast %178 : vector<12x128xf32> to vector<1x12x128xf32>
    tpu.vector_store %arg6[%c0_189, %c0_190, %c896], %181 {strides = array<i32>} : memref<1x12x1536xf32, #tpu.memory_space<vmem>>, vector<1x12x128xf32>,
    %c0_191 = arith.constant 0 : index
    %c128_192 = arith.constant 128 : index
    %182 = vector.load %arg7[%c0_191, %c128_192] : memref<14x224xbf16, #tpu.memory_space<vmem>>, vector<12x48xbf16>
    %c0_193 = arith.constant 0 : index
    %c0_194 = arith.constant 0 : index
    %c0_195 = arith.constant 0 : index
    %183 = vector.load %arg4[%c0_193, %c0_194, %c0_195] : memref<3x48x128xbf16, #tpu.memory_space<vmem>>, vector<1x48x128xbf16>
    %184 = vector.shape_cast %183 : vector<1x48x128xbf16> to vector<48x128xbf16>
    %cst_196 = arith.constant dense<0.000000e+00> : vector<12x128xf32>
    %185 = tpu.matmul %182, %184, %cst_196 {dimension_numbers = #tpu.dot_dimension_numbers<[1], [0], [0], [1], [0, 0, 1, 1], [], []>} : vector<12x48xbf16>, vector<48x128xbf16>, vector<12x128xf32> -> vector<12x128xf32>
    %c1_197 = arith.constant 1 : index
    %c128_198 = arith.constant 128 : index
    %186 = vector.load %arg7[%c1_197, %c128_198] : memref<14x224xbf16, #tpu.memory_space<vmem>>, vector<12x48xbf16>
    %c1_199 = arith.constant 1 : index
    %c0_200 = arith.constant 0 : index
    %c0_201 = arith.constant 0 : index
    %187 = vector.load %arg4[%c1_199, %c0_200, %c0_201] : memref<3x48x128xbf16, #tpu.memory_space<vmem>>, vector<1x48x128xbf16>
    %188 = vector.shape_cast %187 : vector<1x48x128xbf16> to vector<48x128xbf16>
    %cst_202 = arith.constant dense<0.000000e+00> : vector<12x128xf32>
    %189 = tpu.matmul %186, %188, %cst_202 {dimension_numbers = #tpu.dot_dimension_numbers<[1], [0], [0], [1], [0, 0, 1, 1], [], []>} : vector<12x48xbf16>, vector<48x128xbf16>, vector<12x128xf32> -> vector<12x128xf32>
    %190 = arith.addf %185, %189 : vector<12x128xf32>
    %c2_203 = arith.constant 2 : index
    %c128_204 = arith.constant 128 : index
    %191 = vector.load %arg7[%c2_203, %c128_204] : memref<14x224xbf16, #tpu.memory_space<vmem>>, vector<12x48xbf16>
    %c2_205 = arith.constant 2 : index
    %c0_206 = arith.constant 0 : index
    %c0_207 = arith.constant 0 : index
    %192 = vector.load %arg4[%c2_205, %c0_206, %c0_207] : memref<3x48x128xbf16, #tpu.memory_space<vmem>>, vector<1x48x128xbf16>
    %193 = vector.shape_cast %192 : vector<1x48x128xbf16> to vector<48x128xbf16>
    %cst_208 = arith.constant dense<0.000000e+00> : vector<12x128xf32>
    %194 = tpu.matmul %191, %193, %cst_208 {dimension_numbers = #tpu.dot_dimension_numbers<[1], [0], [0], [1], [0, 0, 1, 1], [], []>} : vector<12x48xbf16>, vector<48x128xbf16>, vector<12x128xf32> -> vector<12x128xf32>
    %195 = arith.addf %190, %194 : vector<12x128xf32>
    %c0_209 = arith.constant 0 : index
    %c0_210 = arith.constant 0 : index
    %196 = vector.load %arg5[%c0_209, %c0_210] : memref<1x128xf32, #tpu.memory_space<vmem>>, vector<1x128xf32>
    %197 = vector.broadcast %196 : vector<1x128xf32> to vector<12x128xf32>
    %198 = arith.addf %195, %197 : vector<12x128xf32>
    %c0_211 = arith.constant 0 : index
    %c0_212 = arith.constant 0 : index
    %c1024 = arith.constant 1024 : index
    %199 = vector.load %arg6[%c0_211, %c0_212, %c1024] : memref<1x12x1536xf32, #tpu.memory_space<vmem>>, vector<1x12x128xf32>
    %200 = vector.shape_cast %199 : vector<1x12x128xf32> to vector<12x128xf32>
    %201 = vector.shape_cast %198 : vector<12x128xf32> to vector<1x12x128xf32>
    tpu.vector_store %arg6[%c0_211, %c0_212, %c1024], %201 {strides = array<i32>} : memref<1x12x1536xf32, #tpu.memory_space<vmem>>, vector<1x12x128xf32>,
    %c0_213 = arith.constant 0 : index
    %c144 = arith.constant 144 : index
    %202 = vector.load %arg7[%c0_213, %c144] : memref<14x224xbf16, #tpu.memory_space<vmem>>, vector<12x48xbf16>
    %c0_214 = arith.constant 0 : index
    %c0_215 = arith.constant 0 : index
    %c0_216 = arith.constant 0 : index
    %203 = vector.load %arg4[%c0_214, %c0_215, %c0_216] : memref<3x48x128xbf16, #tpu.memory_space<vmem>>, vector<1x48x128xbf16>
    %204 = vector.shape_cast %203 : vector<1x48x128xbf16> to vector<48x128xbf16>
    %cst_217 = arith.constant dense<0.000000e+00> : vector<12x128xf32>
    %205 = tpu.matmul %202, %204, %cst_217 {dimension_numbers = #tpu.dot_dimension_numbers<[1], [0], [0], [1], [0, 0, 1, 1], [], []>} : vector<12x48xbf16>, vector<48x128xbf16>, vector<12x128xf32> -> vector<12x128xf32>
    %c1_218 = arith.constant 1 : index
    %c144_219 = arith.constant 144 : index
    %206 = vector.load %arg7[%c1_218, %c144_219] : memref<14x224xbf16, #tpu.memory_space<vmem>>, vector<12x48xbf16>
    %c1_220 = arith.constant 1 : index
    %c0_221 = arith.constant 0 : index
    %c0_222 = arith.constant 0 : index
    %207 = vector.load %arg4[%c1_220, %c0_221, %c0_222] : memref<3x48x128xbf16, #tpu.memory_space<vmem>>, vector<1x48x128xbf16>
    %208 = vector.shape_cast %207 : vector<1x48x128xbf16> to vector<48x128xbf16>
    %cst_223 = arith.constant dense<0.000000e+00> : vector<12x128xf32>
    %209 = tpu.matmul %206, %208, %cst_223 {dimension_numbers = #tpu.dot_dimension_numbers<[1], [0], [0], [1], [0, 0, 1, 1], [], []>} : vector<12x48xbf16>, vector<48x128xbf16>, vector<12x128xf32> -> vector<12x128xf32>
    %210 = arith.addf %205, %209 : vector<12x128xf32>
    %c2_224 = arith.constant 2 : index
    %c144_225 = arith.constant 144 : index
    %211 = vector.load %arg7[%c2_224, %c144_225] : memref<14x224xbf16, #tpu.memory_space<vmem>>, vector<12x48xbf16>
    %c2_226 = arith.constant 2 : index
    %c0_227 = arith.constant 0 : index
    %c0_228 = arith.constant 0 : index
    %212 = vector.load %arg4[%c2_226, %c0_227, %c0_228] : memref<3x48x128xbf16, #tpu.memory_space<vmem>>, vector<1x48x128xbf16>
    %213 = vector.shape_cast %212 : vector<1x48x128xbf16> to vector<48x128xbf16>
    %cst_229 = arith.constant dense<0.000000e+00> : vector<12x128xf32>
    %214 = tpu.matmul %211, %213, %cst_229 {dimension_numbers = #tpu.dot_dimension_numbers<[1], [0], [0], [1], [0, 0, 1, 1], [], []>} : vector<12x48xbf16>, vector<48x128xbf16>, vector<12x128xf32> -> vector<12x128xf32>
    %215 = arith.addf %210, %214 : vector<12x128xf32>
    %c0_230 = arith.constant 0 : index
    %c0_231 = arith.constant 0 : index
    %216 = vector.load %arg5[%c0_230, %c0_231] : memref<1x128xf32, #tpu.memory_space<vmem>>, vector<1x128xf32>
    %217 = vector.broadcast %216 : vector<1x128xf32> to vector<12x128xf32>
    %218 = arith.addf %215, %217 : vector<12x128xf32>
    %c0_232 = arith.constant 0 : index
    %c0_233 = arith.constant 0 : index
    %c1152 = arith.constant 1152 : index
    %219 = vector.load %arg6[%c0_232, %c0_233, %c1152] : memref<1x12x1536xf32, #tpu.memory_space<vmem>>, vector<1x12x128xf32>
    %220 = vector.shape_cast %219 : vector<1x12x128xf32> to vector<12x128xf32>
    %221 = vector.shape_cast %218 : vector<12x128xf32> to vector<1x12x128xf32>
    tpu.vector_store %arg6[%c0_232, %c0_233, %c1152], %221 {strides = array<i32>} : memref<1x12x1536xf32, #tpu.memory_space<vmem>>, vector<1x12x128xf32>,
    %c0_234 = arith.constant 0 : index
    %c160 = arith.constant 160 : index
    %222 = vector.load %arg7[%c0_234, %c160] : memref<14x224xbf16, #tpu.memory_space<vmem>>, vector<12x48xbf16>
    %c0_235 = arith.constant 0 : index
    %c0_236 = arith.constant 0 : index
    %c0_237 = arith.constant 0 : index
    %223 = vector.load %arg4[%c0_235, %c0_236, %c0_237] : memref<3x48x128xbf16, #tpu.memory_space<vmem>>, vector<1x48x128xbf16>
    %224 = vector.shape_cast %223 : vector<1x48x128xbf16> to vector<48x128xbf16>
    %cst_238 = arith.constant dense<0.000000e+00> : vector<12x128xf32>
    %225 = tpu.matmul %222, %224, %cst_238 {dimension_numbers = #tpu.dot_dimension_numbers<[1], [0], [0], [1], [0, 0, 1, 1], [], []>} : vector<12x48xbf16>, vector<48x128xbf16>, vector<12x128xf32> -> vector<12x128xf32>
    %c1_239 = arith.constant 1 : index
    %c160_240 = arith.constant 160 : index
    %226 = vector.load %arg7[%c1_239, %c160_240] : memref<14x224xbf16, #tpu.memory_space<vmem>>, vector<12x48xbf16>
    %c1_241 = arith.constant 1 : index
    %c0_242 = arith.constant 0 : index
    %c0_243 = arith.constant 0 : index
    %227 = vector.load %arg4[%c1_241, %c0_242, %c0_243] : memref<3x48x128xbf16, #tpu.memory_space<vmem>>, vector<1x48x128xbf16>
    %228 = vector.shape_cast %227 : vector<1x48x128xbf16> to vector<48x128xbf16>
    %cst_244 = arith.constant dense<0.000000e+00> : vector<12x128xf32>
    %229 = tpu.matmul %226, %228, %cst_244 {dimension_numbers = #tpu.dot_dimension_numbers<[1], [0], [0], [1], [0, 0, 1, 1], [], []>} : vector<12x48xbf16>, vector<48x128xbf16>, vector<12x128xf32> -> vector<12x128xf32>
    %230 = arith.addf %225, %229 : vector<12x128xf32>
    %c2_245 = arith.constant 2 : index
    %c160_246 = arith.constant 160 : index
    %231 = vector.load %arg7[%c2_245, %c160_246] : memref<14x224xbf16, #tpu.memory_space<vmem>>, vector<12x48xbf16>
    %c2_247 = arith.constant 2 : index
    %c0_248 = arith.constant 0 : index
    %c0_249 = arith.constant 0 : index
    %232 = vector.load %arg4[%c2_247, %c0_248, %c0_249] : memref<3x48x128xbf16, #tpu.memory_space<vmem>>, vector<1x48x128xbf16>
    %233 = vector.shape_cast %232 : vector<1x48x128xbf16> to vector<48x128xbf16>
    %cst_250 = arith.constant dense<0.000000e+00> : vector<12x128xf32>
    %234 = tpu.matmul %231, %233, %cst_250 {dimension_numbers = #tpu.dot_dimension_numbers<[1], [0], [0], [1], [0, 0, 1, 1], [], []>} : vector<12x48xbf16>, vector<48x128xbf16>, vector<12x128xf32> -> vector<12x128xf32>
    %235 = arith.addf %230, %234 : vector<12x128xf32>
    %c0_251 = arith.constant 0 : index
    %c0_252 = arith.constant 0 : index
    %236 = vector.load %arg5[%c0_251, %c0_252] : memref<1x128xf32, #tpu.memory_space<vmem>>, vector<1x128xf32>
    %237 = vector.broadcast %236 : vector<1x128xf32> to vector<12x128xf32>
    %238 = arith.addf %235, %237 : vector<12x128xf32>
    %c0_253 = arith.constant 0 : index
    %c0_254 = arith.constant 0 : index
    %c1280 = arith.constant 1280 : index
    %239 = vector.load %arg6[%c0_253, %c0_254, %c1280] : memref<1x12x1536xf32, #tpu.memory_space<vmem>>, vector<1x12x128xf32>
    %240 = vector.shape_cast %239 : vector<1x12x128xf32> to vector<12x128xf32>
    %241 = vector.shape_cast %238 : vector<12x128xf32> to vector<1x12x128xf32>
    tpu.vector_store %arg6[%c0_253, %c0_254, %c1280], %241 {strides = array<i32>} : memref<1x12x1536xf32, #tpu.memory_space<vmem>>, vector<1x12x128xf32>,
    %c0_255 = arith.constant 0 : index
    %c176 = arith.constant 176 : index
    %242 = vector.load %arg7[%c0_255, %c176] : memref<14x224xbf16, #tpu.memory_space<vmem>>, vector<12x48xbf16>
    %c0_256 = arith.constant 0 : index
    %c0_257 = arith.constant 0 : index
    %c0_258 = arith.constant 0 : index
    %243 = vector.load %arg4[%c0_256, %c0_257, %c0_258] : memref<3x48x128xbf16, #tpu.memory_space<vmem>>, vector<1x48x128xbf16>
    %244 = vector.shape_cast %243 : vector<1x48x128xbf16> to vector<48x128xbf16>
    %cst_259 = arith.constant dense<0.000000e+00> : vector<12x128xf32>
    %245 = tpu.matmul %242, %244, %cst_259 {dimension_numbers = #tpu.dot_dimension_numbers<[1], [0], [0], [1], [0, 0, 1, 1], [], []>} : vector<12x48xbf16>, vector<48x128xbf16>, vector<12x128xf32> -> vector<12x128xf32>
    %c1_260 = arith.constant 1 : index
    %c176_261 = arith.constant 176 : index
    %246 = vector.load %arg7[%c1_260, %c176_261] : memref<14x224xbf16, #tpu.memory_space<vmem>>, vector<12x48xbf16>
    %c1_262 = arith.constant 1 : index
    %c0_263 = arith.constant 0 : index
    %c0_264 = arith.constant 0 : index
    %247 = vector.load %arg4[%c1_262, %c0_263, %c0_264] : memref<3x48x128xbf16, #tpu.memory_space<vmem>>, vector<1x48x128xbf16>
    %248 = vector.shape_cast %247 : vector<1x48x128xbf16> to vector<48x128xbf16>
    %cst_265 = arith.constant dense<0.000000e+00> : vector<12x128xf32>
    %249 = tpu.matmul %246, %248, %cst_265 {dimension_numbers = #tpu.dot_dimension_numbers<[1], [0], [0], [1], [0, 0, 1, 1], [], []>} : vector<12x48xbf16>, vector<48x128xbf16>, vector<12x128xf32> -> vector<12x128xf32>
    %250 = arith.addf %245, %249 : vector<12x128xf32>
    %c2_266 = arith.constant 2 : index
    %c176_267 = arith.constant 176 : index
    %251 = vector.load %arg7[%c2_266, %c176_267] : memref<14x224xbf16, #tpu.memory_space<vmem>>, vector<12x48xbf16>
    %c2_268 = arith.constant 2 : index
    %c0_269 = arith.constant 0 : index
    %c0_270 = arith.constant 0 : index
    %252 = vector.load %arg4[%c2_268, %c0_269, %c0_270] : memref<3x48x128xbf16, #tpu.memory_space<vmem>>, vector<1x48x128xbf16>
    %253 = vector.shape_cast %252 : vector<1x48x128xbf16> to vector<48x128xbf16>
    %cst_271 = arith.constant dense<0.000000e+00> : vector<12x128xf32>
    %254 = tpu.matmul %251, %253, %cst_271 {dimension_numbers = #tpu.dot_dimension_numbers<[1], [0], [0], [1], [0, 0, 1, 1], [], []>} : vector<12x48xbf16>, vector<48x128xbf16>, vector<12x128xf32> -> vector<12x128xf32>
    %255 = arith.addf %250, %254 : vector<12x128xf32>
    %c0_272 = arith.constant 0 : index
    %c0_273 = arith.constant 0 : index
    %256 = vector.load %arg5[%c0_272, %c0_273] : memref<1x128xf32, #tpu.memory_space<vmem>>, vector<1x128xf32>
    %257 = vector.broadcast %256 : vector<1x128xf32> to vector<12x128xf32>
    %258 = arith.addf %255, %257 : vector<12x128xf32>
    %c0_274 = arith.constant 0 : index
    %c0_275 = arith.constant 0 : index
    %c1408 = arith.constant 1408 : index
    %259 = vector.load %arg6[%c0_274, %c0_275, %c1408] : memref<1x12x1536xf32, #tpu.memory_space<vmem>>, vector<1x12x128xf32>
    %260 = vector.shape_cast %259 : vector<1x12x128xf32> to vector<12x128xf32>
    %261 = vector.shape_cast %258 : vector<12x128xf32> to vector<1x12x128xf32>
    tpu.vector_store %arg6[%c0_274, %c0_275, %c1408], %261 {strides = array<i32>} : memref<1x12x1536xf32, #tpu.memory_space<vmem>>, vector<1x12x128xf32>,
    return
  }
  func.func @transform_0(%arg0: i32) -> (i32, i32, i32) {
    %c0_i32 = arith.constant 0 : i32
    %c0_i32_0 = arith.constant 0 : i32
    %c0_i32_1 = arith.constant 0 : i32
    return %arg0, %c0_i32, %c0_i32_0 : i32, i32, i32
  }
  func.func @transform_1(%arg0: i32) -> (i32, i32, i32) {
    %c0_i32 = arith.constant 0 : i32
    %c0_i32_0 = arith.constant 0 : i32
    %c0_i32_1 = arith.constant 0 : i32
    %c0_i32_2 = arith.constant 0 : i32
    return %c0_i32, %c0_i32_0, %c0_i32_1 : i32, i32, i32
  }
  func.func @transform_2(%arg0: i32) -> (i32, i32) {
    %c0_i32 = arith.constant 0 : i32
    %c0_i32_0 = arith.constant 0 : i32
    %c0_i32_1 = arith.constant 0 : i32
    return %c0_i32, %c0_i32_0 : i32, i32
  }
  func.func @transform_3(%arg0: i32) -> (i32, i32, i32) {
    %c0_i32 = arith.constant 0 : i32
    %c0_i32_0 = arith.constant 0 : i32
    %c0_i32_1 = arith.constant 0 : i32
    %c0_i32_2 = arith.constant 0 : i32
    return %c0_i32, %c0_i32_0, %c0_i32_1 : i32, i32, i32
  }
  func.func @transform_4(%arg0: i32) -> (i32, i32) {
    %c0_i32 = arith.constant 0 : i32
    %c0_i32_0 = arith.constant 0 : i32
    %c0_i32_1 = arith.constant 0 : i32
    return %c0_i32, %c0_i32_0 : i32, i32
  }
  func.func @transform_5(%arg0: i32) -> (i32, i32, i32) {
    %c0_i32 = arith.constant 0 : i32
    %c0_i32_0 = arith.constant 0 : i32
    %c0_i32_1 = arith.constant 0 : i32
    return %arg0, %c0_i32, %c0_i32_0 : i32, i32, i32
  }
}

</mosaic_0001>

<llo_original>
// kernel: mynet1_forward.1
$region0: #{mynet1_forward.1}
  #allocation0 [shape = 'u32[]', space=smem, size = 0x4, offset = 0x4, fixed_abs, tag = 'smem constant byte address 0x4 - core index']
  #allocation1 [shape = 'u32[144,128]{1,0:T(1,128)}', space=vmem, size = 0x12000, scoped, tag = 'internal scratch']
  #allocation2 [shape = 'bf16[14,224]{1,0:T(8,128)(2,1)}', space=vmem, size = 0x2000, scoped, tag = 'scratch operand']
  %s0 = inlined_call_operand.vmem [shape: bf16[2,16,48], index: 0, kind: input, shape index: {}]
  %s1 = inlined_call_operand.vmem [shape: bf16[3,48,224], index: 1, kind: input, shape index: {}]
  %s2 = inlined_call_operand.vmem [shape: f32[1,224], index: 2, kind: input, shape index: {}]
  %s3 = inlined_call_operand.vmem [shape: bf16[3,48,128], index: 3, kind: input, shape index: {}]
  %s4 = inlined_call_operand.vmem [shape: f32[1,128], index: 4, kind: input, shape index: {}]
  %s5 = inlined_call_operand.vmem [shape: f32[2,12,1536], index: 5, kind: output, shape index: {}]
  %s6 = sld [smem:[#allocation0]]
  $region53: #{mynet1_forward.1} parent=0
    _
  %s8 = ssub.s32 1, %s6
  %s9 = scalar_select 0, %s8, %s6
  loop: start=0, step=1, limit=4
  $region2: #{mynet1_forward.1} parent=0 // loop_pre_header
    _
  $region3: #{mynet1_forward.1} parent=0 // loop_header
    %s11 = sphi 0, %s15
    %p12 = scmp.ge.s32.totalorder %s11, 4
    %s21 = sphi 0, %s23
    %s24 = sphi 0, %s21
    %s25 = sphi 0, %s24
    %s41 = sphi 0, %s25
    %s45 = sphi 0, %s45
    %s47 = sphi 0, %s45
    %s48 = sphi 0, %s47
    %s62 = sphi 0, %s48
    %s66 = sphi 0, %s66
    %s68 = sphi 0, %s66
    %s69 = sphi 0, %s68
    %s83 = sphi 0, %s69
    %s87 = sphi 0, %s87
    %s89 = sphi 0, %s87
    %s90 = sphi 0, %s89
    %s104 = sphi 0, %s90
    %s108 = sphi 0, %s108
    %s110 = sphi 0, %s108
    %s111 = sphi 0, %s110
    %s125 = sphi 0, %s111
    %s131 = sphi 0, %s133
    %s134 = sphi 0, %s131
    %s135 = sphi 0, %s134
    %s151 = sphi 0, %s135
  $region4: #{mynet1_forward.1} parent=0 // loop_header_branch
    %14 = sbr.rel (%p12) target = $region8
  $region5: #{mynet1_forward.1} parent=0 // loop_body
    %s16 = ssub.s32 %s11, 1
    %s17 = ssub.s32 %s11, 2
    %s18 = sadd.s32 %s11, 1
    %s19 = ssub.s32 %s11, %s18
    %p20 = scmp.eq.s32.totalorder %s19, 0
    %s22 = sadd.s32 %s21, 1
    %s23 = scalar_select %p20, %s21, %s22
    %p26 = pneg %p20
    %p27 = scmp.eq.s32.totalorder %s11, 1
    %p28 = por %p26, %p27
    %p29 = scmp.ne.s32.totalorder %s21, %s24
    %p30 = scmp.eq.s32.totalorder %s11, 0
    %p31 = por %p29, %p30
    %p32 = scmp.ne.s32.totalorder %s21, %s24
    %p33 = scmp.eq.s32.totalorder %s16, 1
    %p34 = por %p32, %p33
    %p35 = scmp.ne.s32.totalorder %s24, %s25
    %p36 = scmp.eq.s32.totalorder %s16, 0
    %p37 = por %p35, %p36
    %p38 = scmp.ne.s32.totalorder %s24, %s25
    %p39 = scmp.eq.s32.totalorder %s17, 1
    %p40 = por %p38, %p39
    %p42 = scmp.ne.s32.totalorder %s25, %s41
    %p43 = scmp.eq.s32.totalorder %s17, 0
    %p44 = por %p42, %p43
    %s46 = sadd.s32 %s45, 1
    %p49 = scmp.eq.s32.totalorder %s11, 1
    %p50 = scmp.ne.s32.totalorder %s45, %s47
    %p51 = scmp.eq.s32.totalorder %s11, 0
    %p52 = por %p50, %p51
    %p53 = scmp.ne.s32.totalorder %s45, %s47
    %p54 = scmp.eq.s32.totalorder %s16, 1
    %p55 = por %p53, %p54
    %p56 = scmp.ne.s32.totalorder %s47, %s48
    %p57 = scmp.eq.s32.totalorder %s16, 0
    %p58 = por %p56, %p57
    %p59 = scmp.ne.s32.totalorder %s47, %s48
    %p60 = scmp.eq.s32.totalorder %s17, 1
    %p61 = por %p59, %p60
    %p63 = scmp.ne.s32.totalorder %s48, %s62
    %p64 = scmp.eq.s32.totalorder %s17, 0
    %p65 = por %p63, %p64
    %s67 = sadd.s32 %s66, 1
    %p70 = scmp.eq.s32.totalorder %s11, 1
    %p71 = scmp.ne.s32.totalorder %s66, %s68
    %p72 = scmp.eq.s32.totalorder %s11, 0
    %p73 = por %p71, %p72
    %p74 = scmp.ne.s32.totalorder %s66, %s68
    %p75 = scmp.eq.s32.totalorder %s16, 1
    %p76 = por %p74, %p75
    %p77 = scmp.ne.s32.totalorder %s68, %s69
    %p78 = scmp.eq.s32.totalorder %s16, 0
    %p79 = por %p77, %p78
    %p80 = scmp.ne.s32.totalorder %s68, %s69
    %p81 = scmp.eq.s32.totalorder %s17, 1
    %p82 = por %p80, %p81
    %p84 = scmp.ne.s32.totalorder %s69, %s83
    %p85 = scmp.eq.s32.totalorder %s17, 0
    %p86 = por %p84, %p85
    %s88 = sadd.s32 %s87, 1
    %p91 = scmp.eq.s32.totalorder %s11, 1
    %p92 = scmp.ne.s32.totalorder %s87, %s89
    %p93 = scmp.eq.s32.totalorder %s11, 0
    %p94 = por %p92, %p93
    %p95 = scmp.ne.s32.totalorder %s87, %s89
    %p96 = scmp.eq.s32.totalorder %s16, 1
    %p97 = por %p95, %p96
    %p98 = scmp.ne.s32.totalorder %s89, %s90
    %p99 = scmp.eq.s32.totalorder %s16, 0
    %p100 = por %p98, %p99
    %p101 = scmp.ne.s32.totalorder %s89, %s90
    %p102 = scmp.eq.s32.totalorder %s17, 1
    %p103 = por %p101, %p102
    %p105 = scmp.ne.s32.totalorder %s90, %s104
    %p106 = scmp.eq.s32.totalorder %s17, 0
    %p107 = por %p105, %p106
    %s109 = sadd.s32 %s108, 1
    %p112 = scmp.eq.s32.totalorder %s11, 1
    %p113 = scmp.ne.s32.totalorder %s108, %s110
    %p114 = scmp.eq.s32.totalorder %s11, 0
    %p115 = por %p113, %p114
    %p116 = scmp.ne.s32.totalorder %s108, %s110
    %p117 = scmp.eq.s32.totalorder %s16, 1
    %p118 = por %p116, %p117
    %p119 = scmp.ne.s32.totalorder %s110, %s111
    %p120 = scmp.eq.s32.totalorder %s16, 0
    %p121 = por %p119, %p120
    %p122 = scmp.ne.s32.totalorder %s110, %s111
    %p123 = scmp.eq.s32.totalorder %s17, 1
    %p124 = por %p122, %p123
    %p126 = scmp.ne.s32.totalorder %s111, %s125
    %p127 = scmp.eq.s32.totalorder %s17, 0
    %p128 = por %p126, %p127
    %s129 = ssub.s32 %s11, %s18
    %p130 = scmp.eq.s32.totalorder %s129, 0
    %s132 = sadd.s32 %s131, 1
    %s133 = scalar_select %p130, %s131, %s132
    %p136 = pneg %p130
    %p137 = scmp.eq.s32.totalorder %s11, 1
    %p138 = por %p136, %p137
    %p139 = scmp.ne.s32.totalorder %s131, %s134
    %p140 = scmp.eq.s32.totalorder %s11, 0
    %p141 = por %p139, %p140
    %p142 = scmp.ne.s32.totalorder %s131, %s134
    %p143 = scmp.eq.s32.totalorder %s16, 1
    %p144 = por %p142, %p143
    %p145 = scmp.ne.s32.totalorder %s134, %s135
    %p146 = scmp.eq.s32.totalorder %s16, 0
    %p147 = por %p145, %p146
    %p148 = scmp.ne.s32.totalorder %s134, %s135
    %p149 = scmp.eq.s32.totalorder %s17, 1
    %p150 = por %p148, %p149
    %p152 = scmp.ne.s32.totalorder %s135, %s151
    %p153 = scmp.eq.s32.totalorder %s17, 0
    %p154 = por %p152, %p153
    %p155 = scmp.le.s32.totalorder 1, %s11
    %p156 = scmp.lt.s32.totalorder %s11, 3
    %p157 = pnand %p155, %p156
    %p158 = pneg %p157
    // Predicated region
    $region9: #{mynet1_forward.1} parent=5 // pred_check
      _
    $region10: #{mynet1_forward.1} parent=5 // pred_check_branch
      %160 = sbr.rel (%p157) target = $region12
    $region11: #{mynet1_forward.1} parent=5 // pred_region
      %s161 = ssub.s32 %s11, 1
      // Predicated region
      $region13: #{mynet1_forward.1} parent=11 // pred_check
        %p162 = pneg %p58
      $region14: #{mynet1_forward.1} parent=11 // pred_check_branch
        %164 = sbr.rel (%p162) target = $region16
      $region15: #{mynet1_forward.1} parent=11 // pred_region
        _
      $region16: #{mynet1_forward.1} parent=11 // pred_fallthru
        _
      // Predicated region
      $region17: #{mynet1_forward.1} parent=11 // pred_check
        %p165 = pneg %p79
      $region18: #{mynet1_forward.1} parent=11 // pred_check_branch
        %167 = sbr.rel (%p165) target = $region20
      $region19: #{mynet1_forward.1} parent=11 // pred_region
        _
      $region20: #{mynet1_forward.1} parent=11 // pred_fallthru
        _
      // Predicated region
      $region21: #{mynet1_forward.1} parent=11 // pred_check
        %p168 = pneg %p100
      $region22: #{mynet1_forward.1} parent=11 // pred_check_branch
        %170 = sbr.rel (%p168) target = $region24
      $region23: #{mynet1_forward.1} parent=11 // pred_region
        _
      $region24: #{mynet1_forward.1} parent=11 // pred_fallthru
        _
      // Predicated region
      $region25: #{mynet1_forward.1} parent=11 // pred_check
        %p171 = pneg %p121
      $region26: #{mynet1_forward.1} parent=11 // pred_check_branch
        %173 = sbr.rel (%p171) target = $region28
      $region27: #{mynet1_forward.1} parent=11 // pred_region
        _
      $region28: #{mynet1_forward.1} parent=11 // pred_fallthru
        _
    $region12: #{mynet1_forward.1} parent=5 // pred_fallthru
      _
    %p174 = scmp.lt.s32.totalorder %s11, 2
    // Predicated region
    $region29: #{mynet1_forward.1} parent=5 // pred_check
      %p175 = pneg %p174
    $region30: #{mynet1_forward.1} parent=5 // pred_check_branch
      %177 = sbr.rel (%p175) target = $region32
    $region31: #{mynet1_forward.1} parent=5 // pred_region
      // Predicated region
      $region33: #{mynet1_forward.1} parent=31 // pred_check
        %p178 = pneg %p31
      $region34: #{mynet1_forward.1} parent=31 // pred_check_branch
        %180 = sbr.rel (%p178) target = $region36
      $region35: #{mynet1_forward.1} parent=31 // pred_region
        %p181 = scmp.lt.s32.totalorder %s11, 1
        %s182 = scalar_select %p181, %s11, 1
        %s183 = smul.addr %s182, 2
        %s184 = smul.addr %s183, 4
        %s185 = scalar_lea.vmem %s0, %s184
      $region36: #{mynet1_forward.1} parent=31 // pred_fallthru
        _
    $region32: #{mynet1_forward.1} parent=5 // pred_fallthru
      _
    %p186 = scmp.le.s32.totalorder 1, %s11
    %p187 = scmp.lt.s32.totalorder %s11, 3
    %p188 = pnand %p186, %p187
    %p189 = pneg %p188
    // Predicated region
    $region37: #{mynet1_forward.1} parent=5 // pred_check
      _
    $region38: #{mynet1_forward.1} parent=5 // pred_check_branch
      %191 = sbr.rel (%p188) target = $region40
    $region39: #{mynet1_forward.1} parent=5 // pred_region
      %s192 = ssub.s32 %s11, 1
      %p193 = scmp.lt.s32.totalorder %s16, 1
      %s194 = scalar_select %p193, %s16, 1
      %s195 = smul.addr %s194, 2
      %s196 = smul.addr %s195, 4
      %s197 = scalar_lea.vmem %s0, %s196
      %p198 = pneg %p37
      %p199 = pneg %p34
      %p200 = pneg %p58
      %p201 = pneg %p55
      %p202 = pneg %p79
      %p203 = pneg %p76
      %p204 = pneg %p100
      %p205 = pneg %p97
      %p206 = pneg %p121
      %p207 = pneg %p118
      %p208 = pneg %p147
      %p209 = pneg %p144
      %p210 = scmp.lt.s32.totalorder %s16, 1
      %s211 = scalar_select %p210, %s16, 1
      %s212 = smul.addr %s211, 24
      %s213 = smul.addr %s212, 8
      %s214 = scalar_lea.vmem %s5, %s213
      %p215 = scmp.lt.s32.totalorder %s16, 1
      %s216 = scalar_select %p215, %s16, 1
      %s217 = smul.addr %s216, 2
      %s218 = smul.addr %s217, 4
      %s219 = scalar_lea.vmem %s0, %s218
      %p220 = scmp.lt.s32.totalorder %s16, 1
      %s221 = scalar_select %p220, %s16, 1
      %s222 = smul.addr %s221, 24
      %s223 = smul.addr %s222, 8
      %s224 = scalar_lea.vmem %s5, %s223
      %v226 = vld [vmem:[%s219] sm:$0xf]
      %v227 = vld [vmem:[%s219 + $0x4] sm:$0x7]
      %v228 = vld [vmem:[%s1] sm:$0xff]
      %v229 = vld [vmem:[%s1 + $0x8] sm:$0xff]
      %v230 = vld [vmem:[%s1 + $0x10] sm:$0xff]
      %v231 = vld [vmem:[%s1 + $0x18] sm:$0xff]
      %v232 = vld [vmem:[%s1 + $0x20] sm:$0xff]
      %v233 = vld [vmem:[%s1 + $0x28] sm:$0xff]
      %v234 = vld [vmem:[%s219 + $0x4] sm:$0xf]
      %s235 = scalar_lea.vmem %s1, 48
      %v236 = vld [vmem:[%s235] sm:$0xff]
      %v237 = vld [vmem:[%s235 + $0x8] sm:$0xff]
      %v238 = vld [vmem:[%s235 + $0x10] sm:$0xff]
      %v239 = vld [vmem:[%s235 + $0x18] sm:$0xff]
      %v240 = vld [vmem:[%s235 + $0x20] sm:$0xff]
      %v241 = vld [vmem:[%s235 + $0x28] sm:$0xff]
      %v244 = vunpack.c.l.b16 %v226
      %v245 = vunpack.c.l.b16 %v234
      %v246 = vpack.c.b16 %v245, %v244
      %v248 = vshrl.u32 %v246, 16
      %v250 = vshll.u32 %v246, 16
      %v252 = vrot.slane %v250, 1
      %v253 = vor.u32 %v248, %v252
      %v260 = vunpack.c.l.b16 %v236
      %v261 = vunpack.c.h.b16 %v236
      %v262 = vunpack.c.l.b16 %v237
      %v263 = vunpack.c.h.b16 %v237
      %v264 = vunpack.c.l.b16 %v238
      %v265 = vunpack.c.h.b16 %v238
      %v266 = vunpack.c.l.b16 %v239
      %v267 = vunpack.c.h.b16 %v239
      %v268 = vunpack.c.l.b16 %v240
      %v269 = vunpack.c.h.b16 %v240
      %v270 = vunpack.c.l.b16 %v241
      %v271 = vunpack.c.h.b16 %v241
      %v272 = vpack.c.b16 %v262, %v260
      %v273 = vpack.c.b16 %v263, %v261
      %v274 = vpack.c.b16 %v266, %v264
      %v275 = vpack.c.b16 %v267, %v265
      %v276 = vpack.c.b16 %v270, %v268
      %v277 = vpack.c.b16 %v271, %v269
      %vm284 = vcmask 392192
      %v286 = vsel %vm284, %v253, 0
      %288 = vmatprep.subr.bf16.mxu0 0
      %289 = vmatpush1.bf16.msra.mxu0 0
      %290 = vmatprep.subr.bf16.mxu0 0
      %291 = vmatpush1.bf16.msra.mxu0 0
      %292 = vmatprep.subr.bf16.mxu0 0
      %293 = vmatpush1.bf16.msra.mxu0 0
      %294 = vmatprep.subr.bf16.mxu0 0
      %295 = vmatpush1.bf16.msra.mxu0 0
      %296 = vmatprep.subr.bf16.mxu0 0
      %297 = vmatpush1.bf16.msra.mxu0 0
      %298 = vmatprep.subr.bf16.mxu0 %v277
      %299 = vmatpush1.bf16.msra.mxu0 %v276
      %300 = vmatprep.subr.bf16.mxu0 %v275
      %301 = vmatpush1.bf16.msra.mxu0 %v274
      %302 = vmatprep.subr.bf16.mxu0 %v273
      %303 = vmatpush1.bf16.msra.mxu0 %v272
      %304 = vmatprep.subr.bf16.mxu0 0
      %305 = vmatpush2.bf16.msra.mxu0 0
      %306 = vmatprep.subr.bf16.mxu0 0
      %307 = vmatpush2.bf16.msra.mxu0 0
      %308 = vmatprep.subr.bf16.mxu0 0
      %309 = vmatpush2.bf16.msra.mxu0 0
      %310 = vmatprep.subr.bf16.mxu0 0
      %311 = vmatpush2.bf16.msra.mxu0 0
      %312 = vmatprep.subr.bf16.mxu0 0
      %313 = vmatpush2.bf16.msra.mxu0 0
      %314 = vmatprep.subr.bf16.mxu0 0
      %315 = vmatpush2.bf16.msra.mxu0 0
      %316 = vmatprep.subr.bf16.mxu0 0
      %317 = vmatpush2.bf16.msra.mxu0 0
      %318 = vmatprep.subr.bf16.mxu0 0
      %319 = vmatpush2.bf16.msra.mxu0 0
      %320 = vmatprep.mubr.bf16.mxu0 0
      %321 = vmatmul.mubr.bf16.gmra.mxu0 %v286
      %v322 = vpop.f32.mrf.mxu0
      %v323 = vadd.f32 0.0, %v322
      %v324 = vpop.f32.mrf.mxu0
      %v325 = vadd.f32 0.0, %v324
      %v326 = vpop.f32.mrf.mxu0
      %v327 = vadd.f32 0.0, %v326
      %v328 = vpop.f32.mrf.mxu0
      %v329 = vadd.f32 0.0, %v328
      %330 = vdwg.mxu0
      %v332 = vunpack.c.l.b16 %v227
      %v333 = vpack.c.b16 %v332, %v244
      %v340 = vunpack.c.l.b16 %v228
      %v341 = vunpack.c.h.b16 %v228
      %v342 = vunpack.c.l.b16 %v229
      %v343 = vunpack.c.h.b16 %v229
      %v344 = vunpack.c.l.b16 %v230
      %v345 = vunpack.c.h.b16 %v230
      %v346 = vunpack.c.l.b16 %v231
      %v347 = vunpack.c.h.b16 %v231
      %v348 = vunpack.c.l.b16 %v232
      %v349 = vunpack.c.h.b16 %v232
      %v350 = vunpack.c.l.b16 %v233
      %v351 = vunpack.c.h.b16 %v233
      %v352 = vpack.c.b16 %v342, %v340
      %v353 = vpack.c.b16 %v343, %v341
      %v354 = vpack.c.b16 %v346, %v344
      %v355 = vpack.c.b16 %v347, %v345
      %v356 = vpack.c.b16 %v350, %v348
      %v357 = vpack.c.b16 %v351, %v349
      %v365 = vsel %vm284, %v333, 0
      %367 = vmatprep.subr.bf16.mxu0 0
      %368 = vmatpush1.bf16.msra.mxu0 0
      %369 = vmatprep.subr.bf16.mxu0 0
      %370 = vmatpush1.bf16.msra.mxu0 0
      %371 = vmatprep.subr.bf16.mxu0 0
      %372 = vmatpush1.bf16.msra.mxu0 0
      %373 = vmatprep.subr.bf16.mxu0 0
      %374 = vmatpush1.bf16.msra.mxu0 0
      %375 = vmatprep.subr.bf16.mxu0 0
      %376 = vmatpush1.bf16.msra.mxu0 0
      %377 = vmatprep.subr.bf16.mxu0 %v357
      %378 = vmatpush1.bf16.msra.mxu0 %v356
      %379 = vmatprep.subr.bf16.mxu0 %v355
      %380 = vmatpush1.bf16.msra.mxu0 %v354
      %381 = vmatprep.subr.bf16.mxu0 %v353
      %382 = vmatpush1.bf16.msra.mxu0 %v352
      %383 = vmatprep.subr.bf16.mxu0 0
      %384 = vmatpush2.bf16.msra.mxu0 0
      %385 = vmatprep.subr.bf16.mxu0 0
      %386 = vmatpush2.bf16.msra.mxu0 0
      %387 = vmatprep.subr.bf16.mxu0 0
      %388 = vmatpush2.bf16.msra.mxu0 0
      %389 = vmatprep.subr.bf16.mxu0 0
      %390 = vmatpush2.bf16.msra.mxu0 0
      %391 = vmatprep.subr.bf16.mxu0 0
      %392 = vmatpush2.bf16.msra.mxu0 0
      %393 = vmatprep.subr.bf16.mxu0 0
      %394 = vmatpush2.bf16.msra.mxu0 0
      %395 = vmatprep.subr.bf16.mxu0 0
      %396 = vmatpush2.bf16.msra.mxu0 0
      %397 = vmatprep.subr.bf16.mxu0 0
      %398 = vmatpush2.bf16.msra.mxu0 0
      %399 = vmatprep.mubr.bf16.mxu0 0
      %400 = vmatmul.mubr.bf16.gmra.mxu0 %v365
      %v401 = vpop.f32.mrf.mxu0
      %v402 = vadd.f32 %v323, %v401
      %v403 = vpop.f32.mrf.mxu0
      %v404 = vadd.f32 %v325, %v403
      %v405 = vpop.f32.mrf.mxu0
      %v406 = vadd.f32 %v327, %v405
      %v407 = vpop.f32.mrf.mxu0
      %v408 = vadd.f32 %v329, %v407
      %409 = vdwg.mxu0
      %v410 = vld [vmem:[%s219] sm:$0xe]
      %s411 = scalar_lea.vmem %s1, 96
      %v412 = vld [vmem:[%s411] sm:$0xff]
      %v413 = vld [vmem:[%s411 + $0x8] sm:$0xff]
      %v414 = vld [vmem:[%s411 + $0x10] sm:$0xff]
      %v415 = vld [vmem:[%s411 + $0x18] sm:$0xff]
      %v416 = vld [vmem:[%s411 + $0x20] sm:$0xff]
      %v417 = vld [vmem:[%s411 + $0x28] sm:$0xff]
      %v419 = vunpack.c.l.b16 %v410
      %v420 = vpack.c.b16 %v245, %v419
      %v421 = vrot.slane %v420, 1
      %v428 = vunpack.c.l.b16 %v412
      %v429 = vunpack.c.h.b16 %v412
      %v430 = vunpack.c.l.b16 %v413
      %v431 = vunpack.c.h.b16 %v413
      %v432 = vunpack.c.l.b16 %v414
      %v433 = vunpack.c.h.b16 %v414
      %v434 = vunpack.c.l.b16 %v415
      %v435 = vunpack.c.h.b16 %v415
      %v436 = vunpack.c.l.b16 %v416
      %v437 = vunpack.c.h.b16 %v416
      %v438 = vunpack.c.l.b16 %v417
      %v439 = vunpack.c.h.b16 %v417
      %v440 = vpack.c.b16 %v430, %v428
      %v441 = vpack.c.b16 %v431, %v429
      %v442 = vpack.c.b16 %v434, %v432
      %v443 = vpack.c.b16 %v435, %v433
      %v444 = vpack.c.b16 %v438, %v436
      %v445 = vpack.c.b16 %v439, %v437
      %v453 = vsel %vm284, %v421, 0
      %455 = vmatprep.subr.bf16.mxu0 0
      %456 = vmatpush1.bf16.msra.mxu0 0
      %457 = vmatprep.subr.bf16.mxu0 0
      %458 = vmatpush1.bf16.msra.mxu0 0
      %459 = vmatprep.subr.bf16.mxu0 0
      %460 = vmatpush1.bf16.msra.mxu0 0
      %461 = vmatprep.subr.bf16.mxu0 0
      %462 = vmatpush1.bf16.msra.mxu0 0
      %463 = vmatprep.subr.bf16.mxu0 0
      %464 = vmatpush1.bf16.msra.mxu0 0
      %465 = vmatprep.subr.bf16.mxu0 %v445
      %466 = vmatpush1.bf16.msra.mxu0 %v444
      %467 = vmatprep.subr.bf16.mxu0 %v443
      %468 = vmatpush1.bf16.msra.mxu0 %v442
      %469 = vmatprep.subr.bf16.mxu0 %v441
      %470 = vmatpush1.bf16.msra.mxu0 %v440
      %471 = vmatprep.subr.bf16.mxu0 0
      %472 = vmatpush2.bf16.msra.mxu0 0
      %473 = vmatprep.subr.bf16.mxu0 0
      %474 = vmatpush2.bf16.msra.mxu0 0
      %475 = vmatprep.subr.bf16.mxu0 0
      %476 = vmatpush2.bf16.msra.mxu0 0
      %477 = vmatprep.subr.bf16.mxu0 0
      %478 = vmatpush2.bf16.msra.mxu0 0
      %479 = vmatprep.subr.bf16.mxu0 0
      %480 = vmatpush2.bf16.msra.mxu0 0
      %481 = vmatprep.subr.bf16.mxu0 0
      %482 = vmatpush2.bf16.msra.mxu0 0
      %483 = vmatprep.subr.bf16.mxu0 0
      %484 = vmatpush2.bf16.msra.mxu0 0
      %485 = vmatprep.subr.bf16.mxu0 0
      %486 = vmatpush2.bf16.msra.mxu0 0
      %487 = vmatprep.mubr.bf16.mxu0 0
      %488 = vmatmul.mubr.bf16.gmra.mxu0 %v453
      %v489 = vpop.f32.mrf.mxu0
      %v490 = vadd.f32 0.0, %v489
      %v491 = vpop.f32.mrf.mxu0
      %v492 = vadd.f32 0.0, %v491
      %v493 = vpop.f32.mrf.mxu0
      %v494 = vadd.f32 0.0, %v493
      %v495 = vpop.f32.mrf.mxu0
      %v496 = vadd.f32 0.0, %v495
      %497 = vdwg.mxu0
      %v498 = vadd.f32 %v402, %v490
      %v499 = vadd.f32 %v404, %v492
      %v500 = vadd.f32 %v406, %v494
      %v501 = vadd.f32 %v408, %v496
      %v502 = vld [vmem:[%s2] sm:$0x3]
      %v504 = vlaneseq
      %v505 = vshrl.u32 %v504, 7
      %v506 = vsub.s32 0, %v505
      %v507 = vrot.slane %v502, %v506
      %v508 = vlaneseq
      %v509 = vshrl.u32 %v508, 7
      %v510 = vsub.s32 1, %v509
      %v511 = vrot.slane %v502, %v510
      %v514 = vadd.f32 %v498, %v507
      %v515 = vadd.f32 %v499, %v511
      %v516 = vadd.f32 %v500, %v507
      %v517 = vadd.f32 %v501, %v511
      %v518 = vpack.c.bf16 %v516, %v514
      %v519 = vpack.c.bf16 %v517, %v515
      %v522 = vunpack.c.l.b16 %v518
      %v523 = vunpack.c.l.b16 %v519
      %v524 = vunpack.c.h.b16 %v518
      %v525 = vunpack.c.h.b16 %v519
      %v526 = vpack.c.b16 %v523, %v522
      %v527 = vpack.c.b16 %v525, %v524
      %vm530 = vcmask 1043456
      %vm531 = vcmask 785412
      %vm532 = vmor %vm531, %vm530
      %533 = vst.msk [vmem:[#allocation2] sm:$0xff] %vm532, %v526
      %vm534 = vcmask 1042432
      %vm535 = vcmask 784388
      %vm536 = vmor %vm535, %vm534
      %537 = vst.msk [vmem:[#allocation2 + $0x8] sm:$0x77] %vm536, %v527
      %v538 = vld [vmem:[#allocation2] sm:$0xf]
      %v539 = vld [vmem:[#allocation2 + $0x8] sm:$0x3]
      %v540 = vld [vmem:[%s3] sm:$0xf]
      %v541 = vld [vmem:[%s3 + $0x4] sm:$0xf]
      %v542 = vld [vmem:[%s3 + $0x8] sm:$0xf]
      %v543 = vld [vmem:[%s3 + $0xc] sm:$0xf]
      %v544 = vld [vmem:[%s3 + $0x10] sm:$0xf]
      %v545 = vld [vmem:[%s3 + $0x14] sm:$0xf]
      %v546 = vld [vmem:[#allocation2 + $0x8] sm:$0x7]
      %s547 = scalar_lea.vmem %s3, 24
      %v548 = vld [vmem:[%s547] sm:$0xf]
      %v549 = vld [vmem:[%s547 + $0x4] sm:$0xf]
      %v550 = vld [vmem:[%s547 + $0x8] sm:$0xf]
      %v551 = vld [vmem:[%s547 + $0xc] sm:$0xf]
      %v552 = vld [vmem:[%s547 + $0x10] sm:$0xf]
      %v553 = vld [vmem:[%s547 + $0x14] sm:$0xf]
      %v556 = vunpack.c.l.b16 %v538
      %v557 = vunpack.c.l.b16 %v546
      %v558 = vpack.c.b16 %v557, %v556
      %v560 = vshrl.u32 %v558, 16
      %v562 = vshll.u32 %v558, 16
      %v564 = vrot.slane %v562, 1
      %v565 = vor.u32 %v560, %v564
      %v572 = vunpack.c.l.b16 %v548
      %v573 = vunpack.c.l.b16 %v549
      %v574 = vunpack.c.l.b16 %v550
      %v575 = vunpack.c.l.b16 %v551
      %v576 = vunpack.c.l.b16 %v552
      %v577 = vunpack.c.l.b16 %v553
      %v578 = vpack.c.b16 %v573, %v572
      %v579 = vpack.c.b16 %v575, %v574
      %v580 = vpack.c.b16 %v577, %v576
      %v585 = vsel %vm284, %v565, 0
      %587 = vmatprep.subr.bf16.mxu0 0
      %588 = vmatpush1.bf16.msra.mxu0 0
      %589 = vmatprep.subr.bf16.mxu0 0
      %590 = vmatpush1.bf16.msra.mxu0 0
      %591 = vmatprep.subr.bf16.mxu0 0
      %592 = vmatpush1.bf16.msra.mxu0 0
      %593 = vmatprep.subr.bf16.mxu0 0
      %594 = vmatpush1.bf16.msra.mxu0 0
      %595 = vmatprep.subr.bf16.mxu0 0
      %596 = vmatpush1.bf16.msra.mxu0 0
      %597 = vmatprep.subr.bf16.mxu0 0
      %598 = vmatpush1.bf16.msra.mxu0 %v580
      %599 = vmatprep.subr.bf16.mxu0 0
      %600 = vmatpush1.bf16.msra.mxu0 %v579
      %601 = vmatprep.subr.bf16.mxu0 0
      %602 = vmatpush1.bf16.msra.mxu0 %v578
      %603 = vmatprep.subr.bf16.mxu0 0
      %604 = vmatpush2.bf16.msra.mxu0 0
      %605 = vmatprep.subr.bf16.mxu0 0
      %606 = vmatpush2.bf16.msra.mxu0 0
      %607 = vmatprep.subr.bf16.mxu0 0
      %608 = vmatpush2.bf16.msra.mxu0 0
      %609 = vmatprep.subr.bf16.mxu0 0
      %610 = vmatpush2.bf16.msra.mxu0 0
      %611 = vmatprep.subr.bf16.mxu0 0
      %612 = vmatpush2.bf16.msra.mxu0 0
      %613 = vmatprep.subr.bf16.mxu0 0
      %614 = vmatpush2.bf16.msra.mxu0 0
      %615 = vmatprep.subr.bf16.mxu0 0
      %616 = vmatpush2.bf16.msra.mxu0 0
      %617 = vmatprep.subr.bf16.mxu0 0
      %618 = vmatpush2.bf16.msra.mxu0 0
      %619 = vmatprep.mubr.bf16.mxu0 0
      %620 = vmatmul.mubr.bf16.gmra.mxu0 %v585
      %v621 = vpop.f32.mrf.mxu0
      %v622 = vadd.f32 0.0, %v621
      %v623 = vpop.f32.mrf.mxu0
      %v624 = vpop.f32.mrf.mxu0
      %v625 = vadd.f32 0.0, %v624
      %v626 = vpop.f32.mrf.mxu0
      %627 = vdwg.mxu0
      %v629 = vunpack.c.l.b16 %v539
      %v630 = vpack.c.b16 %v629, %v556
      %v637 = vunpack.c.l.b16 %v540
      %v638 = vunpack.c.l.b16 %v541
      %v639 = vunpack.c.l.b16 %v542
      %v640 = vunpack.c.l.b16 %v543
      %v641 = vunpack.c.l.b16 %v544
      %v642 = vunpack.c.l.b16 %v545
      %v643 = vpack.c.b16 %v638, %v637
      %v644 = vpack.c.b16 %v640, %v639
      %v645 = vpack.c.b16 %v642, %v641
      %v650 = vsel %vm284, %v630, 0
      %652 = vmatprep.subr.bf16.mxu0 0
      %653 = vmatpush1.bf16.msra.mxu0 0
      %654 = vmatprep.subr.bf16.mxu0 0
      %655 = vmatpush1.bf16.msra.mxu0 0
      %656 = vmatprep.subr.bf16.mxu0 0
      %657 = vmatpush1.bf16.msra.mxu0 0
      %658 = vmatprep.subr.bf16.mxu0 0
      %659 = vmatpush1.bf16.msra.mxu0 0
      %660 = vmatprep.subr.bf16.mxu0 0
      %661 = vmatpush1.bf16.msra.mxu0 0
      %662 = vmatprep.subr.bf16.mxu0 0
      %663 = vmatpush1.bf16.msra.mxu0 %v645
      %664 = vmatprep.subr.bf16.mxu0 0
      %665 = vmatpush1.bf16.msra.mxu0 %v644
      %666 = vmatprep.subr.bf16.mxu0 0
      %667 = vmatpush1.bf16.msra.mxu0 %v643
      %668 = vmatprep.subr.bf16.mxu0 0
      %669 = vmatpush2.bf16.msra.mxu0 0
      %670 = vmatprep.subr.bf16.mxu0 0
      %671 = vmatpush2.bf16.msra.mxu0 0
      %672 = vmatprep.subr.bf16.mxu0 0
      %673 = vmatpush2.bf16.msra.mxu0 0
      %674 = vmatprep.subr.bf16.mxu0 0
      %675 = vmatpush2.bf16.msra.mxu0 0
      %676 = vmatprep.subr.bf16.mxu0 0
      %677 = vmatpush2.bf16.msra.mxu0 0
      %678 = vmatprep.subr.bf16.mxu0 0
      %679 = vmatpush2.bf16.msra.mxu0 0
      %680 = vmatprep.subr.bf16.mxu0 0
      %681 = vmatpush2.bf16.msra.mxu0 0
      %682 = vmatprep.subr.bf16.mxu0 0
      %683 = vmatpush2.bf16.msra.mxu0 0
      %684 = vmatprep.mubr.bf16.mxu0 0
      %685 = vmatmul.mubr.bf16.gmra.mxu0 %v650
      %v686 = vpop.f32.mrf.mxu0
      %v687 = vadd.f32 %v622, %v686
      %v688 = vpop.f32.mrf.mxu0
      %v689 = vpop.f32.mrf.mxu0
      %v690 = vadd.f32 %v625, %v689
      %v691 = vpop.f32.mrf.mxu0
      %692 = vdwg.mxu0
      %v693 = vld [vmem:[#allocation2] sm:$0xe]
      %s694 = scalar_lea.vmem %s3, 48
      %v695 = vld [vmem:[%s694] sm:$0xf]
      %v696 = vld [vmem:[%s694 + $0x4] sm:$0xf]
      %v697 = vld [vmem:[%s694 + $0x8] sm:$0xf]
      %v698 = vld [vmem:[%s694 + $0xc] sm:$0xf]
      %v699 = vld [vmem:[%s694 + $0x10] sm:$0xf]
      %v700 = vld [vmem:[%s694 + $0x14] sm:$0xf]
      %v702 = vunpack.c.l.b16 %v693
      %v703 = vpack.c.b16 %v557, %v702
      %v704 = vrot.slane %v703, 1
      %v711 = vunpack.c.l.b16 %v695
      %v712 = vunpack.c.l.b16 %v696
      %v713 = vunpack.c.l.b16 %v697
      %v714 = vunpack.c.l.b16 %v698
      %v715 = vunpack.c.l.b16 %v699
      %v716 = vunpack.c.l.b16 %v700
      %v717 = vpack.c.b16 %v712, %v711
      %v718 = vpack.c.b16 %v714, %v713
      %v719 = vpack.c.b16 %v716, %v715
      %v724 = vsel %vm284, %v704, 0
      %726 = vmatprep.subr.bf16.mxu0 0
      %727 = vmatpush1.bf16.msra.mxu0 0
      %728 = vmatprep.subr.bf16.mxu0 0
      %729 = vmatpush1.bf16.msra.mxu0 0
      %730 = vmatprep.subr.bf16.mxu0 0
      %731 = vmatpush1.bf16.msra.mxu0 0
      %732 = vmatprep.subr.bf16.mxu0 0
      %733 = vmatpush1.bf16.msra.mxu0 0
      %734 = vmatprep.subr.bf16.mxu0 0
      %735 = vmatpush1.bf16.msra.mxu0 0
      %736 = vmatprep.subr.bf16.mxu0 0
      %737 = vmatpush1.bf16.msra.mxu0 %v719
      %738 = vmatprep.subr.bf16.mxu0 0
      %739 = vmatpush1.bf16.msra.mxu0 %v718
      %740 = vmatprep.subr.bf16.mxu0 0
      %741 = vmatpush1.bf16.msra.mxu0 %v717
      %742 = vmatprep.subr.bf16.mxu0 0
      %743 = vmatpush2.bf16.msra.mxu0 0
      %744 = vmatprep.subr.bf16.mxu0 0
      %745 = vmatpush2.bf16.msra.mxu0 0
      %746 = vmatprep.subr.bf16.mxu0 0
      %747 = vmatpush2.bf16.msra.mxu0 0
      %748 = vmatprep.subr.bf16.mxu0 0
      %749 = vmatpush2.bf16.msra.mxu0 0
      %750 = vmatprep.subr.bf16.mxu0 0
      %751 = vmatpush2.bf16.msra.mxu0 0
      %752 = vmatprep.subr.bf16.mxu0 0
      %753 = vmatpush2.bf16.msra.mxu0 0
      %754 = vmatprep.subr.bf16.mxu0 0
      %755 = vmatpush2.bf16.msra.mxu0 0
      %756 = vmatprep.subr.bf16.mxu0 0
      %757 = vmatpush2.bf16.msra.mxu0 0
      %758 = vmatprep.mubr.bf16.mxu0 0
      %759 = vmatmul.mubr.bf16.gmra.mxu0 %v724
      %v760 = vpop.f32.mrf.mxu0
      %v761 = vadd.f32 0.0, %v760
      %v762 = vpop.f32.mrf.mxu0
      %v763 = vpop.f32.mrf.mxu0
      %v764 = vadd.f32 0.0, %v763
      %v765 = vpop.f32.mrf.mxu0
      %766 = vdwg.mxu0
      %v767 = vadd.f32 %v687, %v761
      %v768 = vadd.f32 %v690, %v764
      %v769 = vld [vmem:[%s4] sm:$0x1]
      %v771 = vlaneseq
      %v772 = vshrl.u32 %v771, 7
      %v773 = vsub.s32 0, %v772
      %v774 = vrot.slane %v769, %v773
      %v776 = vadd.f32 %v767, %v774
      %v777 = vadd.f32 %v768, %v774
      %778 = vst [vmem:[%s224] sm:$0xff] %v776
      %779 = vst [vmem:[%s224 + $0x60] sm:$0xf] %v777
      %v780 = vld [vmem:[#allocation2] sm:$0xf]
      %v781 = vld [vmem:[#allocation2 + $0x8] sm:$0x3]
      %v782 = vld [vmem:[%s3] sm:$0xf]
      %v783 = vld [vmem:[%s3 + $0x4] sm:$0xf]
      %v784 = vld [vmem:[%s3 + $0x8] sm:$0xf]
      %v785 = vld [vmem:[%s3 + $0xc] sm:$0xf]
      %v786 = vld [vmem:[%s3 + $0x10] sm:$0xf]
      %v787 = vld [vmem:[%s3 + $0x14] sm:$0xf]
      %v788 = vld [vmem:[#allocation2 + $0x8] sm:$0x7]
      %v789 = vld [vmem:[%s547] sm:$0xf]
      %v790 = vld [vmem:[%s547 + $0x4] sm:$0xf]
      %v791 = vld [vmem:[%s547 + $0x8] sm:$0xf]
      %v792 = vld [vmem:[%s547 + $0xc] sm:$0xf]
      %v793 = vld [vmem:[%s547 + $0x10] sm:$0xf]
      %v794 = vld [vmem:[%s547 + $0x14] sm:$0xf]
      %v797 = vunpack.c.l.b16 %v780
      %v798 = vunpack.c.l.b16 %v788
      %v799 = vpack.c.b16 %v798, %v797
      %v801 = vshrl.u32 %v799, 16
      %v803 = vshll.u32 %v799, 16
      %v805 = vrot.slane %v803, 1
      %v806 = vor.u32 %v801, %v805
      %807 = vrot.lane.b32.xlu0 %v806, 112
      %v808 = vpop.permute.xlu0 %807
      %v815 = vunpack.c.l.b16 %v789
      %v816 = vunpack.c.l.b16 %v790
      %v817 = vunpack.c.l.b16 %v791
      %v818 = vunpack.c.l.b16 %v792
      %v819 = vunpack.c.l.b16 %v793
      %v820 = vunpack.c.l.b16 %v794
      %v821 = vpack.c.b16 %v816, %v815
      %v822 = vpack.c.b16 %v818, %v817
      %v823 = vpack.c.b16 %v820, %v819
      %v828 = vsel %vm284, %v808, 0
      %830 = vmatprep.subr.bf16.mxu0 0
      %831 = vmatpush1.bf16.msra.mxu0 0
      %832 = vmatprep.subr.bf16.mxu0 0
      %833 = vmatpush1.bf16.msra.mxu0 0
      %834 = vmatprep.subr.bf16.mxu0 0
      %835 = vmatpush1.bf16.msra.mxu0 0
      %836 = vmatprep.subr.bf16.mxu0 0
      %837 = vmatpush1.bf16.msra.mxu0 0
      %838 = vmatprep.subr.bf16.mxu0 0
      %839 = vmatpush1.bf16.msra.mxu0 0
      %840 = vmatprep.subr.bf16.mxu0 0
      %841 = vmatpush1.bf16.msra.mxu0 %v823
      %842 = vmatprep.subr.bf16.mxu0 0
      %843 = vmatpush1.bf16.msra.mxu0 %v822
      %844 = vmatprep.subr.bf16.mxu0 0
      %845 = vmatpush1.bf16.msra.mxu0 %v821
      %846 = vmatprep.subr.bf16.mxu0 0
      %847 = vmatpush2.bf16.msra.mxu0 0
      %848 = vmatprep.subr.bf16.mxu0 0
      %849 = vmatpush2.bf16.msra.mxu0 0
      %850 = vmatprep.subr.bf16.mxu0 0
      %851 = vmatpush2.bf16.msra.mxu0 0
      %852 = vmatprep.subr.bf16.mxu0 0
      %853 = vmatpush2.bf16.msra.mxu0 0
      %854 = vmatprep.subr.bf16.mxu0 0
      %855 = vmatpush2.bf16.msra.mxu0 0
      %856 = vmatprep.subr.bf16.mxu0 0
      %857 = vmatpush2.bf16.msra.mxu0 0
      %858 = vmatprep.subr.bf16.mxu0 0
      %859 = vmatpush2.bf16.msra.mxu0 0
      %860 = vmatprep.subr.bf16.mxu0 0
      %861 = vmatpush2.bf16.msra.mxu0 0
      %862 = vmatprep.mubr.bf16.mxu0 0
      %863 = vmatmul.mubr.bf16.gmra.mxu0 %v828
      %v864 = vpop.f32.mrf.mxu0
      %v865 = vadd.f32 0.0, %v864
      %v866 = vpop.f32.mrf.mxu0
      %v867 = vpop.f32.mrf.mxu0
      %v868 = vadd.f32 0.0, %v867
      %v869 = vpop.f32.mrf.mxu0
      %870 = vdwg.mxu0
      %v872 = vunpack.c.l.b16 %v781
      %v873 = vpack.c.b16 %v872, %v797
      %874 = vrot.lane.b32.xlu0 %v873, 112
      %v875 = vpop.permute.xlu0 %874
      %v882 = vunpack.c.l.b16 %v782
      %v883 = vunpack.c.l.b16 %v783
      %v884 = vunpack.c.l.b16 %v784
      %v885 = vunpack.c.l.b16 %v785
      %v886 = vunpack.c.l.b16 %v786
      %v887 = vunpack.c.l.b16 %v787
      %v888 = vpack.c.b16 %v883, %v882
      %v889 = vpack.c.b16 %v885, %v884
      %v890 = vpack.c.b16 %v887, %v886
      %v895 = vsel %vm284, %v875, 0
      %897 = vmatprep.subr.bf16.mxu0 0
      %898 = vmatpush1.bf16.msra.mxu0 0
      %899 = vmatprep.subr.bf16.mxu0 0
      %900 = vmatpush1.bf16.msra.mxu0 0
      %901 = vmatprep.subr.bf16.mxu0 0
      %902 = vmatpush1.bf16.msra.mxu0 0
      %903 = vmatprep.subr.bf16.mxu0 0
      %904 = vmatpush1.bf16.msra.mxu0 0
      %905 = vmatprep.subr.bf16.mxu0 0
      %906 = vmatpush1.bf16.msra.mxu0 0
      %907 = vmatprep.subr.bf16.mxu0 0
      %908 = vmatpush1.bf16.msra.mxu0 %v890
      %909 = vmatprep.subr.bf16.mxu0 0
      %910 = vmatpush1.bf16.msra.mxu0 %v889
      %911 = vmatprep.subr.bf16.mxu0 0
      %912 = vmatpush1.bf16.msra.mxu0 %v888
      %913 = vmatprep.subr.bf16.mxu0 0
      %914 = vmatpush2.bf16.msra.mxu0 0
      %915 = vmatprep.subr.bf16.mxu0 0
      %916 = vmatpush2.bf16.msra.mxu0 0
      %917 = vmatprep.subr.bf16.mxu0 0
      %918 = vmatpush2.bf16.msra.mxu0 0
      %919 = vmatprep.subr.bf16.mxu0 0
      %920 = vmatpush2.bf16.msra.mxu0 0
      %921 = vmatprep.subr.bf16.mxu0 0
      %922 = vmatpush2.bf16.msra.mxu0 0
      %923 = vmatprep.subr.bf16.mxu0 0
      %924 = vmatpush2.bf16.msra.mxu0 0
      %925 = vmatprep.subr.bf16.mxu0 0
      %926 = vmatpush2.bf16.msra.mxu0 0
      %927 = vmatprep.subr.bf16.mxu0 0
      %928 = vmatpush2.bf16.msra.mxu0 0
      %929 = vmatprep.mubr.bf16.mxu0 0
      %930 = vmatmul.mubr.bf16.gmra.mxu0 %v895
      %v931 = vpop.f32.mrf.mxu0
      %v932 = vadd.f32 %v865, %v931
      %v933 = vpop.f32.mrf.mxu0
      %v934 = vpop.f32.mrf.mxu0
      %v935 = vadd.f32 %v868, %v934
      %v936 = vpop.f32.mrf.mxu0
      %937 = vdwg.mxu0
      %v938 = vld [vmem:[#allocation2] sm:$0xe]
      %v939 = vld [vmem:[%s694] sm:$0xf]
      %v940 = vld [vmem:[%s694 + $0x4] sm:$0xf]
      %v941 = vld [vmem:[%s694 + $0x8] sm:$0xf]
      %v942 = vld [vmem:[%s694 + $0xc] sm:$0xf]
      %v943 = vld [vmem:[%s694 + $0x10] sm:$0xf]
      %v944 = vld [vmem:[%s694 + $0x14] sm:$0xf]
      %v946 = vunpack.c.l.b16 %v938
      %v947 = vpack.c.b16 %v798, %v946
      %v948 = vrot.slane %v947, 1
      %949 = vrot.lane.b32.xlu0 %v948, 112
      %v950 = vpop.permute.xlu0 %949
      %v957 = vunpack.c.l.b16 %v939
      %v958 = vunpack.c.l.b16 %v940
      %v959 = vunpack.c.l.b16 %v941
      %v960 = vunpack.c.l.b16 %v942
      %v961 = vunpack.c.l.b16 %v943
      %v962 = vunpack.c.l.b16 %v944
      %v963 = vpack.c.b16 %v958, %v957
      %v964 = vpack.c.b16 %v960, %v959
      %v965 = vpack.c.b16 %v962, %v961
      %v970 = vsel %vm284, %v950, 0
      %972 = vmatprep.subr.bf16.mxu0 0
      %973 = vmatpush1.bf16.msra.mxu0 0
      %974 = vmatprep.subr.bf16.mxu0 0
      %975 = vmatpush1.bf16.msra.mxu0 0
      %976 = vmatprep.subr.bf16.mxu0 0
      %977 = vmatpush1.bf16.msra.mxu0 0
      %978 = vmatprep.subr.bf16.mxu0 0
      %979 = vmatpush1.bf16.msra.mxu0 0
      %980 = vmatprep.subr.bf16.mxu0 0
      %981 = vmatpush1.bf16.msra.mxu0 0
      %982 = vmatprep.subr.bf16.mxu0 0
      %983 = vmatpush1.bf16.msra.mxu0 %v965
      %984 = vmatprep.subr.bf16.mxu0 0
      %985 = vmatpush1.bf16.msra.mxu0 %v964
      %986 = vmatprep.subr.bf16.mxu0 0
      %987 = vmatpush1.bf16.msra.mxu0 %v963
      %988 = vmatprep.subr.bf16.mxu0 0
      %989 = vmatpush2.bf16.msra.mxu0 0
      %990 = vmatprep.subr.bf16.mxu0 0
      %991 = vmatpush2.bf16.msra.mxu0 0
      %992 = vmatprep.subr.bf16.mxu0 0
      %993 = vmatpush2.bf16.msra.mxu0 0
      %994 = vmatprep.subr.bf16.mxu0 0
      %995 = vmatpush2.bf16.msra.mxu0 0
      %996 = vmatprep.subr.bf16.mxu0 0
      %997 = vmatpush2.bf16.msra.mxu0 0
      %998 = vmatprep.subr.bf16.mxu0 0
      %999 = vmatpush2.bf16.msra.mxu0 0
      %1000 = vmatprep.subr.bf16.mxu0 0
      %1001 = vmatpush2.bf16.msra.mxu0 0
      %1002 = vmatprep.subr.bf16.mxu0 0
      %1003 = vmatpush2.bf16.msra.mxu0 0
      %1004 = vmatprep.mubr.bf16.mxu0 0
      %1005 = vmatmul.mubr.bf16.gmra.mxu0 %v970
      %v1006 = vpop.f32.mrf.mxu0
      %v1007 = vadd.f32 0.0, %v1006
      %v1008 = vpop.f32.mrf.mxu0
      %v1009 = vpop.f32.mrf.mxu0
      %v1010 = vadd.f32 0.0, %v1009
      %v1011 = vpop.f32.mrf.mxu0
      %1012 = vdwg.mxu0
      %v1013 = vadd.f32 %v932, %v1007
      %v1014 = vadd.f32 %v935, %v1010
      %v1015 = vld [vmem:[%s4] sm:$0x1]
      %v1017 = vlaneseq
      %v1018 = vshrl.u32 %v1017, 7
      %v1019 = vsub.s32 0, %v1018
      %v1020 = vrot.slane %v1015, %v1019
      %v1022 = vadd.f32 %v1013, %v1020
      %v1023 = vadd.f32 %v1014, %v1020
      %1024 = vst [vmem:[%s224 + $0x8] sm:$0xff] %v1022
      %1025 = vst [vmem:[%s224 + $0x68] sm:$0xf] %v1023
      %v1026 = vld [vmem:[#allocation2] sm:$0xf]
      %v1027 = vld [vmem:[#allocation2 + $0x8] sm:$0x3]
      %v1028 = vld [vmem:[%s3] sm:$0xf]
      %v1029 = vld [vmem:[%s3 + $0x4] sm:$0xf]
      %v1030 = vld [vmem:[%s3 + $0x8] sm:$0xf]
      %v1031 = vld [vmem:[%s3 + $0xc] sm:$0xf]
      %v1032 = vld [vmem:[%s3 + $0x10] sm:$0xf]
      %v1033 = vld [vmem:[%s3 + $0x14] sm:$0xf]
      %v1034 = vld [vmem:[#allocation2 + $0x8] sm:$0x7]
      %v1035 = vld [vmem:[%s547] sm:$0xf]
      %v1036 = vld [vmem:[%s547 + $0x4] sm:$0xf]
      %v1037 = vld [vmem:[%s547 + $0x8] sm:$0xf]
      %v1038 = vld [vmem:[%s547 + $0xc] sm:$0xf]
      %v1039 = vld [vmem:[%s547 + $0x10] sm:$0xf]
      %v1040 = vld [vmem:[%s547 + $0x14] sm:$0xf]
      %v1043 = vunpack.c.l.b16 %v1026
      %v1044 = vunpack.c.l.b16 %v1034
      %v1045 = vpack.c.b16 %v1044, %v1043
      %v1047 = vshrl.u32 %v1045, 16
      %v1049 = vshll.u32 %v1045, 16
      %v1051 = vrot.slane %v1049, 1
      %v1052 = vor.u32 %v1047, %v1051
      %1053 = vrot.lane.b32.xlu0 %v1052, 96
      %v1054 = vpop.permute.xlu0 %1053
      %v1061 = vunpack.c.l.b16 %v1035
      %v1062 = vunpack.c.l.b16 %v1036
      %v1063 = vunpack.c.l.b16 %v1037
      %v1064 = vunpack.c.l.b16 %v1038
      %v1065 = vunpack.c.l.b16 %v1039
      %v1066 = vunpack.c.l.b16 %v1040
      %v1067 = vpack.c.b16 %v1062, %v1061
      %v1068 = vpack.c.b16 %v1064, %v1063
      %v1069 = vpack.c.b16 %v1066, %v1065
      %v1074 = vsel %vm284, %v1054, 0
      %1076 = vmatprep.subr.bf16.mxu0 0
      %1077 = vmatpush1.bf16.msra.mxu0 0
      %1078 = vmatprep.subr.bf16.mxu0 0
      %1079 = vmatpush1.bf16.msra.mxu0 0
      %1080 = vmatprep.subr.bf16.mxu0 0
      %1081 = vmatpush1.bf16.msra.mxu0 0
      %1082 = vmatprep.subr.bf16.mxu0 0
      %1083 = vmatpush1.bf16.msra.mxu0 0
      %1084 = vmatprep.subr.bf16.mxu0 0
      %1085 = vmatpush1.bf16.msra.mxu0 0
      %1086 = vmatprep.subr.bf16.mxu0 0
      %1087 = vmatpush1.bf16.msra.mxu0 %v1069
      %1088 = vmatprep.subr.bf16.mxu0 0
      %1089 = vmatpush1.bf16.msra.mxu0 %v1068
      %1090 = vmatprep.subr.bf16.mxu0 0
      %1091 = vmatpush1.bf16.msra.mxu0 %v1067
      %1092 = vmatprep.subr.bf16.mxu0 0
      %1093 = vmatpush2.bf16.msra.mxu0 0
      %1094 = vmatprep.subr.bf16.mxu0 0
      %1095 = vmatpush2.bf16.msra.mxu0 0
      %1096 = vmatprep.subr.bf16.mxu0 0
      %1097 = vmatpush2.bf16.msra.mxu0 0
      %1098 = vmatprep.subr.bf16.mxu0 0
      %1099 = vmatpush2.bf16.msra.mxu0 0
      %1100 = vmatprep.subr.bf16.mxu0 0
      %1101 = vmatpush2.bf16.msra.mxu0 0
      %1102 = vmatprep.subr.bf16.mxu0 0
      %1103 = vmatpush2.bf16.msra.mxu0 0
      %1104 = vmatprep.subr.bf16.mxu0 0
      %1105 = vmatpush2.bf16.msra.mxu0 0
      %1106 = vmatprep.subr.bf16.mxu0 0
      %1107 = vmatpush2.bf16.msra.mxu0 0
      %1108 = vmatprep.mubr.bf16.mxu0 0
      %1109 = vmatmul.mubr.bf16.gmra.mxu0 %v1074
      %v1110 = vpop.f32.mrf.mxu0
      %v1111 = vadd.f32 0.0, %v1110
      %v1112 = vpop.f32.mrf.mxu0
      %v1113 = vpop.f32.mrf.mxu0
      %v1114 = vadd.f32 0.0, %v1113
      %v1115 = vpop.f32.mrf.mxu0
      %1116 = vdwg.mxu0
      %v1118 = vunpack.c.l.b16 %v1027
      %v1119 = vpack.c.b16 %v1118, %v1043
      %1120 = vrot.lane.b32.xlu0 %v1119, 96
      %v1121 = vpop.permute.xlu0 %1120
      %v1128 = vunpack.c.l.b16 %v1028
      %v1129 = vunpack.c.l.b16 %v1029
      %v1130 = vunpack.c.l.b16 %v1030
      %v1131 = vunpack.c.l.b16 %v1031
      %v1132 = vunpack.c.l.b16 %v1032
      %v1133 = vunpack.c.l.b16 %v1033
      %v1134 = vpack.c.b16 %v1129, %v1128
      %v1135 = vpack.c.b16 %v1131, %v1130
      %v1136 = vpack.c.b16 %v1133, %v1132
      %v1141 = vsel %vm284, %v1121, 0
      %1143 = vmatprep.subr.bf16.mxu0 0
      %1144 = vmatpush1.bf16.msra.mxu0 0
      %1145 = vmatprep.subr.bf16.mxu0 0
      %1146 = vmatpush1.bf16.msra.mxu0 0
      %1147 = vmatprep.subr.bf16.mxu0 0
      %1148 = vmatpush1.bf16.msra.mxu0 0
      %1149 = vmatprep.subr.bf16.mxu0 0
      %1150 = vmatpush1.bf16.msra.mxu0 0
      %1151 = vmatprep.subr.bf16.mxu0 0
      %1152 = vmatpush1.bf16.msra.mxu0 0
      %1153 = vmatprep.subr.bf16.mxu0 0
      %1154 = vmatpush1.bf16.msra.mxu0 %v1136
      %1155 = vmatprep.subr.bf16.mxu0 0
      %1156 = vmatpush1.bf16.msra.mxu0 %v1135
      %1157 = vmatprep.subr.bf16.mxu0 0
      %1158 = vmatpush1.bf16.msra.mxu0 %v1134
      %1159 = vmatprep.subr.bf16.mxu0 0
      %1160 = vmatpush2.bf16.msra.mxu0 0
      %1161 = vmatprep.subr.bf16.mxu0 0
      %1162 = vmatpush2.bf16.msra.mxu0 0
      %1163 = vmatprep.subr.bf16.mxu0 0
      %1164 = vmatpush2.bf16.msra.mxu0 0
      %1165 = vmatprep.subr.bf16.mxu0 0
      %1166 = vmatpush2.bf16.msra.mxu0 0
      %1167 = vmatprep.subr.bf16.mxu0 0
      %1168 = vmatpush2.bf16.msra.mxu0 0
      %1169 = vmatprep.subr.bf16.mxu0 0
      %1170 = vmatpush2.bf16.msra.mxu0 0
      %1171 = vmatprep.subr.bf16.mxu0 0
      %1172 = vmatpush2.bf16.msra.mxu0 0
      %1173 = vmatprep.subr.bf16.mxu0 0
      %1174 = vmatpush2.bf16.msra.mxu0 0
      %1175 = vmatprep.mubr.bf16.mxu0 0
      %1176 = vmatmul.mubr.bf16.gmra.mxu0 %v1141
      %v1177 = vpop.f32.mrf.mxu0
      %v1178 = vadd.f32 %v1111, %v1177
      %v1179 = vpop.f32.mrf.mxu0
      %v1180 = vpop.f32.mrf.mxu0
      %v1181 = vadd.f32 %v1114, %v1180
      %v1182 = vpop.f32.mrf.mxu0
      %1183 = vdwg.mxu0
      %v1184 = vld [vmem:[#allocation2] sm:$0xe]
      %v1185 = vld [vmem:[%s694] sm:$0xf]
      %v1186 = vld [vmem:[%s694 + $0x4] sm:$0xf]
      %v1187 = vld [vmem:[%s694 + $0x8] sm:$0xf]
      %v1188 = vld [vmem:[%s694 + $0xc] sm:$0xf]
      %v1189 = vld [vmem:[%s694 + $0x10] sm:$0xf]
      %v1190 = vld [vmem:[%s694 + $0x14] sm:$0xf]
      %v1192 = vunpack.c.l.b16 %v1184
      %v1193 = vpack.c.b16 %v1044, %v1192
      %v1194 = vrot.slane %v1193, 1
      %1195 = vrot.lane.b32.xlu0 %v1194, 96
      %v1196 = vpop.permute.xlu0 %1195
      %v1203 = vunpack.c.l.b16 %v1185
      %v1204 = vunpack.c.l.b16 %v1186
      %v1205 = vunpack.c.l.b16 %v1187
      %v1206 = vunpack.c.l.b16 %v1188
      %v1207 = vunpack.c.l.b16 %v1189
      %v1208 = vunpack.c.l.b16 %v1190
      %v1209 = vpack.c.b16 %v1204, %v1203
      %v1210 = vpack.c.b16 %v1206, %v1205
      %v1211 = vpack.c.b16 %v1208, %v1207
      %v1216 = vsel %vm284, %v1196, 0
      %1218 = vmatprep.subr.bf16.mxu0 0
      %1219 = vmatpush1.bf16.msra.mxu0 0
      %1220 = vmatprep.subr.bf16.mxu0 0
      %1221 = vmatpush1.bf16.msra.mxu0 0
      %1222 = vmatprep.subr.bf16.mxu0 0
      %1223 = vmatpush1.bf16.msra.mxu0 0
      %1224 = vmatprep.subr.bf16.mxu0 0
      %1225 = vmatpush1.bf16.msra.mxu0 0
      %1226 = vmatprep.subr.bf16.mxu0 0
      %1227 = vmatpush1.bf16.msra.mxu0 0
      %1228 = vmatprep.subr.bf16.mxu0 0
      %1229 = vmatpush1.bf16.msra.mxu0 %v1211
      %1230 = vmatprep.subr.bf16.mxu0 0
      %1231 = vmatpush1.bf16.msra.mxu0 %v1210
      %1232 = vmatprep.subr.bf16.mxu0 0
      %1233 = vmatpush1.bf16.msra.mxu0 %v1209
      %1234 = vmatprep.subr.bf16.mxu0 0
      %1235 = vmatpush2.bf16.msra.mxu0 0
      %1236 = vmatprep.subr.bf16.mxu0 0
      %1237 = vmatpush2.bf16.msra.mxu0 0
      %1238 = vmatprep.subr.bf16.mxu0 0
      %1239 = vmatpush2.bf16.msra.mxu0 0
      %1240 = vmatprep.subr.bf16.mxu0 0
      %1241 = vmatpush2.bf16.msra.mxu0 0
      %1242 = vmatprep.subr.bf16.mxu0 0
      %1243 = vmatpush2.bf16.msra.mxu0 0
      %1244 = vmatprep.subr.bf16.mxu0 0
      %1245 = vmatpush2.bf16.msra.mxu0 0
      %1246 = vmatprep.subr.bf16.mxu0 0
      %1247 = vmatpush2.bf16.msra.mxu0 0
      %1248 = vmatprep.subr.bf16.mxu0 0
      %1249 = vmatpush2.bf16.msra.mxu0 0
      %1250 = vmatprep.mubr.bf16.mxu0 0
      %1251 = vmatmul.mubr.bf16.gmra.mxu0 %v1216
      %v1252 = vpop.f32.mrf.mxu0
      %v1253 = vadd.f32 0.0, %v1252
      %v1254 = vpop.f32.mrf.mxu0
      %v1255 = vpop.f32.mrf.mxu0
      %v1256 = vadd.f32 0.0, %v1255
      %v1257 = vpop.f32.mrf.mxu0
      %1258 = vdwg.mxu0
      %v1259 = vadd.f32 %v1178, %v1253
      %v1260 = vadd.f32 %v1181, %v1256
      %v1261 = vld [vmem:[%s4] sm:$0x1]
      %v1263 = vlaneseq
      %v1264 = vshrl.u32 %v1263, 7
      %v1265 = vsub.s32 0, %v1264
      %v1266 = vrot.slane %v1261, %v1265
      %v1268 = vadd.f32 %v1259, %v1266
      %v1269 = vadd.f32 %v1260, %v1266
      %1270 = vst [vmem:[%s224 + $0x10] sm:$0xff] %v1268
      %1271 = vst [vmem:[%s224 + $0x70] sm:$0xf] %v1269
      %v1272 = vld [vmem:[#allocation2] sm:$0xf]
      %v1273 = vld [vmem:[#allocation2 + $0x8] sm:$0x3]
      %v1274 = vld [vmem:[%s3] sm:$0xf]
      %v1275 = vld [vmem:[%s3 + $0x4] sm:$0xf]
      %v1276 = vld [vmem:[%s3 + $0x8] sm:$0xf]
      %v1277 = vld [vmem:[%s3 + $0xc] sm:$0xf]
      %v1278 = vld [vmem:[%s3 + $0x10] sm:$0xf]
      %v1279 = vld [vmem:[%s3 + $0x14] sm:$0xf]
      %v1280 = vld [vmem:[#allocation2 + $0x8] sm:$0x7]
      %v1281 = vld [vmem:[%s547] sm:$0xf]
      %v1282 = vld [vmem:[%s547 + $0x4] sm:$0xf]
      %v1283 = vld [vmem:[%s547 + $0x8] sm:$0xf]
      %v1284 = vld [vmem:[%s547 + $0xc] sm:$0xf]
      %v1285 = vld [vmem:[%s547 + $0x10] sm:$0xf]
      %v1286 = vld [vmem:[%s547 + $0x14] sm:$0xf]
      %v1289 = vunpack.c.l.b16 %v1272
      %v1290 = vunpack.c.l.b16 %v1280
      %v1291 = vpack.c.b16 %v1290, %v1289
      %v1293 = vshrl.u32 %v1291, 16
      %v1295 = vshll.u32 %v1291, 16
      %v1297 = vrot.slane %v1295, 1
      %v1298 = vor.u32 %v1293, %v1297
      %1299 = vrot.lane.b32.xlu0 %v1298, 80
      %v1300 = vpop.permute.xlu0 %1299
      %v1307 = vunpack.c.l.b16 %v1281
      %v1308 = vunpack.c.l.b16 %v1282
      %v1309 = vunpack.c.l.b16 %v1283
      %v1310 = vunpack.c.l.b16 %v1284
      %v1311 = vunpack.c.l.b16 %v1285
      %v1312 = vunpack.c.l.b16 %v1286
      %v1313 = vpack.c.b16 %v1308, %v1307
      %v1314 = vpack.c.b16 %v1310, %v1309
      %v1315 = vpack.c.b16 %v1312, %v1311
      %v1320 = vsel %vm284, %v1300, 0
      %1322 = vmatprep.subr.bf16.mxu0 0
      %1323 = vmatpush1.bf16.msra.mxu0 0
      %1324 = vmatprep.subr.bf16.mxu0 0
      %1325 = vmatpush1.bf16.msra.mxu0 0
      %1326 = vmatprep.subr.bf16.mxu0 0
      %1327 = vmatpush1.bf16.msra.mxu0 0
      %1328 = vmatprep.subr.bf16.mxu0 0
      %1329 = vmatpush1.bf16.msra.mxu0 0
      %1330 = vmatprep.subr.bf16.mxu0 0
      %1331 = vmatpush1.bf16.msra.mxu0 0
      %1332 = vmatprep.subr.bf16.mxu0 0
      %1333 = vmatpush1.bf16.msra.mxu0 %v1315
      %1334 = vmatprep.subr.bf16.mxu0 0
      %1335 = vmatpush1.bf16.msra.mxu0 %v1314
      %1336 = vmatprep.subr.bf16.mxu0 0
      %1337 = vmatpush1.bf16.msra.mxu0 %v1313
      %1338 = vmatprep.subr.bf16.mxu0 0
      %1339 = vmatpush2.bf16.msra.mxu0 0
      %1340 = vmatprep.subr.bf16.mxu0 0
      %1341 = vmatpush2.bf16.msra.mxu0 0
      %1342 = vmatprep.subr.bf16.mxu0 0
      %1343 = vmatpush2.bf16.msra.mxu0 0
      %1344 = vmatprep.subr.bf16.mxu0 0
      %1345 = vmatpush2.bf16.msra.mxu0 0
      %1346 = vmatprep.subr.bf16.mxu0 0
      %1347 = vmatpush2.bf16.msra.mxu0 0
      %1348 = vmatprep.subr.bf16.mxu0 0
      %1349 = vmatpush2.bf16.msra.mxu0 0
      %1350 = vmatprep.subr.bf16.mxu0 0
      %1351 = vmatpush2.bf16.msra.mxu0 0
      %1352 = vmatprep.subr.bf16.mxu0 0
      %1353 = vmatpush2.bf16.msra.mxu0 0
      %1354 = vmatprep.mubr.bf16.mxu0 0
      %1355 = vmatmul.mubr.bf16.gmra.mxu0 %v1320
      %v1356 = vpop.f32.mrf.mxu0
      %v1357 = vadd.f32 0.0, %v1356
      %v1358 = vpop.f32.mrf.mxu0
      %v1359 = vpop.f32.mrf.mxu0
      %v1360 = vadd.f32 0.0, %v1359
      %v1361 = vpop.f32.mrf.mxu0
      %1362 = vdwg.mxu0
      %v1364 = vunpack.c.l.b16 %v1273
      %v1365 = vpack.c.b16 %v1364, %v1289
      %1366 = vrot.lane.b32.xlu0 %v1365, 80
      %v1367 = vpop.permute.xlu0 %1366
      %v1374 = vunpack.c.l.b16 %v1274
      %v1375 = vunpack.c.l.b16 %v1275
      %v1376 = vunpack.c.l.b16 %v1276
      %v1377 = vunpack.c.l.b16 %v1277
      %v1378 = vunpack.c.l.b16 %v1278
      %v1379 = vunpack.c.l.b16 %v1279
      %v1380 = vpack.c.b16 %v1375, %v1374
      %v1381 = vpack.c.b16 %v1377, %v1376
      %v1382 = vpack.c.b16 %v1379, %v1378
      %v1387 = vsel %vm284, %v1367, 0
      %1389 = vmatprep.subr.bf16.mxu0 0
      %1390 = vmatpush1.bf16.msra.mxu0 0
      %1391 = vmatprep.subr.bf16.mxu0 0
      %1392 = vmatpush1.bf16.msra.mxu0 0
      %1393 = vmatprep.subr.bf16.mxu0 0
      %1394 = vmatpush1.bf16.msra.mxu0 0
      %1395 = vmatprep.subr.bf16.mxu0 0
      %1396 = vmatpush1.bf16.msra.mxu0 0
      %1397 = vmatprep.subr.bf16.mxu0 0
      %1398 = vmatpush1.bf16.msra.mxu0 0
      %1399 = vmatprep.subr.bf16.mxu0 0
      %1400 = vmatpush1.bf16.msra.mxu0 %v1382
      %1401 = vmatprep.subr.bf16.mxu0 0
      %1402 = vmatpush1.bf16.msra.mxu0 %v1381
      %1403 = vmatprep.subr.bf16.mxu0 0
      %1404 = vmatpush1.bf16.msra.mxu0 %v1380
      %1405 = vmatprep.subr.bf16.mxu0 0
      %1406 = vmatpush2.bf16.msra.mxu0 0
      %1407 = vmatprep.subr.bf16.mxu0 0
      %1408 = vmatpush2.bf16.msra.mxu0 0
      %1409 = vmatprep.subr.bf16.mxu0 0
      %1410 = vmatpush2.bf16.msra.mxu0 0
      %1411 = vmatprep.subr.bf16.mxu0 0
      %1412 = vmatpush2.bf16.msra.mxu0 0
      %1413 = vmatprep.subr.bf16.mxu0 0
      %1414 = vmatpush2.bf16.msra.mxu0 0
      %1415 = vmatprep.subr.bf16.mxu0 0
      %1416 = vmatpush2.bf16.msra.mxu0 0
      %1417 = vmatprep.subr.bf16.mxu0 0
      %1418 = vmatpush2.bf16.msra.mxu0 0
      %1419 = vmatprep.subr.bf16.mxu0 0
      %1420 = vmatpush2.bf16.msra.mxu0 0
      %1421 = vmatprep.mubr.bf16.mxu0 0
      %1422 = vmatmul.mubr.bf16.gmra.mxu0 %v1387
      %v1423 = vpop.f32.mrf.mxu0
      %v1424 = vadd.f32 %v1357, %v1423
      %v1425 = vpop.f32.mrf.mxu0
      %v1426 = vpop.f32.mrf.mxu0
      %v1427 = vadd.f32 %v1360, %v1426
      %v1428 = vpop.f32.mrf.mxu0
      %1429 = vdwg.mxu0
      %v1430 = vld [vmem:[#allocation2] sm:$0xe]
      %v1431 = vld [vmem:[%s694] sm:$0xf]
      %v1432 = vld [vmem:[%s694 + $0x4] sm:$0xf]
      %v1433 = vld [vmem:[%s694 + $0x8] sm:$0xf]
      %v1434 = vld [vmem:[%s694 + $0xc] sm:$0xf]
      %v1435 = vld [vmem:[%s694 + $0x10] sm:$0xf]
      %v1436 = vld [vmem:[%s694 + $0x14] sm:$0xf]
      %v1438 = vunpack.c.l.b16 %v1430
      %v1439 = vpack.c.b16 %v1290, %v1438
      %v1440 = vrot.slane %v1439, 1
      %1441 = vrot.lane.b32.xlu0 %v1440, 80
      %v1442 = vpop.permute.xlu0 %1441
      %v1449 = vunpack.c.l.b16 %v1431
      %v1450 = vunpack.c.l.b16 %v1432
      %v1451 = vunpack.c.l.b16 %v1433
      %v1452 = vunpack.c.l.b16 %v1434
      %v1453 = vunpack.c.l.b16 %v1435
      %v1454 = vunpack.c.l.b16 %v1436
      %v1455 = vpack.c.b16 %v1450, %v1449
      %v1456 = vpack.c.b16 %v1452, %v1451
      %v1457 = vpack.c.b16 %v1454, %v1453
      %v1462 = vsel %vm284, %v1442, 0
      %1464 = vmatprep.subr.bf16.mxu0 0
      %1465 = vmatpush1.bf16.msra.mxu0 0
      %1466 = vmatprep.subr.bf16.mxu0 0
      %1467 = vmatpush1.bf16.msra.mxu0 0
      %1468 = vmatprep.subr.bf16.mxu0 0
      %1469 = vmatpush1.bf16.msra.mxu0 0
      %1470 = vmatprep.subr.bf16.mxu0 0
      %1471 = vmatpush1.bf16.msra.mxu0 0
      %1472 = vmatprep.subr.bf16.mxu0 0
      %1473 = vmatpush1.bf16.msra.mxu0 0
      %1474 = vmatprep.subr.bf16.mxu0 0
      %1475 = vmatpush1.bf16.msra.mxu0 %v1457
      %1476 = vmatprep.subr.bf16.mxu0 0
      %1477 = vmatpush1.bf16.msra.mxu0 %v1456
      %1478 = vmatprep.subr.bf16.mxu0 0
      %1479 = vmatpush1.bf16.msra.mxu0 %v1455
      %1480 = vmatprep.subr.bf16.mxu0 0
      %1481 = vmatpush2.bf16.msra.mxu0 0
      %1482 = vmatprep.subr.bf16.mxu0 0
      %1483 = vmatpush2.bf16.msra.mxu0 0
      %1484 = vmatprep.subr.bf16.mxu0 0
      %1485 = vmatpush2.bf16.msra.mxu0 0
      %1486 = vmatprep.subr.bf16.mxu0 0
      %1487 = vmatpush2.bf16.msra.mxu0 0
      %1488 = vmatprep.subr.bf16.mxu0 0
      %1489 = vmatpush2.bf16.msra.mxu0 0
      %1490 = vmatprep.subr.bf16.mxu0 0
      %1491 = vmatpush2.bf16.msra.mxu0 0
      %1492 = vmatprep.subr.bf16.mxu0 0
      %1493 = vmatpush2.bf16.msra.mxu0 0
      %1494 = vmatprep.subr.bf16.mxu0 0
      %1495 = vmatpush2.bf16.msra.mxu0 0
      %1496 = vmatprep.mubr.bf16.mxu0 0
      %1497 = vmatmul.mubr.bf16.gmra.mxu0 %v1462
      %v1498 = vpop.f32.mrf.mxu0
      %v1499 = vadd.f32 0.0, %v1498
      %v1500 = vpop.f32.mrf.mxu0
      %v1501 = vpop.f32.mrf.mxu0
      %v1502 = vadd.f32 0.0, %v1501
      %v1503 = vpop.f32.mrf.mxu0
      %1504 = vdwg.mxu0
      %v1505 = vadd.f32 %v1424, %v1499
      %v1506 = vadd.f32 %v1427, %v1502
      %v1507 = vld [vmem:[%s4] sm:$0x1]
      %v1509 = vlaneseq
      %v1510 = vshrl.u32 %v1509, 7
      %v1511 = vsub.s32 0, %v1510
      %v1512 = vrot.slane %v1507, %v1511
      %v1514 = vadd.f32 %v1505, %v1512
      %v1515 = vadd.f32 %v1506, %v1512
      %1516 = vst [vmem:[%s224 + $0x18] sm:$0xff] %v1514
      %1517 = vst [vmem:[%s224 + $0x78] sm:$0xf] %v1515
      %v1518 = vld [vmem:[#allocation2] sm:$0xf]
      %v1519 = vld [vmem:[#allocation2 + $0x8] sm:$0x3]
      %v1520 = vld [vmem:[%s3] sm:$0xf]
      %v1521 = vld [vmem:[%s3 + $0x4] sm:$0xf]
      %v1522 = vld [vmem:[%s3 + $0x8] sm:$0xf]
      %v1523 = vld [vmem:[%s3 + $0xc] sm:$0xf]
      %v1524 = vld [vmem:[%s3 + $0x10] sm:$0xf]
      %v1525 = vld [vmem:[%s3 + $0x14] sm:$0xf]
      %v1526 = vld [vmem:[#allocation2 + $0x8] sm:$0x7]
      %v1527 = vld [vmem:[%s547] sm:$0xf]
      %v1528 = vld [vmem:[%s547 + $0x4] sm:$0xf]
      %v1529 = vld [vmem:[%s547 + $0x8] sm:$0xf]
      %v1530 = vld [vmem:[%s547 + $0xc] sm:$0xf]
      %v1531 = vld [vmem:[%s547 + $0x10] sm:$0xf]
      %v1532 = vld [vmem:[%s547 + $0x14] sm:$0xf]
      %v1535 = vunpack.c.l.b16 %v1518
      %v1536 = vunpack.c.l.b16 %v1526
      %v1537 = vpack.c.b16 %v1536, %v1535
      %v1539 = vshrl.u32 %v1537, 16
      %v1541 = vshll.u32 %v1537, 16
      %v1543 = vrot.slane %v1541, 1
      %v1544 = vor.u32 %v1539, %v1543
      %1545 = vrot.lane.b32.xlu0 %v1544, 64
      %v1546 = vpop.permute.xlu0 %1545
      %v1553 = vunpack.c.l.b16 %v1527
      %v1554 = vunpack.c.l.b16 %v1528
      %v1555 = vunpack.c.l.b16 %v1529
      %v1556 = vunpack.c.l.b16 %v1530
      %v1557 = vunpack.c.l.b16 %v1531
      %v1558 = vunpack.c.l.b16 %v1532
      %v1559 = vpack.c.b16 %v1554, %v1553
      %v1560 = vpack.c.b16 %v1556, %v1555
      %v1561 = vpack.c.b16 %v1558, %v1557
      %v1566 = vsel %vm284, %v1546, 0
      %1568 = vmatprep.subr.bf16.mxu0 0
      %1569 = vmatpush1.bf16.msra.mxu0 0
      %1570 = vmatprep.subr.bf16.mxu0 0
      %1571 = vmatpush1.bf16.msra.mxu0 0
      %1572 = vmatprep.subr.bf16.mxu0 0
      %1573 = vmatpush1.bf16.msra.mxu0 0
      %1574 = vmatprep.subr.bf16.mxu0 0
      %1575 = vmatpush1.bf16.msra.mxu0 0
      %1576 = vmatprep.subr.bf16.mxu0 0
      %1577 = vmatpush1.bf16.msra.mxu0 0
      %1578 = vmatprep.subr.bf16.mxu0 0
      %1579 = vmatpush1.bf16.msra.mxu0 %v1561
      %1580 = vmatprep.subr.bf16.mxu0 0
      %1581 = vmatpush1.bf16.msra.mxu0 %v1560
      %1582 = vmatprep.subr.bf16.mxu0 0
      %1583 = vmatpush1.bf16.msra.mxu0 %v1559
      %1584 = vmatprep.subr.bf16.mxu0 0
      %1585 = vmatpush2.bf16.msra.mxu0 0
      %1586 = vmatprep.subr.bf16.mxu0 0
      %1587 = vmatpush2.bf16.msra.mxu0 0
      %1588 = vmatprep.subr.bf16.mxu0 0
      %1589 = vmatpush2.bf16.msra.mxu0 0
      %1590 = vmatprep.subr.bf16.mxu0 0
      %1591 = vmatpush2.bf16.msra.mxu0 0
      %1592 = vmatprep.subr.bf16.mxu0 0
      %1593 = vmatpush2.bf16.msra.mxu0 0
      %1594 = vmatprep.subr.bf16.mxu0 0
      %1595 = vmatpush2.bf16.msra.mxu0 0
      %1596 = vmatprep.subr.bf16.mxu0 0
      %1597 = vmatpush2.bf16.msra.mxu0 0
      %1598 = vmatprep.subr.bf16.mxu0 0
      %1599 = vmatpush2.bf16.msra.mxu0 0
      %1600 = vmatprep.mubr.bf16.mxu0 0
      %1601 = vmatmul.mubr.bf16.gmra.mxu0 %v1566
      %v1602 = vpop.f32.mrf.mxu0
      %v1603 = vadd.f32 0.0, %v1602
      %v1604 = vpop.f32.mrf.mxu0
      %v1605 = vpop.f32.mrf.mxu0
      %v1606 = vadd.f32 0.0, %v1605
      %v1607 = vpop.f32.mrf.mxu0
      %1608 = vdwg.mxu0
      %v1610 = vunpack.c.l.b16 %v1519
      %v1611 = vpack.c.b16 %v1610, %v1535
      %1612 = vrot.lane.b32.xlu0 %v1611, 64
      %v1613 = vpop.permute.xlu0 %1612
      %v1620 = vunpack.c.l.b16 %v1520
      %v1621 = vunpack.c.l.b16 %v1521
      %v1622 = vunpack.c.l.b16 %v1522
      %v1623 = vunpack.c.l.b16 %v1523
      %v1624 = vunpack.c.l.b16 %v1524
      %v1625 = vunpack.c.l.b16 %v1525
      %v1626 = vpack.c.b16 %v1621, %v1620
      %v1627 = vpack.c.b16 %v1623, %v1622
      %v1628 = vpack.c.b16 %v1625, %v1624
      %v1633 = vsel %vm284, %v1613, 0
      %1635 = vmatprep.subr.bf16.mxu0 0
      %1636 = vmatpush1.bf16.msra.mxu0 0
      %1637 = vmatprep.subr.bf16.mxu0 0
      %1638 = vmatpush1.bf16.msra.mxu0 0
      %1639 = vmatprep.subr.bf16.mxu0 0
      %1640 = vmatpush1.bf16.msra.mxu0 0
      %1641 = vmatprep.subr.bf16.mxu0 0
      %1642 = vmatpush1.bf16.msra.mxu0 0
      %1643 = vmatprep.subr.bf16.mxu0 0
      %1644 = vmatpush1.bf16.msra.mxu0 0
      %1645 = vmatprep.subr.bf16.mxu0 0
      %1646 = vmatpush1.bf16.msra.mxu0 %v1628
      %1647 = vmatprep.subr.bf16.mxu0 0
      %1648 = vmatpush1.bf16.msra.mxu0 %v1627
      %1649 = vmatprep.subr.bf16.mxu0 0
      %1650 = vmatpush1.bf16.msra.mxu0 %v1626
      %1651 = vmatprep.subr.bf16.mxu0 0
      %1652 = vmatpush2.bf16.msra.mxu0 0
      %1653 = vmatprep.subr.bf16.mxu0 0
      %1654 = vmatpush2.bf16.msra.mxu0 0
      %1655 = vmatprep.subr.bf16.mxu0 0
      %1656 = vmatpush2.bf16.msra.mxu0 0
      %1657 = vmatprep.subr.bf16.mxu0 0
      %1658 = vmatpush2.bf16.msra.mxu0 0
      %1659 = vmatprep.subr.bf16.mxu0 0
      %1660 = vmatpush2.bf16.msra.mxu0 0
      %1661 = vmatprep.subr.bf16.mxu0 0
      %1662 = vmatpush2.bf16.msra.mxu0 0
      %1663 = vmatprep.subr.bf16.mxu0 0
      %1664 = vmatpush2.bf16.msra.mxu0 0
      %1665 = vmatprep.subr.bf16.mxu0 0
      %1666 = vmatpush2.bf16.msra.mxu0 0
      %1667 = vmatprep.mubr.bf16.mxu0 0
      %1668 = vmatmul.mubr.bf16.gmra.mxu0 %v1633
      %v1669 = vpop.f32.mrf.mxu0
      %v1670 = vadd.f32 %v1603, %v1669
      %v1671 = vpop.f32.mrf.mxu0
      %v1672 = vpop.f32.mrf.mxu0
      %v1673 = vadd.f32 %v1606, %v1672
      %v1674 = vpop.f32.mrf.mxu0
      %1675 = vdwg.mxu0
      %v1676 = vld [vmem:[#allocation2] sm:$0xe]
      %v1677 = vld [vmem:[%s694] sm:$0xf]
      %v1678 = vld [vmem:[%s694 + $0x4] sm:$0xf]
      %v1679 = vld [vmem:[%s694 + $0x8] sm:$0xf]
      %v1680 = vld [vmem:[%s694 + $0xc] sm:$0xf]
      %v1681 = vld [vmem:[%s694 + $0x10] sm:$0xf]
      %v1682 = vld [vmem:[%s694 + $0x14] sm:$0xf]
      %v1684 = vunpack.c.l.b16 %v1676
      %v1685 = vpack.c.b16 %v1536, %v1684
      %v1686 = vrot.slane %v1685, 1
      %1687 = vrot.lane.b32.xlu0 %v1686, 64
      %v1688 = vpop.permute.xlu0 %1687
      %v1695 = vunpack.c.l.b16 %v1677
      %v1696 = vunpack.c.l.b16 %v1678
      %v1697 = vunpack.c.l.b16 %v1679
      %v1698 = vunpack.c.l.b16 %v1680
      %v1699 = vunpack.c.l.b16 %v1681
      %v1700 = vunpack.c.l.b16 %v1682
      %v1701 = vpack.c.b16 %v1696, %v1695
      %v1702 = vpack.c.b16 %v1698, %v1697
      %v1703 = vpack.c.b16 %v1700, %v1699
      %v1708 = vsel %vm284, %v1688, 0
      %1710 = vmatprep.subr.bf16.mxu0 0
      %1711 = vmatpush1.bf16.msra.mxu0 0
      %1712 = vmatprep.subr.bf16.mxu0 0
      %1713 = vmatpush1.bf16.msra.mxu0 0
      %1714 = vmatprep.subr.bf16.mxu0 0
      %1715 = vmatpush1.bf16.msra.mxu0 0
      %1716 = vmatprep.subr.bf16.mxu0 0
      %1717 = vmatpush1.bf16.msra.mxu0 0
      %1718 = vmatprep.subr.bf16.mxu0 0
      %1719 = vmatpush1.bf16.msra.mxu0 0
      %1720 = vmatprep.subr.bf16.mxu0 0
      %1721 = vmatpush1.bf16.msra.mxu0 %v1703
      %1722 = vmatprep.subr.bf16.mxu0 0
      %1723 = vmatpush1.bf16.msra.mxu0 %v1702
      %1724 = vmatprep.subr.bf16.mxu0 0
      %1725 = vmatpush1.bf16.msra.mxu0 %v1701
      %1726 = vmatprep.subr.bf16.mxu0 0
      %1727 = vmatpush2.bf16.msra.mxu0 0
      %1728 = vmatprep.subr.bf16.mxu0 0
      %1729 = vmatpush2.bf16.msra.mxu0 0
      %1730 = vmatprep.subr.bf16.mxu0 0
      %1731 = vmatpush2.bf16.msra.mxu0 0
      %1732 = vmatprep.subr.bf16.mxu0 0
      %1733 = vmatpush2.bf16.msra.mxu0 0
      %1734 = vmatprep.subr.bf16.mxu0 0
      %1735 = vmatpush2.bf16.msra.mxu0 0
      %1736 = vmatprep.subr.bf16.mxu0 0
      %1737 = vmatpush2.bf16.msra.mxu0 0
      %1738 = vmatprep.subr.bf16.mxu0 0
      %1739 = vmatpush2.bf16.msra.mxu0 0
      %1740 = vmatprep.subr.bf16.mxu0 0
      %1741 = vmatpush2.bf16.msra.mxu0 0
      %1742 = vmatprep.mubr.bf16.mxu0 0
      %1743 = vmatmul.mubr.bf16.gmra.mxu0 %v1708
      %v1744 = vpop.f32.mrf.mxu0
      %v1745 = vadd.f32 0.0, %v1744
      %v1746 = vpop.f32.mrf.mxu0
      %v1747 = vpop.f32.mrf.mxu0
      %v1748 = vadd.f32 0.0, %v1747
      %v1749 = vpop.f32.mrf.mxu0
      %1750 = vdwg.mxu0
      %v1751 = vadd.f32 %v1670, %v1745
      %v1752 = vadd.f32 %v1673, %v1748
      %v1753 = vld [vmem:[%s4] sm:$0x1]
      %v1755 = vlaneseq
      %v1756 = vshrl.u32 %v1755, 7
      %v1757 = vsub.s32 0, %v1756
      %v1758 = vrot.slane %v1753, %v1757
      %v1760 = vadd.f32 %v1751, %v1758
      %v1761 = vadd.f32 %v1752, %v1758
      %1762 = vst [vmem:[%s224 + $0x20] sm:$0xff] %v1760
      %1763 = vst [vmem:[%s224 + $0x80] sm:$0xf] %v1761
      %v1764 = vld [vmem:[#allocation2] sm:$0xf]
      %v1765 = vld [vmem:[#allocation2 + $0x8] sm:$0x3]
      %v1766 = vld [vmem:[%s3] sm:$0xf]
      %v1767 = vld [vmem:[%s3 + $0x4] sm:$0xf]
      %v1768 = vld [vmem:[%s3 + $0x8] sm:$0xf]
      %v1769 = vld [vmem:[%s3 + $0xc] sm:$0xf]
      %v1770 = vld [vmem:[%s3 + $0x10] sm:$0xf]
      %v1771 = vld [vmem:[%s3 + $0x14] sm:$0xf]
      %v1772 = vld [vmem:[#allocation2 + $0x8] sm:$0x7]
      %v1773 = vld [vmem:[%s547] sm:$0xf]
      %v1774 = vld [vmem:[%s547 + $0x4] sm:$0xf]
      %v1775 = vld [vmem:[%s547 + $0x8] sm:$0xf]
      %v1776 = vld [vmem:[%s547 + $0xc] sm:$0xf]
      %v1777 = vld [vmem:[%s547 + $0x10] sm:$0xf]
      %v1778 = vld [vmem:[%s547 + $0x14] sm:$0xf]
      %v1781 = vunpack.c.l.b16 %v1764
      %v1782 = vunpack.c.l.b16 %v1772
      %v1783 = vpack.c.b16 %v1782, %v1781
      %v1785 = vshrl.u32 %v1783, 16
      %v1787 = vshll.u32 %v1783, 16
      %v1789 = vrot.slane %v1787, 1
      %v1790 = vor.u32 %v1785, %v1789
      %1791 = vrot.lane.b32.xlu0 %v1790, 48
      %v1792 = vpop.permute.xlu0 %1791
      %v1799 = vunpack.c.l.b16 %v1773
      %v1800 = vunpack.c.l.b16 %v1774
      %v1801 = vunpack.c.l.b16 %v1775
      %v1802 = vunpack.c.l.b16 %v1776
      %v1803 = vunpack.c.l.b16 %v1777
      %v1804 = vunpack.c.l.b16 %v1778
      %v1805 = vpack.c.b16 %v1800, %v1799
      %v1806 = vpack.c.b16 %v1802, %v1801
      %v1807 = vpack.c.b16 %v1804, %v1803
      %v1812 = vsel %vm284, %v1792, 0
      %1814 = vmatprep.subr.bf16.mxu0 0
      %1815 = vmatpush1.bf16.msra.mxu0 0
      %1816 = vmatprep.subr.bf16.mxu0 0
      %1817 = vmatpush1.bf16.msra.mxu0 0
      %1818 = vmatprep.subr.bf16.mxu0 0
      %1819 = vmatpush1.bf16.msra.mxu0 0
      %1820 = vmatprep.subr.bf16.mxu0 0
      %1821 = vmatpush1.bf16.msra.mxu0 0
      %1822 = vmatprep.subr.bf16.mxu0 0
      %1823 = vmatpush1.bf16.msra.mxu0 0
      %1824 = vmatprep.subr.bf16.mxu0 0
      %1825 = vmatpush1.bf16.msra.mxu0 %v1807
      %1826 = vmatprep.subr.bf16.mxu0 0
      %1827 = vmatpush1.bf16.msra.mxu0 %v1806
      %1828 = vmatprep.subr.bf16.mxu0 0
      %1829 = vmatpush1.bf16.msra.mxu0 %v1805
      %1830 = vmatprep.subr.bf16.mxu0 0
      %1831 = vmatpush2.bf16.msra.mxu0 0
      %1832 = vmatprep.subr.bf16.mxu0 0
      %1833 = vmatpush2.bf16.msra.mxu0 0
      %1834 = vmatprep.subr.bf16.mxu0 0
      %1835 = vmatpush2.bf16.msra.mxu0 0
      %1836 = vmatprep.subr.bf16.mxu0 0
      %1837 = vmatpush2.bf16.msra.mxu0 0
      %1838 = vmatprep.subr.bf16.mxu0 0
      %1839 = vmatpush2.bf16.msra.mxu0 0
      %1840 = vmatprep.subr.bf16.mxu0 0
      %1841 = vmatpush2.bf16.msra.mxu0 0
      %1842 = vmatprep.subr.bf16.mxu0 0
      %1843 = vmatpush2.bf16.msra.mxu0 0
      %1844 = vmatprep.subr.bf16.mxu0 0
      %1845 = vmatpush2.bf16.msra.mxu0 0
      %1846 = vmatprep.mubr.bf16.mxu0 0
      %1847 = vmatmul.mubr.bf16.gmra.mxu0 %v1812
      %v1848 = vpop.f32.mrf.mxu0
      %v1849 = vadd.f32 0.0, %v1848
      %v1850 = vpop.f32.mrf.mxu0
      %v1851 = vpop.f32.mrf.mxu0
      %v1852 = vadd.f32 0.0, %v1851
      %v1853 = vpop.f32.mrf.mxu0
      %1854 = vdwg.mxu0
      %v1856 = vunpack.c.l.b16 %v1765
      %v1857 = vpack.c.b16 %v1856, %v1781
      %1858 = vrot.lane.b32.xlu0 %v1857, 48
      %v1859 = vpop.permute.xlu0 %1858
      %v1866 = vunpack.c.l.b16 %v1766
      %v1867 = vunpack.c.l.b16 %v1767
      %v1868 = vunpack.c.l.b16 %v1768
      %v1869 = vunpack.c.l.b16 %v1769
      %v1870 = vunpack.c.l.b16 %v1770
      %v1871 = vunpack.c.l.b16 %v1771
      %v1872 = vpack.c.b16 %v1867, %v1866
      %v1873 = vpack.c.b16 %v1869, %v1868
      %v1874 = vpack.c.b16 %v1871, %v1870
      %v1879 = vsel %vm284, %v1859, 0
      %1881 = vmatprep.subr.bf16.mxu0 0
      %1882 = vmatpush1.bf16.msra.mxu0 0
      %1883 = vmatprep.subr.bf16.mxu0 0
      %1884 = vmatpush1.bf16.msra.mxu0 0
      %1885 = vmatprep.subr.bf16.mxu0 0
      %1886 = vmatpush1.bf16.msra.mxu0 0
      %1887 = vmatprep.subr.bf16.mxu0 0
      %1888 = vmatpush1.bf16.msra.mxu0 0
      %1889 = vmatprep.subr.bf16.mxu0 0
      %1890 = vmatpush1.bf16.msra.mxu0 0
      %1891 = vmatprep.subr.bf16.mxu0 0
      %1892 = vmatpush1.bf16.msra.mxu0 %v1874
      %1893 = vmatprep.subr.bf16.mxu0 0
      %1894 = vmatpush1.bf16.msra.mxu0 %v1873
      %1895 = vmatprep.subr.bf16.mxu0 0
      %1896 = vmatpush1.bf16.msra.mxu0 %v1872
      %1897 = vmatprep.subr.bf16.mxu0 0
      %1898 = vmatpush2.bf16.msra.mxu0 0
      %1899 = vmatprep.subr.bf16.mxu0 0
      %1900 = vmatpush2.bf16.msra.mxu0 0
      %1901 = vmatprep.subr.bf16.mxu0 0
      %1902 = vmatpush2.bf16.msra.mxu0 0
      %1903 = vmatprep.subr.bf16.mxu0 0
      %1904 = vmatpush2.bf16.msra.mxu0 0
      %1905 = vmatprep.subr.bf16.mxu0 0
      %1906 = vmatpush2.bf16.msra.mxu0 0
      %1907 = vmatprep.subr.bf16.mxu0 0
      %1908 = vmatpush2.bf16.msra.mxu0 0
      %1909 = vmatprep.subr.bf16.mxu0 0
      %1910 = vmatpush2.bf16.msra.mxu0 0
      %1911 = vmatprep.subr.bf16.mxu0 0
      %1912 = vmatpush2.bf16.msra.mxu0 0
      %1913 = vmatprep.mubr.bf16.mxu0 0
      %1914 = vmatmul.mubr.bf16.gmra.mxu0 %v1879
      %v1915 = vpop.f32.mrf.mxu0
      %v1916 = vadd.f32 %v1849, %v1915
      %v1917 = vpop.f32.mrf.mxu0
      %v1918 = vpop.f32.mrf.mxu0
      %v1919 = vadd.f32 %v1852, %v1918
      %v1920 = vpop.f32.mrf.mxu0
      %1921 = vdwg.mxu0
      %v1922 = vld [vmem:[#allocation2] sm:$0xe]
      %v1923 = vld [vmem:[%s694] sm:$0xf]
      %v1924 = vld [vmem:[%s694 + $0x4] sm:$0xf]
      %v1925 = vld [vmem:[%s694 + $0x8] sm:$0xf]
      %v1926 = vld [vmem:[%s694 + $0xc] sm:$0xf]
      %v1927 = vld [vmem:[%s694 + $0x10] sm:$0xf]
      %v1928 = vld [vmem:[%s694 + $0x14] sm:$0xf]
      %v1930 = vunpack.c.l.b16 %v1922
      %v1931 = vpack.c.b16 %v1782, %v1930
      %v1932 = vrot.slane %v1931, 1
      %1933 = vrot.lane.b32.xlu0 %v1932, 48
      %v1934 = vpop.permute.xlu0 %1933
      %v1941 = vunpack.c.l.b16 %v1923
      %v1942 = vunpack.c.l.b16 %v1924
      %v1943 = vunpack.c.l.b16 %v1925
      %v1944 = vunpack.c.l.b16 %v1926
      %v1945 = vunpack.c.l.b16 %v1927
      %v1946 = vunpack.c.l.b16 %v1928
      %v1947 = vpack.c.b16 %v1942, %v1941
      %v1948 = vpack.c.b16 %v1944, %v1943
      %v1949 = vpack.c.b16 %v1946, %v1945
      %v1954 = vsel %vm284, %v1934, 0
      %1956 = vmatprep.subr.bf16.mxu0 0
      %1957 = vmatpush1.bf16.msra.mxu0 0
      %1958 = vmatprep.subr.bf16.mxu0 0
      %1959 = vmatpush1.bf16.msra.mxu0 0
      %1960 = vmatprep.subr.bf16.mxu0 0
      %1961 = vmatpush1.bf16.msra.mxu0 0
      %1962 = vmatprep.subr.bf16.mxu0 0
      %1963 = vmatpush1.bf16.msra.mxu0 0
      %1964 = vmatprep.subr.bf16.mxu0 0
      %1965 = vmatpush1.bf16.msra.mxu0 0
      %1966 = vmatprep.subr.bf16.mxu0 0
      %1967 = vmatpush1.bf16.msra.mxu0 %v1949
      %1968 = vmatprep.subr.bf16.mxu0 0
      %1969 = vmatpush1.bf16.msra.mxu0 %v1948
      %1970 = vmatprep.subr.bf16.mxu0 0
      %1971 = vmatpush1.bf16.msra.mxu0 %v1947
      %1972 = vmatprep.subr.bf16.mxu0 0
      %1973 = vmatpush2.bf16.msra.mxu0 0
      %1974 = vmatprep.subr.bf16.mxu0 0
      %1975 = vmatpush2.bf16.msra.mxu0 0
      %1976 = vmatprep.subr.bf16.mxu0 0
      %1977 = vmatpush2.bf16.msra.mxu0 0
      %1978 = vmatprep.subr.bf16.mxu0 0
      %1979 = vmatpush2.bf16.msra.mxu0 0
      %1980 = vmatprep.subr.bf16.mxu0 0
      %1981 = vmatpush2.bf16.msra.mxu0 0
      %1982 = vmatprep.subr.bf16.mxu0 0
      %1983 = vmatpush2.bf16.msra.mxu0 0
      %1984 = vmatprep.subr.bf16.mxu0 0
      %1985 = vmatpush2.bf16.msra.mxu0 0
      %1986 = vmatprep.subr.bf16.mxu0 0
      %1987 = vmatpush2.bf16.msra.mxu0 0
      %1988 = vmatprep.mubr.bf16.mxu0 0
      %1989 = vmatmul.mubr.bf16.gmra.mxu0 %v1954
      %v1990 = vpop.f32.mrf.mxu0
      %v1991 = vadd.f32 0.0, %v1990
      %v1992 = vpop.f32.mrf.mxu0
      %v1993 = vpop.f32.mrf.mxu0
      %v1994 = vadd.f32 0.0, %v1993
      %v1995 = vpop.f32.mrf.mxu0
      %1996 = vdwg.mxu0
      %v1997 = vadd.f32 %v1916, %v1991
      %v1998 = vadd.f32 %v1919, %v1994
      %v1999 = vld [vmem:[%s4] sm:$0x1]
      %v2001 = vlaneseq
      %v2002 = vshrl.u32 %v2001, 7
      %v2003 = vsub.s32 0, %v2002
      %v2004 = vrot.slane %v1999, %v2003
      %v2006 = vadd.f32 %v1997, %v2004
      %v2007 = vadd.f32 %v1998, %v2004
      %2008 = vst [vmem:[%s224 + $0x28] sm:$0xff] %v2006
      %2009 = vst [vmem:[%s224 + $0x88] sm:$0xf] %v2007
      %v2010 = vld [vmem:[#allocation2] sm:$0xff]
      %v2011 = vld [vmem:[#allocation2 + $0x8] sm:$0x33]
      %v2012 = vld [vmem:[%s3] sm:$0xf]
      %v2013 = vld [vmem:[%s3 + $0x4] sm:$0xf]
      %v2014 = vld [vmem:[%s3 + $0x8] sm:$0xf]
      %v2015 = vld [vmem:[%s3 + $0xc] sm:$0xf]
      %v2016 = vld [vmem:[%s3 + $0x10] sm:$0xf]
      %v2017 = vld [vmem:[%s3 + $0x14] sm:$0xf]
      %v2018 = vld [vmem:[#allocation2 + $0x8] sm:$0x77]
      %v2019 = vld [vmem:[%s547] sm:$0xf]
      %v2020 = vld [vmem:[%s547 + $0x4] sm:$0xf]
      %v2021 = vld [vmem:[%s547 + $0x8] sm:$0xf]
      %v2022 = vld [vmem:[%s547 + $0xc] sm:$0xf]
      %v2023 = vld [vmem:[%s547 + $0x10] sm:$0xf]
      %v2024 = vld [vmem:[%s547 + $0x14] sm:$0xf]
      %v2027 = vunpack.c.l.b16 %v2010
      %v2028 = vunpack.c.h.b16 %v2010
      %v2029 = vunpack.c.l.b16 %v2018
      %v2030 = vunpack.c.h.b16 %v2018
      %v2031 = vpack.c.b16 %v2029, %v2027
      %v2032 = vpack.c.b16 %v2030, %v2028
      %v2034 = vshrl.u32 %v2031, 16
      %v2036 = vshll.u32 %v2031, 16
      %v2038 = vrot.slane %v2036, 1
      %v2039 = vor.u32 %v2034, %v2038
      %v2041 = vshrl.u32 %v2032, 16
      %v2043 = vshll.u32 %v2032, 16
      %v2045 = vrot.slane %v2043, 1
      %v2046 = vor.u32 %v2041, %v2045
      %2047 = vrot.lane.b32.xlu0 %v2039, 32
      %v2048 = vpop.permute.xlu0 %2047
      %2049 = vrot.lane.b32.xlu0 %v2046, 32
      %v2050 = vpop.permute.xlu0 %2049
      %vm2051 = vcmask 261120
      %v2052 = vsel %vm2051, %v2048, %v2050
      %v2059 = vunpack.c.l.b16 %v2019
      %v2060 = vunpack.c.l.b16 %v2020
      %v2061 = vunpack.c.l.b16 %v2021
      %v2062 = vunpack.c.l.b16 %v2022
      %v2063 = vunpack.c.l.b16 %v2023
      %v2064 = vunpack.c.l.b16 %v2024
      %v2065 = vpack.c.b16 %v2060, %v2059
      %v2066 = vpack.c.b16 %v2062, %v2061
      %v2067 = vpack.c.b16 %v2064, %v2063
      %v2072 = vsel %vm284, %v2052, 0
      %2074 = vmatprep.subr.bf16.mxu0 0
      %2075 = vmatpush1.bf16.msra.mxu0 0
      %2076 = vmatprep.subr.bf16.mxu0 0
      %2077 = vmatpush1.bf16.msra.mxu0 0
      %2078 = vmatprep.subr.bf16.mxu0 0
      %2079 = vmatpush1.bf16.msra.mxu0 0
      %2080 = vmatprep.subr.bf16.mxu0 0
      %2081 = vmatpush1.bf16.msra.mxu0 0
      %2082 = vmatprep.subr.bf16.mxu0 0
      %2083 = vmatpush1.bf16.msra.mxu0 0
      %2084 = vmatprep.subr.bf16.mxu0 0
      %2085 = vmatpush1.bf16.msra.mxu0 %v2067
      %2086 = vmatprep.subr.bf16.mxu0 0
      %2087 = vmatpush1.bf16.msra.mxu0 %v2066
      %2088 = vmatprep.subr.bf16.mxu0 0
      %2089 = vmatpush1.bf16.msra.mxu0 %v2065
      %2090 = vmatprep.subr.bf16.mxu0 0
      %2091 = vmatpush2.bf16.msra.mxu0 0
      %2092 = vmatprep.subr.bf16.mxu0 0
      %2093 = vmatpush2.bf16.msra.mxu0 0
      %2094 = vmatprep.subr.bf16.mxu0 0
      %2095 = vmatpush2.bf16.msra.mxu0 0
      %2096 = vmatprep.subr.bf16.mxu0 0
      %2097 = vmatpush2.bf16.msra.mxu0 0
      %2098 = vmatprep.subr.bf16.mxu0 0
      %2099 = vmatpush2.bf16.msra.mxu0 0
      %2100 = vmatprep.subr.bf16.mxu0 0
      %2101 = vmatpush2.bf16.msra.mxu0 0
      %2102 = vmatprep.subr.bf16.mxu0 0
      %2103 = vmatpush2.bf16.msra.mxu0 0
      %2104 = vmatprep.subr.bf16.mxu0 0
      %2105 = vmatpush2.bf16.msra.mxu0 0
      %2106 = vmatprep.mubr.bf16.mxu0 0
      %2107 = vmatmul.mubr.bf16.gmra.mxu0 %v2072
      %v2108 = vpop.f32.mrf.mxu0
      %v2109 = vadd.f32 0.0, %v2108
      %v2110 = vpop.f32.mrf.mxu0
      %v2111 = vpop.f32.mrf.mxu0
      %v2112 = vadd.f32 0.0, %v2111
      %v2113 = vpop.f32.mrf.mxu0
      %2114 = vdwg.mxu0
      %v2116 = vunpack.c.l.b16 %v2011
      %v2117 = vunpack.c.h.b16 %v2011
      %v2118 = vpack.c.b16 %v2116, %v2027
      %v2119 = vpack.c.b16 %v2117, %v2028
      %2120 = vrot.lane.b32.xlu0 %v2118, 32
      %v2121 = vpop.permute.xlu0 %2120
      %2122 = vrot.lane.b32.xlu0 %v2119, 32
      %v2123 = vpop.permute.xlu0 %2122
      %v2124 = vsel %vm2051, %v2121, %v2123
      %v2131 = vunpack.c.l.b16 %v2012
      %v2132 = vunpack.c.l.b16 %v2013
      %v2133 = vunpack.c.l.b16 %v2014
      %v2134 = vunpack.c.l.b16 %v2015
      %v2135 = vunpack.c.l.b16 %v2016
      %v2136 = vunpack.c.l.b16 %v2017
      %v2137 = vpack.c.b16 %v2132, %v2131
      %v2138 = vpack.c.b16 %v2134, %v2133
      %v2139 = vpack.c.b16 %v2136, %v2135
      %v2144 = vsel %vm284, %v2124, 0
      %2146 = vmatprep.subr.bf16.mxu0 0
      %2147 = vmatpush1.bf16.msra.mxu0 0
      %2148 = vmatprep.subr.bf16.mxu0 0
      %2149 = vmatpush1.bf16.msra.mxu0 0
      %2150 = vmatprep.subr.bf16.mxu0 0
      %2151 = vmatpush1.bf16.msra.mxu0 0
      %2152 = vmatprep.subr.bf16.mxu0 0
      %2153 = vmatpush1.bf16.msra.mxu0 0
      %2154 = vmatprep.subr.bf16.mxu0 0
      %2155 = vmatpush1.bf16.msra.mxu0 0
      %2156 = vmatprep.subr.bf16.mxu0 0
      %2157 = vmatpush1.bf16.msra.mxu0 %v2139
      %2158 = vmatprep.subr.bf16.mxu0 0
      %2159 = vmatpush1.bf16.msra.mxu0 %v2138
      %2160 = vmatprep.subr.bf16.mxu0 0
      %2161 = vmatpush1.bf16.msra.mxu0 %v2137
      %2162 = vmatprep.subr.bf16.mxu0 0
      %2163 = vmatpush2.bf16.msra.mxu0 0
      %2164 = vmatprep.subr.bf16.mxu0 0
      %2165 = vmatpush2.bf16.msra.mxu0 0
      %2166 = vmatprep.subr.bf16.mxu0 0
      %2167 = vmatpush2.bf16.msra.mxu0 0
      %2168 = vmatprep.subr.bf16.mxu0 0
      %2169 = vmatpush2.bf16.msra.mxu0 0
      %2170 = vmatprep.subr.bf16.mxu0 0
      %2171 = vmatpush2.bf16.msra.mxu0 0
      %2172 = vmatprep.subr.bf16.mxu0 0
      %2173 = vmatpush2.bf16.msra.mxu0 0
      %2174 = vmatprep.subr.bf16.mxu0 0
      %2175 = vmatpush2.bf16.msra.mxu0 0
      %2176 = vmatprep.subr.bf16.mxu0 0
      %2177 = vmatpush2.bf16.msra.mxu0 0
      %2178 = vmatprep.mubr.bf16.mxu0 0
      %2179 = vmatmul.mubr.bf16.gmra.mxu0 %v2144
      %v2180 = vpop.f32.mrf.mxu0
      %v2181 = vadd.f32 %v2109, %v2180
      %v2182 = vpop.f32.mrf.mxu0
      %v2183 = vpop.f32.mrf.mxu0
      %v2184 = vadd.f32 %v2112, %v2183
      %v2185 = vpop.f32.mrf.mxu0
      %2186 = vdwg.mxu0
      %v2187 = vld [vmem:[#allocation2] sm:$0xee]
      %v2188 = vld [vmem:[%s694] sm:$0xf]
      %v2189 = vld [vmem:[%s694 + $0x4] sm:$0xf]
      %v2190 = vld [vmem:[%s694 + $0x8] sm:$0xf]
      %v2191 = vld [vmem:[%s694 + $0xc] sm:$0xf]
      %v2192 = vld [vmem:[%s694 + $0x10] sm:$0xf]
      %v2193 = vld [vmem:[%s694 + $0x14] sm:$0xf]
      %v2195 = vunpack.c.l.b16 %v2187
      %v2196 = vunpack.c.h.b16 %v2187
      %v2197 = vpack.c.b16 %v2029, %v2195
      %v2198 = vpack.c.b16 %v2030, %v2196
      %v2199 = vrot.slane %v2197, 1
      %v2200 = vrot.slane %v2198, 1
      %2201 = vrot.lane.b32.xlu0 %v2199, 32
      %v2202 = vpop.permute.xlu0 %2201
      %2203 = vrot.lane.b32.xlu0 %v2200, 32
      %v2204 = vpop.permute.xlu0 %2203
      %v2205 = vsel %vm2051, %v2202, %v2204
      %v2212 = vunpack.c.l.b16 %v2188
      %v2213 = vunpack.c.l.b16 %v2189
      %v2214 = vunpack.c.l.b16 %v2190
      %v2215 = vunpack.c.l.b16 %v2191
      %v2216 = vunpack.c.l.b16 %v2192
      %v2217 = vunpack.c.l.b16 %v2193
      %v2218 = vpack.c.b16 %v2213, %v2212
      %v2219 = vpack.c.b16 %v2215, %v2214
      %v2220 = vpack.c.b16 %v2217, %v2216
      %v2225 = vsel %vm284, %v2205, 0
      %2227 = vmatprep.subr.bf16.mxu0 0
      %2228 = vmatpush1.bf16.msra.mxu0 0
      %2229 = vmatprep.subr.bf16.mxu0 0
      %2230 = vmatpush1.bf16.msra.mxu0 0
      %2231 = vmatprep.subr.bf16.mxu0 0
      %2232 = vmatpush1.bf16.msra.mxu0 0
      %2233 = vmatprep.subr.bf16.mxu0 0
      %2234 = vmatpush1.bf16.msra.mxu0 0
      %2235 = vmatprep.subr.bf16.mxu0 0
      %2236 = vmatpush1.bf16.msra.mxu0 0
      %2237 = vmatprep.subr.bf16.mxu0 0
      %2238 = vmatpush1.bf16.msra.mxu0 %v2220
      %2239 = vmatprep.subr.bf16.mxu0 0
      %2240 = vmatpush1.bf16.msra.mxu0 %v2219
      %2241 = vmatprep.subr.bf16.mxu0 0
      %2242 = vmatpush1.bf16.msra.mxu0 %v2218
      %2243 = vmatprep.subr.bf16.mxu0 0
      %2244 = vmatpush2.bf16.msra.mxu0 0
      %2245 = vmatprep.subr.bf16.mxu0 0
      %2246 = vmatpush2.bf16.msra.mxu0 0
      %2247 = vmatprep.subr.bf16.mxu0 0
      %2248 = vmatpush2.bf16.msra.mxu0 0
      %2249 = vmatprep.subr.bf16.mxu0 0
      %2250 = vmatpush2.bf16.msra.mxu0 0
      %2251 = vmatprep.subr.bf16.mxu0 0
      %2252 = vmatpush2.bf16.msra.mxu0 0
      %2253 = vmatprep.subr.bf16.mxu0 0
      %2254 = vmatpush2.bf16.msra.mxu0 0
      %2255 = vmatprep.subr.bf16.mxu0 0
      %2256 = vmatpush2.bf16.msra.mxu0 0
      %2257 = vmatprep.subr.bf16.mxu0 0
      %2258 = vmatpush2.bf16.msra.mxu0 0
      %2259 = vmatprep.mubr.bf16.mxu0 0
      %2260 = vmatmul.mubr.bf16.gmra.mxu0 %v2225
      %v2261 = vpop.f32.mrf.mxu0
      %v2262 = vadd.f32 0.0, %v2261
      %v2263 = vpop.f32.mrf.mxu0
      %v2264 = vpop.f32.mrf.mxu0
      %v2265 = vadd.f32 0.0, %v2264
      %v2266 = vpop.f32.mrf.mxu0
      %2267 = vdwg.mxu0
      %v2268 = vadd.f32 %v2181, %v2262
      %v2269 = vadd.f32 %v2184, %v2265
      %v2270 = vld [vmem:[%s4] sm:$0x1]
      %v2272 = vlaneseq
      %v2273 = vshrl.u32 %v2272, 7
      %v2274 = vsub.s32 0, %v2273
      %v2275 = vrot.slane %v2270, %v2274
      %v2277 = vadd.f32 %v2268, %v2275
      %v2278 = vadd.f32 %v2269, %v2275
      %2279 = vst [vmem:[%s224 + $0x30] sm:$0xff] %v2277
      %2280 = vst [vmem:[%s224 + $0x90] sm:$0xf] %v2278
      %v2281 = vld [vmem:[#allocation2] sm:$0xff]
      %v2282 = vld [vmem:[#allocation2 + $0x8] sm:$0x33]
      %v2283 = vld [vmem:[%s3] sm:$0xf]
      %v2284 = vld [vmem:[%s3 + $0x4] sm:$0xf]
      %v2285 = vld [vmem:[%s3 + $0x8] sm:$0xf]
      %v2286 = vld [vmem:[%s3 + $0xc] sm:$0xf]
      %v2287 = vld [vmem:[%s3 + $0x10] sm:$0xf]
      %v2288 = vld [vmem:[%s3 + $0x14] sm:$0xf]
      %v2289 = vld [vmem:[#allocation2 + $0x8] sm:$0x77]
      %v2290 = vld [vmem:[%s547] sm:$0xf]
      %v2291 = vld [vmem:[%s547 + $0x4] sm:$0xf]
      %v2292 = vld [vmem:[%s547 + $0x8] sm:$0xf]
      %v2293 = vld [vmem:[%s547 + $0xc] sm:$0xf]
      %v2294 = vld [vmem:[%s547 + $0x10] sm:$0xf]
      %v2295 = vld [vmem:[%s547 + $0x14] sm:$0xf]
      %v2298 = vunpack.c.l.b16 %v2281
      %v2299 = vunpack.c.h.b16 %v2281
      %v2300 = vunpack.c.l.b16 %v2289
      %v2301 = vunpack.c.h.b16 %v2289
      %v2302 = vpack.c.b16 %v2300, %v2298
      %v2303 = vpack.c.b16 %v2301, %v2299
      %v2305 = vshrl.u32 %v2302, 16
      %v2307 = vshll.u32 %v2302, 16
      %v2309 = vrot.slane %v2307, 1
      %v2310 = vor.u32 %v2305, %v2309
      %v2312 = vshrl.u32 %v2303, 16
      %v2314 = vshll.u32 %v2303, 16
      %v2316 = vrot.slane %v2314, 1
      %v2317 = vor.u32 %v2312, %v2316
      %2318 = vrot.lane.b32.xlu0 %v2310, 16
      %v2319 = vpop.permute.xlu0 %2318
      %2320 = vrot.lane.b32.xlu0 %v2317, 16
      %v2321 = vpop.permute.xlu0 %2320
      %vm2322 = vcmask 130048
      %v2323 = vsel %vm2322, %v2319, %v2321
      %v2330 = vunpack.c.l.b16 %v2290
      %v2331 = vunpack.c.l.b16 %v2291
      %v2332 = vunpack.c.l.b16 %v2292
      %v2333 = vunpack.c.l.b16 %v2293
      %v2334 = vunpack.c.l.b16 %v2294
      %v2335 = vunpack.c.l.b16 %v2295
      %v2336 = vpack.c.b16 %v2331, %v2330
      %v2337 = vpack.c.b16 %v2333, %v2332
      %v2338 = vpack.c.b16 %v2335, %v2334
      %v2343 = vsel %vm284, %v2323, 0
      %2345 = vmatprep.subr.bf16.mxu0 0
      %2346 = vmatpush1.bf16.msra.mxu0 0
      %2347 = vmatprep.subr.bf16.mxu0 0
      %2348 = vmatpush1.bf16.msra.mxu0 0
      %2349 = vmatprep.subr.bf16.mxu0 0
      %2350 = vmatpush1.bf16.msra.mxu0 0
      %2351 = vmatprep.subr.bf16.mxu0 0
      %2352 = vmatpush1.bf16.msra.mxu0 0
      %2353 = vmatprep.subr.bf16.mxu0 0
      %2354 = vmatpush1.bf16.msra.mxu0 0
      %2355 = vmatprep.subr.bf16.mxu0 0
      %2356 = vmatpush1.bf16.msra.mxu0 %v2338
      %2357 = vmatprep.subr.bf16.mxu0 0
      %2358 = vmatpush1.bf16.msra.mxu0 %v2337
      %2359 = vmatprep.subr.bf16.mxu0 0
      %2360 = vmatpush1.bf16.msra.mxu0 %v2336
      %2361 = vmatprep.subr.bf16.mxu0 0
      %2362 = vmatpush2.bf16.msra.mxu0 0
      %2363 = vmatprep.subr.bf16.mxu0 0
      %2364 = vmatpush2.bf16.msra.mxu0 0
      %2365 = vmatprep.subr.bf16.mxu0 0
      %2366 = vmatpush2.bf16.msra.mxu0 0
      %2367 = vmatprep.subr.bf16.mxu0 0
      %2368 = vmatpush2.bf16.msra.mxu0 0
      %2369 = vmatprep.subr.bf16.mxu0 0
      %2370 = vmatpush2.bf16.msra.mxu0 0
      %2371 = vmatprep.subr.bf16.mxu0 0
      %2372 = vmatpush2.bf16.msra.mxu0 0
      %2373 = vmatprep.subr.bf16.mxu0 0
      %2374 = vmatpush2.bf16.msra.mxu0 0
      %2375 = vmatprep.subr.bf16.mxu0 0
      %2376 = vmatpush2.bf16.msra.mxu0 0
      %2377 = vmatprep.mubr.bf16.mxu0 0
      %2378 = vmatmul.mubr.bf16.gmra.mxu0 %v2343
      %v2379 = vpop.f32.mrf.mxu0
      %v2380 = vadd.f32 0.0, %v2379
      %v2381 = vpop.f32.mrf.mxu0
      %v2382 = vpop.f32.mrf.mxu0
      %v2383 = vadd.f32 0.0, %v2382
      %v2384 = vpop.f32.mrf.mxu0
      %2385 = vdwg.mxu0
      %v2387 = vunpack.c.l.b16 %v2282
      %v2388 = vunpack.c.h.b16 %v2282
      %v2389 = vpack.c.b16 %v2387, %v2298
      %v2390 = vpack.c.b16 %v2388, %v2299
      %2391 = vrot.lane.b32.xlu0 %v2389, 16
      %v2392 = vpop.permute.xlu0 %2391
      %2393 = vrot.lane.b32.xlu0 %v2390, 16
      %v2394 = vpop.permute.xlu0 %2393
      %v2395 = vsel %vm2322, %v2392, %v2394
      %v2402 = vunpack.c.l.b16 %v2283
      %v2403 = vunpack.c.l.b16 %v2284
      %v2404 = vunpack.c.l.b16 %v2285
      %v2405 = vunpack.c.l.b16 %v2286
      %v2406 = vunpack.c.l.b16 %v2287
      %v2407 = vunpack.c.l.b16 %v2288
      %v2408 = vpack.c.b16 %v2403, %v2402
      %v2409 = vpack.c.b16 %v2405, %v2404
      %v2410 = vpack.c.b16 %v2407, %v2406
      %v2415 = vsel %vm284, %v2395, 0
      %2417 = vmatprep.subr.bf16.mxu0 0
      %2418 = vmatpush1.bf16.msra.mxu0 0
      %2419 = vmatprep.subr.bf16.mxu0 0
      %2420 = vmatpush1.bf16.msra.mxu0 0
      %2421 = vmatprep.subr.bf16.mxu0 0
      %2422 = vmatpush1.bf16.msra.mxu0 0
      %2423 = vmatprep.subr.bf16.mxu0 0
      %2424 = vmatpush1.bf16.msra.mxu0 0
      %2425 = vmatprep.subr.bf16.mxu0 0
      %2426 = vmatpush1.bf16.msra.mxu0 0
      %2427 = vmatprep.subr.bf16.mxu0 0
      %2428 = vmatpush1.bf16.msra.mxu0 %v2410
      %2429 = vmatprep.subr.bf16.mxu0 0
      %2430 = vmatpush1.bf16.msra.mxu0 %v2409
      %2431 = vmatprep.subr.bf16.mxu0 0
      %2432 = vmatpush1.bf16.msra.mxu0 %v2408
      %2433 = vmatprep.subr.bf16.mxu0 0
      %2434 = vmatpush2.bf16.msra.mxu0 0
      %2435 = vmatprep.subr.bf16.mxu0 0
      %2436 = vmatpush2.bf16.msra.mxu0 0
      %2437 = vmatprep.subr.bf16.mxu0 0
      %2438 = vmatpush2.bf16.msra.mxu0 0
      %2439 = vmatprep.subr.bf16.mxu0 0
      %2440 = vmatpush2.bf16.msra.mxu0 0
      %2441 = vmatprep.subr.bf16.mxu0 0
      %2442 = vmatpush2.bf16.msra.mxu0 0
      %2443 = vmatprep.subr.bf16.mxu0 0
      %2444 = vmatpush2.bf16.msra.mxu0 0
      %2445 = vmatprep.subr.bf16.mxu0 0
      %2446 = vmatpush2.bf16.msra.mxu0 0
      %2447 = vmatprep.subr.bf16.mxu0 0
      %2448 = vmatpush2.bf16.msra.mxu0 0
      %2449 = vmatprep.mubr.bf16.mxu0 0
      %2450 = vmatmul.mubr.bf16.gmra.mxu0 %v2415
      %v2451 = vpop.f32.mrf.mxu0
      %v2452 = vadd.f32 %v2380, %v2451
      %v2453 = vpop.f32.mrf.mxu0
      %v2454 = vpop.f32.mrf.mxu0
      %v2455 = vadd.f32 %v2383, %v2454
      %v2456 = vpop.f32.mrf.mxu0
      %2457 = vdwg.mxu0
      %v2458 = vld [vmem:[#allocation2] sm:$0xee]
      %v2459 = vld [vmem:[%s694] sm:$0xf]
      %v2460 = vld [vmem:[%s694 + $0x4] sm:$0xf]
      %v2461 = vld [vmem:[%s694 + $0x8] sm:$0xf]
      %v2462 = vld [vmem:[%s694 + $0xc] sm:$0xf]
      %v2463 = vld [vmem:[%s694 + $0x10] sm:$0xf]
      %v2464 = vld [vmem:[%s694 + $0x14] sm:$0xf]
      %v2466 = vunpack.c.l.b16 %v2458
      %v2467 = vunpack.c.h.b16 %v2458
      %v2468 = vpack.c.b16 %v2300, %v2466
      %v2469 = vpack.c.b16 %v2301, %v2467
      %v2470 = vrot.slane %v2468, 1
      %v2471 = vrot.slane %v2469, 1
      %2472 = vrot.lane.b32.xlu0 %v2470, 16
      %v2473 = vpop.permute.xlu0 %2472
      %2474 = vrot.lane.b32.xlu0 %v2471, 16
      %v2475 = vpop.permute.xlu0 %2474
      %v2476 = vsel %vm2322, %v2473, %v2475
      %v2483 = vunpack.c.l.b16 %v2459
      %v2484 = vunpack.c.l.b16 %v2460
      %v2485 = vunpack.c.l.b16 %v2461
      %v2486 = vunpack.c.l.b16 %v2462
      %v2487 = vunpack.c.l.b16 %v2463
      %v2488 = vunpack.c.l.b16 %v2464
      %v2489 = vpack.c.b16 %v2484, %v2483
      %v2490 = vpack.c.b16 %v2486, %v2485
      %v2491 = vpack.c.b16 %v2488, %v2487
      %v2496 = vsel %vm284, %v2476, 0
      %2498 = vmatprep.subr.bf16.mxu0 0
      %2499 = vmatpush1.bf16.msra.mxu0 0
      %2500 = vmatprep.subr.bf16.mxu0 0
      %2501 = vmatpush1.bf16.msra.mxu0 0
      %2502 = vmatprep.subr.bf16.mxu0 0
      %2503 = vmatpush1.bf16.msra.mxu0 0
      %2504 = vmatprep.subr.bf16.mxu0 0
      %2505 = vmatpush1.bf16.msra.mxu0 0
      %2506 = vmatprep.subr.bf16.mxu0 0
      %2507 = vmatpush1.bf16.msra.mxu0 0
      %2508 = vmatprep.subr.bf16.mxu0 0
      %2509 = vmatpush1.bf16.msra.mxu0 %v2491
      %2510 = vmatprep.subr.bf16.mxu0 0
      %2511 = vmatpush1.bf16.msra.mxu0 %v2490
      %2512 = vmatprep.subr.bf16.mxu0 0
      %2513 = vmatpush1.bf16.msra.mxu0 %v2489
      %2514 = vmatprep.subr.bf16.mxu0 0
      %2515 = vmatpush2.bf16.msra.mxu0 0
      %2516 = vmatprep.subr.bf16.mxu0 0
      %2517 = vmatpush2.bf16.msra.mxu0 0
      %2518 = vmatprep.subr.bf16.mxu0 0
      %2519 = vmatpush2.bf16.msra.mxu0 0
      %2520 = vmatprep.subr.bf16.mxu0 0
      %2521 = vmatpush2.bf16.msra.mxu0 0
      %2522 = vmatprep.subr.bf16.mxu0 0
      %2523 = vmatpush2.bf16.msra.mxu0 0
      %2524 = vmatprep.subr.bf16.mxu0 0
      %2525 = vmatpush2.bf16.msra.mxu0 0
      %2526 = vmatprep.subr.bf16.mxu0 0
      %2527 = vmatpush2.bf16.msra.mxu0 0
      %2528 = vmatprep.subr.bf16.mxu0 0
      %2529 = vmatpush2.bf16.msra.mxu0 0
      %2530 = vmatprep.mubr.bf16.mxu0 0
      %2531 = vmatmul.mubr.bf16.gmra.mxu0 %v2496
      %v2532 = vpop.f32.mrf.mxu0
      %v2533 = vadd.f32 0.0, %v2532
      %v2534 = vpop.f32.mrf.mxu0
      %v2535 = vpop.f32.mrf.mxu0
      %v2536 = vadd.f32 0.0, %v2535
      %v2537 = vpop.f32.mrf.mxu0
      %2538 = vdwg.mxu0
      %v2539 = vadd.f32 %v2452, %v2533
      %v2540 = vadd.f32 %v2455, %v2536
      %v2541 = vld [vmem:[%s4] sm:$0x1]
      %v2543 = vlaneseq
      %v2544 = vshrl.u32 %v2543, 7
      %v2545 = vsub.s32 0, %v2544
      %v2546 = vrot.slane %v2541, %v2545
      %v2548 = vadd.f32 %v2539, %v2546
      %v2549 = vadd.f32 %v2540, %v2546
      %2550 = vst [vmem:[%s224 + $0x38] sm:$0xff] %v2548
      %2551 = vst [vmem:[%s224 + $0x98] sm:$0xf] %v2549
      %v2552 = vld [vmem:[#allocation2 + $0x4] sm:$0xf]
      %v2553 = vld [vmem:[#allocation2 + $0xc] sm:$0x3]
      %v2554 = vld [vmem:[%s3] sm:$0xf]
      %v2555 = vld [vmem:[%s3 + $0x4] sm:$0xf]
      %v2556 = vld [vmem:[%s3 + $0x8] sm:$0xf]
      %v2557 = vld [vmem:[%s3 + $0xc] sm:$0xf]
      %v2558 = vld [vmem:[%s3 + $0x10] sm:$0xf]
      %v2559 = vld [vmem:[%s3 + $0x14] sm:$0xf]
      %v2560 = vld [vmem:[#allocation2 + $0xc] sm:$0x7]
      %v2561 = vld [vmem:[%s547] sm:$0xf]
      %v2562 = vld [vmem:[%s547 + $0x4] sm:$0xf]
      %v2563 = vld [vmem:[%s547 + $0x8] sm:$0xf]
      %v2564 = vld [vmem:[%s547 + $0xc] sm:$0xf]
      %v2565 = vld [vmem:[%s547 + $0x10] sm:$0xf]
      %v2566 = vld [vmem:[%s547 + $0x14] sm:$0xf]
      %v2569 = vunpack.c.l.b16 %v2552
      %v2570 = vunpack.c.l.b16 %v2560
      %v2571 = vpack.c.b16 %v2570, %v2569
      %v2573 = vshrl.u32 %v2571, 16
      %v2575 = vshll.u32 %v2571, 16
      %v2577 = vrot.slane %v2575, 1
      %v2578 = vor.u32 %v2573, %v2577
      %v2585 = vunpack.c.l.b16 %v2561
      %v2586 = vunpack.c.l.b16 %v2562
      %v2587 = vunpack.c.l.b16 %v2563
      %v2588 = vunpack.c.l.b16 %v2564
      %v2589 = vunpack.c.l.b16 %v2565
      %v2590 = vunpack.c.l.b16 %v2566
      %v2591 = vpack.c.b16 %v2586, %v2585
      %v2592 = vpack.c.b16 %v2588, %v2587
      %v2593 = vpack.c.b16 %v2590, %v2589
      %v2598 = vsel %vm284, %v2578, 0
      %2600 = vmatprep.subr.bf16.mxu0 0
      %2601 = vmatpush1.bf16.msra.mxu0 0
      %2602 = vmatprep.subr.bf16.mxu0 0
      %2603 = vmatpush1.bf16.msra.mxu0 0
      %2604 = vmatprep.subr.bf16.mxu0 0
      %2605 = vmatpush1.bf16.msra.mxu0 0
      %2606 = vmatprep.subr.bf16.mxu0 0
      %2607 = vmatpush1.bf16.msra.mxu0 0
      %2608 = vmatprep.subr.bf16.mxu0 0
      %2609 = vmatpush1.bf16.msra.mxu0 0
      %2610 = vmatprep.subr.bf16.mxu0 0
      %2611 = vmatpush1.bf16.msra.mxu0 %v2593
      %2612 = vmatprep.subr.bf16.mxu0 0
      %2613 = vmatpush1.bf16.msra.mxu0 %v2592
      %2614 = vmatprep.subr.bf16.mxu0 0
      %2615 = vmatpush1.bf16.msra.mxu0 %v2591
      %2616 = vmatprep.subr.bf16.mxu0 0
      %2617 = vmatpush2.bf16.msra.mxu0 0
      %2618 = vmatprep.subr.bf16.mxu0 0
      %2619 = vmatpush2.bf16.msra.mxu0 0
      %2620 = vmatprep.subr.bf16.mxu0 0
      %2621 = vmatpush2.bf16.msra.mxu0 0
      %2622 = vmatprep.subr.bf16.mxu0 0
      %2623 = vmatpush2.bf16.msra.mxu0 0
      %2624 = vmatprep.subr.bf16.mxu0 0
      %2625 = vmatpush2.bf16.msra.mxu0 0
      %2626 = vmatprep.subr.bf16.mxu0 0
      %2627 = vmatpush2.bf16.msra.mxu0 0
      %2628 = vmatprep.subr.bf16.mxu0 0
      %2629 = vmatpush2.bf16.msra.mxu0 0
      %2630 = vmatprep.subr.bf16.mxu0 0
      %2631 = vmatpush2.bf16.msra.mxu0 0
      %2632 = vmatprep.mubr.bf16.mxu0 0
      %2633 = vmatmul.mubr.bf16.gmra.mxu0 %v2598
      %v2634 = vpop.f32.mrf.mxu0
      %v2635 = vadd.f32 0.0, %v2634
      %v2636 = vpop.f32.mrf.mxu0
      %v2637 = vpop.f32.mrf.mxu0
      %v2638 = vadd.f32 0.0, %v2637
      %v2639 = vpop.f32.mrf.mxu0
      %2640 = vdwg.mxu0
      %v2642 = vunpack.c.l.b16 %v2553
      %v2643 = vpack.c.b16 %v2642, %v2569
      %v2650 = vunpack.c.l.b16 %v2554
      %v2651 = vunpack.c.l.b16 %v2555
      %v2652 = vunpack.c.l.b16 %v2556
      %v2653 = vunpack.c.l.b16 %v2557
      %v2654 = vunpack.c.l.b16 %v2558
      %v2655 = vunpack.c.l.b16 %v2559
      %v2656 = vpack.c.b16 %v2651, %v2650
      %v2657 = vpack.c.b16 %v2653, %v2652
      %v2658 = vpack.c.b16 %v2655, %v2654
      %v2663 = vsel %vm284, %v2643, 0
      %2665 = vmatprep.subr.bf16.mxu0 0
      %2666 = vmatpush1.bf16.msra.mxu0 0
      %2667 = vmatprep.subr.bf16.mxu0 0
      %2668 = vmatpush1.bf16.msra.mxu0 0
      %2669 = vmatprep.subr.bf16.mxu0 0
      %2670 = vmatpush1.bf16.msra.mxu0 0
      %2671 = vmatprep.subr.bf16.mxu0 0
      %2672 = vmatpush1.bf16.msra.mxu0 0
      %2673 = vmatprep.subr.bf16.mxu0 0
      %2674 = vmatpush1.bf16.msra.mxu0 0
      %2675 = vmatprep.subr.bf16.mxu0 0
      %2676 = vmatpush1.bf16.msra.mxu0 %v2658
      %2677 = vmatprep.subr.bf16.mxu0 0
      %2678 = vmatpush1.bf16.msra.mxu0 %v2657
      %2679 = vmatprep.subr.bf16.mxu0 0
      %2680 = vmatpush1.bf16.msra.mxu0 %v2656
      %2681 = vmatprep.subr.bf16.mxu0 0
      %2682 = vmatpush2.bf16.msra.mxu0 0
      %2683 = vmatprep.subr.bf16.mxu0 0
      %2684 = vmatpush2.bf16.msra.mxu0 0
      %2685 = vmatprep.subr.bf16.mxu0 0
      %2686 = vmatpush2.bf16.msra.mxu0 0
      %2687 = vmatprep.subr.bf16.mxu0 0
      %2688 = vmatpush2.bf16.msra.mxu0 0
      %2689 = vmatprep.subr.bf16.mxu0 0
      %2690 = vmatpush2.bf16.msra.mxu0 0
      %2691 = vmatprep.subr.bf16.mxu0 0
      %2692 = vmatpush2.bf16.msra.mxu0 0
      %2693 = vmatprep.subr.bf16.mxu0 0
      %2694 = vmatpush2.bf16.msra.mxu0 0
      %2695 = vmatprep.subr.bf16.mxu0 0
      %2696 = vmatpush2.bf16.msra.mxu0 0
      %2697 = vmatprep.mubr.bf16.mxu0 0
      %2698 = vmatmul.mubr.bf16.gmra.mxu0 %v2663
      %v2699 = vpop.f32.mrf.mxu0
      %v2700 = vadd.f32 %v2635, %v2699
      %v2701 = vpop.f32.mrf.mxu0
      %v2702 = vpop.f32.mrf.mxu0
      %v2703 = vadd.f32 %v2638, %v2702
      %v2704 = vpop.f32.mrf.mxu0
      %2705 = vdwg.mxu0
      %v2706 = vld [vmem:[#allocation2 + $0x4] sm:$0xe]
      %v2707 = vld [vmem:[%s694] sm:$0xf]
      %v2708 = vld [vmem:[%s694 + $0x4] sm:$0xf]
      %v2709 = vld [vmem:[%s694 + $0x8] sm:$0xf]
      %v2710 = vld [vmem:[%s694 + $0xc] sm:$0xf]
      %v2711 = vld [vmem:[%s694 + $0x10] sm:$0xf]
      %v2712 = vld [vmem:[%s694 + $0x14] sm:$0xf]
      %v2714 = vunpack.c.l.b16 %v2706
      %v2715 = vpack.c.b16 %v2570, %v2714
      %v2716 = vrot.slane %v2715, 1
      %v2723 = vunpack.c.l.b16 %v2707
      %v2724 = vunpack.c.l.b16 %v2708
      %v2725 = vunpack.c.l.b16 %v2709
      %v2726 = vunpack.c.l.b16 %v2710
      %v2727 = vunpack.c.l.b16 %v2711
      %v2728 = vunpack.c.l.b16 %v2712
      %v2729 = vpack.c.b16 %v2724, %v2723
      %v2730 = vpack.c.b16 %v2726, %v2725
      %v2731 = vpack.c.b16 %v2728, %v2727
      %v2736 = vsel %vm284, %v2716, 0
      %2738 = vmatprep.subr.bf16.mxu0 0
      %2739 = vmatpush1.bf16.msra.mxu0 0
      %2740 = vmatprep.subr.bf16.mxu0 0
      %2741 = vmatpush1.bf16.msra.mxu0 0
      %2742 = vmatprep.subr.bf16.mxu0 0
      %2743 = vmatpush1.bf16.msra.mxu0 0
      %2744 = vmatprep.subr.bf16.mxu0 0
      %2745 = vmatpush1.bf16.msra.mxu0 0
      %2746 = vmatprep.subr.bf16.mxu0 0
      %2747 = vmatpush1.bf16.msra.mxu0 0
      %2748 = vmatprep.subr.bf16.mxu0 0
      %2749 = vmatpush1.bf16.msra.mxu0 %v2731
      %2750 = vmatprep.subr.bf16.mxu0 0
      %2751 = vmatpush1.bf16.msra.mxu0 %v2730
      %2752 = vmatprep.subr.bf16.mxu0 0
      %2753 = vmatpush1.bf16.msra.mxu0 %v2729
      %2754 = vmatprep.subr.bf16.mxu0 0
      %2755 = vmatpush2.bf16.msra.mxu0 0
      %2756 = vmatprep.subr.bf16.mxu0 0
      %2757 = vmatpush2.bf16.msra.mxu0 0
      %2758 = vmatprep.subr.bf16.mxu0 0
      %2759 = vmatpush2.bf16.msra.mxu0 0
      %2760 = vmatprep.subr.bf16.mxu0 0
      %2761 = vmatpush2.bf16.msra.mxu0 0
      %2762 = vmatprep.subr.bf16.mxu0 0
      %2763 = vmatpush2.bf16.msra.mxu0 0
      %2764 = vmatprep.subr.bf16.mxu0 0
      %2765 = vmatpush2.bf16.msra.mxu0 0
      %2766 = vmatprep.subr.bf16.mxu0 0
      %2767 = vmatpush2.bf16.msra.mxu0 0
      %2768 = vmatprep.subr.bf16.mxu0 0
      %2769 = vmatpush2.bf16.msra.mxu0 0
      %2770 = vmatprep.mubr.bf16.mxu0 0
      %2771 = vmatmul.mubr.bf16.gmra.mxu0 %v2736
      %v2772 = vpop.f32.mrf.mxu0
      %v2773 = vadd.f32 0.0, %v2772
      %v2774 = vpop.f32.mrf.mxu0
      %v2775 = vpop.f32.mrf.mxu0
      %v2776 = vadd.f32 0.0, %v2775
      %v2777 = vpop.f32.mrf.mxu0
      %2778 = vdwg.mxu0
      %v2779 = vadd.f32 %v2700, %v2773
      %v2780 = vadd.f32 %v2703, %v2776
      %v2781 = vld [vmem:[%s4] sm:$0x1]
      %v2783 = vlaneseq
      %v2784 = vshrl.u32 %v2783, 7
      %v2785 = vsub.s32 0, %v2784
      %v2786 = vrot.slane %v2781, %v2785
      %v2788 = vadd.f32 %v2779, %v2786
      %v2789 = vadd.f32 %v2780, %v2786
      %2790 = vst [vmem:[%s224 + $0x40] sm:$0xff] %v2788
      %2791 = vst [vmem:[%s224 + $0xa0] sm:$0xf] %v2789
      %v2792 = vld [vmem:[#allocation2 + $0x4] sm:$0xf]
      %v2793 = vld [vmem:[#allocation2 + $0xc] sm:$0x3]
      %v2794 = vld [vmem:[%s3] sm:$0xf]
      %v2795 = vld [vmem:[%s3 + $0x4] sm:$0xf]
      %v2796 = vld [vmem:[%s3 + $0x8] sm:$0xf]
      %v2797 = vld [vmem:[%s3 + $0xc] sm:$0xf]
      %v2798 = vld [vmem:[%s3 + $0x10] sm:$0xf]
      %v2799 = vld [vmem:[%s3 + $0x14] sm:$0xf]
      %v2800 = vld [vmem:[#allocation2 + $0xc] sm:$0x7]
      %v2801 = vld [vmem:[%s547] sm:$0xf]
      %v2802 = vld [vmem:[%s547 + $0x4] sm:$0xf]
      %v2803 = vld [vmem:[%s547 + $0x8] sm:$0xf]
      %v2804 = vld [vmem:[%s547 + $0xc] sm:$0xf]
      %v2805 = vld [vmem:[%s547 + $0x10] sm:$0xf]
      %v2806 = vld [vmem:[%s547 + $0x14] sm:$0xf]
      %v2809 = vunpack.c.l.b16 %v2792
      %v2810 = vunpack.c.l.b16 %v2800
      %v2811 = vpack.c.b16 %v2810, %v2809
      %v2813 = vshrl.u32 %v2811, 16
      %v2815 = vshll.u32 %v2811, 16
      %v2817 = vrot.slane %v2815, 1
      %v2818 = vor.u32 %v2813, %v2817
      %2819 = vrot.lane.b32.xlu0 %v2818, 112
      %v2820 = vpop.permute.xlu0 %2819
      %v2827 = vunpack.c.l.b16 %v2801
      %v2828 = vunpack.c.l.b16 %v2802
      %v2829 = vunpack.c.l.b16 %v2803
      %v2830 = vunpack.c.l.b16 %v2804
      %v2831 = vunpack.c.l.b16 %v2805
      %v2832 = vunpack.c.l.b16 %v2806
      %v2833 = vpack.c.b16 %v2828, %v2827
      %v2834 = vpack.c.b16 %v2830, %v2829
      %v2835 = vpack.c.b16 %v2832, %v2831
      %v2840 = vsel %vm284, %v2820, 0
      %2842 = vmatprep.subr.bf16.mxu0 0
      %2843 = vmatpush1.bf16.msra.mxu0 0
      %2844 = vmatprep.subr.bf16.mxu0 0
      %2845 = vmatpush1.bf16.msra.mxu0 0
      %2846 = vmatprep.subr.bf16.mxu0 0
      %2847 = vmatpush1.bf16.msra.mxu0 0
      %2848 = vmatprep.subr.bf16.mxu0 0
      %2849 = vmatpush1.bf16.msra.mxu0 0
      %2850 = vmatprep.subr.bf16.mxu0 0
      %2851 = vmatpush1.bf16.msra.mxu0 0
      %2852 = vmatprep.subr.bf16.mxu0 0
      %2853 = vmatpush1.bf16.msra.mxu0 %v2835
      %2854 = vmatprep.subr.bf16.mxu0 0
      %2855 = vmatpush1.bf16.msra.mxu0 %v2834
      %2856 = vmatprep.subr.bf16.mxu0 0
      %2857 = vmatpush1.bf16.msra.mxu0 %v2833
      %2858 = vmatprep.subr.bf16.mxu0 0
      %2859 = vmatpush2.bf16.msra.mxu0 0
      %2860 = vmatprep.subr.bf16.mxu0 0
      %2861 = vmatpush2.bf16.msra.mxu0 0
      %2862 = vmatprep.subr.bf16.mxu0 0
      %2863 = vmatpush2.bf16.msra.mxu0 0
      %2864 = vmatprep.subr.bf16.mxu0 0
      %2865 = vmatpush2.bf16.msra.mxu0 0
      %2866 = vmatprep.subr.bf16.mxu0 0
      %2867 = vmatpush2.bf16.msra.mxu0 0
      %2868 = vmatprep.subr.bf16.mxu0 0
      %2869 = vmatpush2.bf16.msra.mxu0 0
      %2870 = vmatprep.subr.bf16.mxu0 0
      %2871 = vmatpush2.bf16.msra.mxu0 0
      %2872 = vmatprep.subr.bf16.mxu0 0
      %2873 = vmatpush2.bf16.msra.mxu0 0
      %2874 = vmatprep.mubr.bf16.mxu0 0
      %2875 = vmatmul.mubr.bf16.gmra.mxu0 %v2840
      %v2876 = vpop.f32.mrf.mxu0
      %v2877 = vadd.f32 0.0, %v2876
      %v2878 = vpop.f32.mrf.mxu0
      %v2879 = vpop.f32.mrf.mxu0
      %v2880 = vadd.f32 0.0, %v2879
      %v2881 = vpop.f32.mrf.mxu0
      %2882 = vdwg.mxu0
      %v2884 = vunpack.c.l.b16 %v2793
      %v2885 = vpack.c.b16 %v2884, %v2809
      %2886 = vrot.lane.b32.xlu0 %v2885, 112
      %v2887 = vpop.permute.xlu0 %2886
      %v2894 = vunpack.c.l.b16 %v2794
      %v2895 = vunpack.c.l.b16 %v2795
      %v2896 = vunpack.c.l.b16 %v2796
      %v2897 = vunpack.c.l.b16 %v2797
      %v2898 = vunpack.c.l.b16 %v2798
      %v2899 = vunpack.c.l.b16 %v2799
      %v2900 = vpack.c.b16 %v2895, %v2894
      %v2901 = vpack.c.b16 %v2897, %v2896
      %v2902 = vpack.c.b16 %v2899, %v2898
      %v2907 = vsel %vm284, %v2887, 0
      %2909 = vmatprep.subr.bf16.mxu0 0
      %2910 = vmatpush1.bf16.msra.mxu0 0
      %2911 = vmatprep.subr.bf16.mxu0 0
      %2912 = vmatpush1.bf16.msra.mxu0 0
      %2913 = vmatprep.subr.bf16.mxu0 0
      %2914 = vmatpush1.bf16.msra.mxu0 0
      %2915 = vmatprep.subr.bf16.mxu0 0
      %2916 = vmatpush1.bf16.msra.mxu0 0
      %2917 = vmatprep.subr.bf16.mxu0 0
      %2918 = vmatpush1.bf16.msra.mxu0 0
      %2919 = vmatprep.subr.bf16.mxu0 0
      %2920 = vmatpush1.bf16.msra.mxu0 %v2902
      %2921 = vmatprep.subr.bf16.mxu0 0
      %2922 = vmatpush1.bf16.msra.mxu0 %v2901
      %2923 = vmatprep.subr.bf16.mxu0 0
      %2924 = vmatpush1.bf16.msra.mxu0 %v2900
      %2925 = vmatprep.subr.bf16.mxu0 0
      %2926 = vmatpush2.bf16.msra.mxu0 0
      %2927 = vmatprep.subr.bf16.mxu0 0
      %2928 = vmatpush2.bf16.msra.mxu0 0
      %2929 = vmatprep.subr.bf16.mxu0 0
      %2930 = vmatpush2.bf16.msra.mxu0 0
      %2931 = vmatprep.subr.bf16.mxu0 0
      %2932 = vmatpush2.bf16.msra.mxu0 0
      %2933 = vmatprep.subr.bf16.mxu0 0
      %2934 = vmatpush2.bf16.msra.mxu0 0
      %2935 = vmatprep.subr.bf16.mxu0 0
      %2936 = vmatpush2.bf16.msra.mxu0 0
      %2937 = vmatprep.subr.bf16.mxu0 0
      %2938 = vmatpush2.bf16.msra.mxu0 0
      %2939 = vmatprep.subr.bf16.mxu0 0
      %2940 = vmatpush2.bf16.msra.mxu0 0
      %2941 = vmatprep.mubr.bf16.mxu0 0
      %2942 = vmatmul.mubr.bf16.gmra.mxu0 %v2907
      %v2943 = vpop.f32.mrf.mxu0
      %v2944 = vadd.f32 %v2877, %v2943
      %v2945 = vpop.f32.mrf.mxu0
      %v2946 = vpop.f32.mrf.mxu0
      %v2947 = vadd.f32 %v2880, %v2946
      %v2948 = vpop.f32.mrf.mxu0
      %2949 = vdwg.mxu0
      %v2950 = vld [vmem:[#allocation2 + $0x4] sm:$0xe]
      %v2951 = vld [vmem:[%s694] sm:$0xf]
      %v2952 = vld [vmem:[%s694 + $0x4] sm:$0xf]
      %v2953 = vld [vmem:[%s694 + $0x8] sm:$0xf]
      %v2954 = vld [vmem:[%s694 + $0xc] sm:$0xf]
      %v2955 = vld [vmem:[%s694 + $0x10] sm:$0xf]
      %v2956 = vld [vmem:[%s694 + $0x14] sm:$0xf]
      %v2958 = vunpack.c.l.b16 %v2950
      %v2959 = vpack.c.b16 %v2810, %v2958
      %v2960 = vrot.slane %v2959, 1
      %2961 = vrot.lane.b32.xlu0 %v2960, 112
      %v2962 = vpop.permute.xlu0 %2961
      %v2969 = vunpack.c.l.b16 %v2951
      %v2970 = vunpack.c.l.b16 %v2952
      %v2971 = vunpack.c.l.b16 %v2953
      %v2972 = vunpack.c.l.b16 %v2954
      %v2973 = vunpack.c.l.b16 %v2955
      %v2974 = vunpack.c.l.b16 %v2956
      %v2975 = vpack.c.b16 %v2970, %v2969
      %v2976 = vpack.c.b16 %v2972, %v2971
      %v2977 = vpack.c.b16 %v2974, %v2973
      %v2982 = vsel %vm284, %v2962, 0
      %2984 = vmatprep.subr.bf16.mxu0 0
      %2985 = vmatpush1.bf16.msra.mxu0 0
      %2986 = vmatprep.subr.bf16.mxu0 0
      %2987 = vmatpush1.bf16.msra.mxu0 0
      %2988 = vmatprep.subr.bf16.mxu0 0
      %2989 = vmatpush1.bf16.msra.mxu0 0
      %2990 = vmatprep.subr.bf16.mxu0 0
      %2991 = vmatpush1.bf16.msra.mxu0 0
      %2992 = vmatprep.subr.bf16.mxu0 0
      %2993 = vmatpush1.bf16.msra.mxu0 0
      %2994 = vmatprep.subr.bf16.mxu0 0
      %2995 = vmatpush1.bf16.msra.mxu0 %v2977
      %2996 = vmatprep.subr.bf16.mxu0 0
      %2997 = vmatpush1.bf16.msra.mxu0 %v2976
      %2998 = vmatprep.subr.bf16.mxu0 0
      %2999 = vmatpush1.bf16.msra.mxu0 %v2975
      %3000 = vmatprep.subr.bf16.mxu0 0
      %3001 = vmatpush2.bf16.msra.mxu0 0
      %3002 = vmatprep.subr.bf16.mxu0 0
      %3003 = vmatpush2.bf16.msra.mxu0 0
      %3004 = vmatprep.subr.bf16.mxu0 0
      %3005 = vmatpush2.bf16.msra.mxu0 0
      %3006 = vmatprep.subr.bf16.mxu0 0
      %3007 = vmatpush2.bf16.msra.mxu0 0
      %3008 = vmatprep.subr.bf16.mxu0 0
      %3009 = vmatpush2.bf16.msra.mxu0 0
      %3010 = vmatprep.subr.bf16.mxu0 0
      %3011 = vmatpush2.bf16.msra.mxu0 0
      %3012 = vmatprep.subr.bf16.mxu0 0
      %3013 = vmatpush2.bf16.msra.mxu0 0
      %3014 = vmatprep.subr.bf16.mxu0 0
      %3015 = vmatpush2.bf16.msra.mxu0 0
      %3016 = vmatprep.mubr.bf16.mxu0 0
      %3017 = vmatmul.mubr.bf16.gmra.mxu0 %v2982
      %v3018 = vpop.f32.mrf.mxu0
      %v3019 = vadd.f32 0.0, %v3018
      %v3020 = vpop.f32.mrf.mxu0
      %v3021 = vpop.f32.mrf.mxu0
      %v3022 = vadd.f32 0.0, %v3021
      %v3023 = vpop.f32.mrf.mxu0
      %3024 = vdwg.mxu0
      %v3025 = vadd.f32 %v2944, %v3019
      %v3026 = vadd.f32 %v2947, %v3022
      %v3027 = vld [vmem:[%s4] sm:$0x1]
      %v3029 = vlaneseq
      %v3030 = vshrl.u32 %v3029, 7
      %v3031 = vsub.s32 0, %v3030
      %v3032 = vrot.slane %v3027, %v3031
      %v3034 = vadd.f32 %v3025, %v3032
      %v3035 = vadd.f32 %v3026, %v3032
      %3036 = vst [vmem:[%s224 + $0x48] sm:$0xff] %v3034
      %3037 = vst [vmem:[%s224 + $0xa8] sm:$0xf] %v3035
      %v3038 = vld [vmem:[#allocation2 + $0x4] sm:$0xf]
      %v3039 = vld [vmem:[#allocation2 + $0xc] sm:$0x3]
      %v3040 = vld [vmem:[%s3] sm:$0xf]
      %v3041 = vld [vmem:[%s3 + $0x4] sm:$0xf]
      %v3042 = vld [vmem:[%s3 + $0x8] sm:$0xf]
      %v3043 = vld [vmem:[%s3 + $0xc] sm:$0xf]
      %v3044 = vld [vmem:[%s3 + $0x10] sm:$0xf]
      %v3045 = vld [vmem:[%s3 + $0x14] sm:$0xf]
      %v3046 = vld [vmem:[#allocation2 + $0xc] sm:$0x7]
      %v3047 = vld [vmem:[%s547] sm:$0xf]
      %v3048 = vld [vmem:[%s547 + $0x4] sm:$0xf]
      %v3049 = vld [vmem:[%s547 + $0x8] sm:$0xf]
      %v3050 = vld [vmem:[%s547 + $0xc] sm:$0xf]
      %v3051 = vld [vmem:[%s547 + $0x10] sm:$0xf]
      %v3052 = vld [vmem:[%s547 + $0x14] sm:$0xf]
      %v3055 = vunpack.c.l.b16 %v3038
      %v3056 = vunpack.c.l.b16 %v3046
      %v3057 = vpack.c.b16 %v3056, %v3055
      %v3059 = vshrl.u32 %v3057, 16
      %v3061 = vshll.u32 %v3057, 16
      %v3063 = vrot.slane %v3061, 1
      %v3064 = vor.u32 %v3059, %v3063
      %3065 = vrot.lane.b32.xlu0 %v3064, 96
      %v3066 = vpop.permute.xlu0 %3065
      %v3073 = vunpack.c.l.b16 %v3047
      %v3074 = vunpack.c.l.b16 %v3048
      %v3075 = vunpack.c.l.b16 %v3049
      %v3076 = vunpack.c.l.b16 %v3050
      %v3077 = vunpack.c.l.b16 %v3051
      %v3078 = vunpack.c.l.b16 %v3052
      %v3079 = vpack.c.b16 %v3074, %v3073
      %v3080 = vpack.c.b16 %v3076, %v3075
      %v3081 = vpack.c.b16 %v3078, %v3077
      %v3086 = vsel %vm284, %v3066, 0
      %3088 = vmatprep.subr.bf16.mxu0 0
      %3089 = vmatpush1.bf16.msra.mxu0 0
      %3090 = vmatprep.subr.bf16.mxu0 0
      %3091 = vmatpush1.bf16.msra.mxu0 0
      %3092 = vmatprep.subr.bf16.mxu0 0
      %3093 = vmatpush1.bf16.msra.mxu0 0
      %3094 = vmatprep.subr.bf16.mxu0 0
      %3095 = vmatpush1.bf16.msra.mxu0 0
      %3096 = vmatprep.subr.bf16.mxu0 0
      %3097 = vmatpush1.bf16.msra.mxu0 0
      %3098 = vmatprep.subr.bf16.mxu0 0
      %3099 = vmatpush1.bf16.msra.mxu0 %v3081
      %3100 = vmatprep.subr.bf16.mxu0 0
      %3101 = vmatpush1.bf16.msra.mxu0 %v3080
      %3102 = vmatprep.subr.bf16.mxu0 0
      %3103 = vmatpush1.bf16.msra.mxu0 %v3079
      %3104 = vmatprep.subr.bf16.mxu0 0
      %3105 = vmatpush2.bf16.msra.mxu0 0
      %3106 = vmatprep.subr.bf16.mxu0 0
      %3107 = vmatpush2.bf16.msra.mxu0 0
      %3108 = vmatprep.subr.bf16.mxu0 0
      %3109 = vmatpush2.bf16.msra.mxu0 0
      %3110 = vmatprep.subr.bf16.mxu0 0
      %3111 = vmatpush2.bf16.msra.mxu0 0
      %3112 = vmatprep.subr.bf16.mxu0 0
      %3113 = vmatpush2.bf16.msra.mxu0 0
      %3114 = vmatprep.subr.bf16.mxu0 0
      %3115 = vmatpush2.bf16.msra.mxu0 0
      %3116 = vmatprep.subr.bf16.mxu0 0
      %3117 = vmatpush2.bf16.msra.mxu0 0
      %3118 = vmatprep.subr.bf16.mxu0 0
      %3119 = vmatpush2.bf16.msra.mxu0 0
      %3120 = vmatprep.mubr.bf16.mxu0 0
      %3121 = vmatmul.mubr.bf16.gmra.mxu0 %v3086
      %v3122 = vpop.f32.mrf.mxu0
      %v3123 = vadd.f32 0.0, %v3122
      %v3124 = vpop.f32.mrf.mxu0
      %v3125 = vpop.f32.mrf.mxu0
      %v3126 = vadd.f32 0.0, %v3125
      %v3127 = vpop.f32.mrf.mxu0
      %3128 = vdwg.mxu0
      %v3130 = vunpack.c.l.b16 %v3039
      %v3131 = vpack.c.b16 %v3130, %v3055
      %3132 = vrot.lane.b32.xlu0 %v3131, 96
      %v3133 = vpop.permute.xlu0 %3132
      %v3140 = vunpack.c.l.b16 %v3040
      %v3141 = vunpack.c.l.b16 %v3041
      %v3142 = vunpack.c.l.b16 %v3042
      %v3143 = vunpack.c.l.b16 %v3043
      %v3144 = vunpack.c.l.b16 %v3044
      %v3145 = vunpack.c.l.b16 %v3045
      %v3146 = vpack.c.b16 %v3141, %v3140
      %v3147 = vpack.c.b16 %v3143, %v3142
      %v3148 = vpack.c.b16 %v3145, %v3144
      %v3153 = vsel %vm284, %v3133, 0
      %3155 = vmatprep.subr.bf16.mxu0 0
      %3156 = vmatpush1.bf16.msra.mxu0 0
      %3157 = vmatprep.subr.bf16.mxu0 0
      %3158 = vmatpush1.bf16.msra.mxu0 0
      %3159 = vmatprep.subr.bf16.mxu0 0
      %3160 = vmatpush1.bf16.msra.mxu0 0
      %3161 = vmatprep.subr.bf16.mxu0 0
      %3162 = vmatpush1.bf16.msra.mxu0 0
      %3163 = vmatprep.subr.bf16.mxu0 0
      %3164 = vmatpush1.bf16.msra.mxu0 0
      %3165 = vmatprep.subr.bf16.mxu0 0
      %3166 = vmatpush1.bf16.msra.mxu0 %v3148
      %3167 = vmatprep.subr.bf16.mxu0 0
      %3168 = vmatpush1.bf16.msra.mxu0 %v3147
      %3169 = vmatprep.subr.bf16.mxu0 0
      %3170 = vmatpush1.bf16.msra.mxu0 %v3146
      %3171 = vmatprep.subr.bf16.mxu0 0
      %3172 = vmatpush2.bf16.msra.mxu0 0
      %3173 = vmatprep.subr.bf16.mxu0 0
      %3174 = vmatpush2.bf16.msra.mxu0 0
      %3175 = vmatprep.subr.bf16.mxu0 0
      %3176 = vmatpush2.bf16.msra.mxu0 0
      %3177 = vmatprep.subr.bf16.mxu0 0
      %3178 = vmatpush2.bf16.msra.mxu0 0
      %3179 = vmatprep.subr.bf16.mxu0 0
      %3180 = vmatpush2.bf16.msra.mxu0 0
      %3181 = vmatprep.subr.bf16.mxu0 0
      %3182 = vmatpush2.bf16.msra.mxu0 0
      %3183 = vmatprep.subr.bf16.mxu0 0
      %3184 = vmatpush2.bf16.msra.mxu0 0
      %3185 = vmatprep.subr.bf16.mxu0 0
      %3186 = vmatpush2.bf16.msra.mxu0 0
      %3187 = vmatprep.mubr.bf16.mxu0 0
      %3188 = vmatmul.mubr.bf16.gmra.mxu0 %v3153
      %v3189 = vpop.f32.mrf.mxu0
      %v3190 = vadd.f32 %v3123, %v3189
      %v3191 = vpop.f32.mrf.mxu0
      %v3192 = vpop.f32.mrf.mxu0
      %v3193 = vadd.f32 %v3126, %v3192
      %v3194 = vpop.f32.mrf.mxu0
      %3195 = vdwg.mxu0
      %v3196 = vld [vmem:[#allocation2 + $0x4] sm:$0xe]
      %v3197 = vld [vmem:[%s694] sm:$0xf]
      %v3198 = vld [vmem:[%s694 + $0x4] sm:$0xf]
      %v3199 = vld [vmem:[%s694 + $0x8] sm:$0xf]
      %v3200 = vld [vmem:[%s694 + $0xc] sm:$0xf]
      %v3201 = vld [vmem:[%s694 + $0x10] sm:$0xf]
      %v3202 = vld [vmem:[%s694 + $0x14] sm:$0xf]
      %v3204 = vunpack.c.l.b16 %v3196
      %v3205 = vpack.c.b16 %v3056, %v3204
      %v3206 = vrot.slane %v3205, 1
      %3207 = vrot.lane.b32.xlu0 %v3206, 96
      %v3208 = vpop.permute.xlu0 %3207
      %v3215 = vunpack.c.l.b16 %v3197
      %v3216 = vunpack.c.l.b16 %v3198
      %v3217 = vunpack.c.l.b16 %v3199
      %v3218 = vunpack.c.l.b16 %v3200
      %v3219 = vunpack.c.l.b16 %v3201
      %v3220 = vunpack.c.l.b16 %v3202
      %v3221 = vpack.c.b16 %v3216, %v3215
      %v3222 = vpack.c.b16 %v3218, %v3217
      %v3223 = vpack.c.b16 %v3220, %v3219
      %v3228 = vsel %vm284, %v3208, 0
      %3230 = vmatprep.subr.bf16.mxu0 0
      %3231 = vmatpush1.bf16.msra.mxu0 0
      %3232 = vmatprep.subr.bf16.mxu0 0
      %3233 = vmatpush1.bf16.msra.mxu0 0
      %3234 = vmatprep.subr.bf16.mxu0 0
      %3235 = vmatpush1.bf16.msra.mxu0 0
      %3236 = vmatprep.subr.bf16.mxu0 0
      %3237 = vmatpush1.bf16.msra.mxu0 0
      %3238 = vmatprep.subr.bf16.mxu0 0
      %3239 = vmatpush1.bf16.msra.mxu0 0
      %3240 = vmatprep.subr.bf16.mxu0 0
      %3241 = vmatpush1.bf16.msra.mxu0 %v3223
      %3242 = vmatprep.subr.bf16.mxu0 0
      %3243 = vmatpush1.bf16.msra.mxu0 %v3222
      %3244 = vmatprep.subr.bf16.mxu0 0
      %3245 = vmatpush1.bf16.msra.mxu0 %v3221
      %3246 = vmatprep.subr.bf16.mxu0 0
      %3247 = vmatpush2.bf16.msra.mxu0 0
      %3248 = vmatprep.subr.bf16.mxu0 0
      %3249 = vmatpush2.bf16.msra.mxu0 0
      %3250 = vmatprep.subr.bf16.mxu0 0
      %3251 = vmatpush2.bf16.msra.mxu0 0
      %3252 = vmatprep.subr.bf16.mxu0 0
      %3253 = vmatpush2.bf16.msra.mxu0 0
      %3254 = vmatprep.subr.bf16.mxu0 0
      %3255 = vmatpush2.bf16.msra.mxu0 0
      %3256 = vmatprep.subr.bf16.mxu0 0
      %3257 = vmatpush2.bf16.msra.mxu0 0
      %3258 = vmatprep.subr.bf16.mxu0 0
      %3259 = vmatpush2.bf16.msra.mxu0 0
      %3260 = vmatprep.subr.bf16.mxu0 0
      %3261 = vmatpush2.bf16.msra.mxu0 0
      %3262 = vmatprep.mubr.bf16.mxu0 0
      %3263 = vmatmul.mubr.bf16.gmra.mxu0 %v3228
      %v3264 = vpop.f32.mrf.mxu0
      %v3265 = vadd.f32 0.0, %v3264
      %v3266 = vpop.f32.mrf.mxu0
      %v3267 = vpop.f32.mrf.mxu0
      %v3268 = vadd.f32 0.0, %v3267
      %v3269 = vpop.f32.mrf.mxu0
      %3270 = vdwg.mxu0
      %v3271 = vadd.f32 %v3190, %v3265
      %v3272 = vadd.f32 %v3193, %v3268
      %v3273 = vld [vmem:[%s4] sm:$0x1]
      %v3275 = vlaneseq
      %v3276 = vshrl.u32 %v3275, 7
      %v3277 = vsub.s32 0, %v3276
      %v3278 = vrot.slane %v3273, %v3277
      %v3280 = vadd.f32 %v3271, %v3278
      %v3281 = vadd.f32 %v3272, %v3278
      %3282 = vst [vmem:[%s224 + $0x50] sm:$0xff] %v3280
      %3283 = vst [vmem:[%s224 + $0xb0] sm:$0xf] %v3281
      %v3284 = vld [vmem:[#allocation2 + $0x4] sm:$0xf]
      %v3285 = vld [vmem:[#allocation2 + $0xc] sm:$0x3]
      %v3286 = vld [vmem:[%s3] sm:$0xf]
      %v3287 = vld [vmem:[%s3 + $0x4] sm:$0xf]
      %v3288 = vld [vmem:[%s3 + $0x8] sm:$0xf]
      %v3289 = vld [vmem:[%s3 + $0xc] sm:$0xf]
      %v3290 = vld [vmem:[%s3 + $0x10] sm:$0xf]
      %v3291 = vld [vmem:[%s3 + $0x14] sm:$0xf]
      %v3292 = vld [vmem:[#allocation2 + $0xc] sm:$0x7]
      %v3293 = vld [vmem:[%s547] sm:$0xf]
      %v3294 = vld [vmem:[%s547 + $0x4] sm:$0xf]
      %v3295 = vld [vmem:[%s547 + $0x8] sm:$0xf]
      %v3296 = vld [vmem:[%s547 + $0xc] sm:$0xf]
      %v3297 = vld [vmem:[%s547 + $0x10] sm:$0xf]
      %v3298 = vld [vmem:[%s547 + $0x14] sm:$0xf]
      %v3301 = vunpack.c.l.b16 %v3284
      %v3302 = vunpack.c.l.b16 %v3292
      %v3303 = vpack.c.b16 %v3302, %v3301
      %v3305 = vshrl.u32 %v3303, 16
      %v3307 = vshll.u32 %v3303, 16
      %v3309 = vrot.slane %v3307, 1
      %v3310 = vor.u32 %v3305, %v3309
      %3311 = vrot.lane.b32.xlu0 %v3310, 80
      %v3312 = vpop.permute.xlu0 %3311
      %v3319 = vunpack.c.l.b16 %v3293
      %v3320 = vunpack.c.l.b16 %v3294
      %v3321 = vunpack.c.l.b16 %v3295
      %v3322 = vunpack.c.l.b16 %v3296
      %v3323 = vunpack.c.l.b16 %v3297
      %v3324 = vunpack.c.l.b16 %v3298
      %v3325 = vpack.c.b16 %v3320, %v3319
      %v3326 = vpack.c.b16 %v3322, %v3321
      %v3327 = vpack.c.b16 %v3324, %v3323
      %v3332 = vsel %vm284, %v3312, 0
      %3334 = vmatprep.subr.bf16.mxu0 0
      %3335 = vmatpush1.bf16.msra.mxu0 0
      %3336 = vmatprep.subr.bf16.mxu0 0
      %3337 = vmatpush1.bf16.msra.mxu0 0
      %3338 = vmatprep.subr.bf16.mxu0 0
      %3339 = vmatpush1.bf16.msra.mxu0 0
      %3340 = vmatprep.subr.bf16.mxu0 0
      %3341 = vmatpush1.bf16.msra.mxu0 0
      %3342 = vmatprep.subr.bf16.mxu0 0
      %3343 = vmatpush1.bf16.msra.mxu0 0
      %3344 = vmatprep.subr.bf16.mxu0 0
      %3345 = vmatpush1.bf16.msra.mxu0 %v3327
      %3346 = vmatprep.subr.bf16.mxu0 0
      %3347 = vmatpush1.bf16.msra.mxu0 %v3326
      %3348 = vmatprep.subr.bf16.mxu0 0
      %3349 = vmatpush1.bf16.msra.mxu0 %v3325
      %3350 = vmatprep.subr.bf16.mxu0 0
      %3351 = vmatpush2.bf16.msra.mxu0 0
      %3352 = vmatprep.subr.bf16.mxu0 0
      %3353 = vmatpush2.bf16.msra.mxu0 0
      %3354 = vmatprep.subr.bf16.mxu0 0
      %3355 = vmatpush2.bf16.msra.mxu0 0
      %3356 = vmatprep.subr.bf16.mxu0 0
      %3357 = vmatpush2.bf16.msra.mxu0 0
      %3358 = vmatprep.subr.bf16.mxu0 0
      %3359 = vmatpush2.bf16.msra.mxu0 0
      %3360 = vmatprep.subr.bf16.mxu0 0
      %3361 = vmatpush2.bf16.msra.mxu0 0
      %3362 = vmatprep.subr.bf16.mxu0 0
      %3363 = vmatpush2.bf16.msra.mxu0 0
      %3364 = vmatprep.subr.bf16.mxu0 0
      %3365 = vmatpush2.bf16.msra.mxu0 0
      %3366 = vmatprep.mubr.bf16.mxu0 0
      %3367 = vmatmul.mubr.bf16.gmra.mxu0 %v3332
      %v3368 = vpop.f32.mrf.mxu0
      %v3369 = vadd.f32 0.0, %v3368
      %v3370 = vpop.f32.mrf.mxu0
      %v3371 = vpop.f32.mrf.mxu0
      %v3372 = vadd.f32 0.0, %v3371
      %v3373 = vpop.f32.mrf.mxu0
      %3374 = vdwg.mxu0
      %v3376 = vunpack.c.l.b16 %v3285
      %v3377 = vpack.c.b16 %v3376, %v3301
      %3378 = vrot.lane.b32.xlu0 %v3377, 80
      %v3379 = vpop.permute.xlu0 %3378
      %v3386 = vunpack.c.l.b16 %v3286
      %v3387 = vunpack.c.l.b16 %v3287
      %v3388 = vunpack.c.l.b16 %v3288
      %v3389 = vunpack.c.l.b16 %v3289
      %v3390 = vunpack.c.l.b16 %v3290
      %v3391 = vunpack.c.l.b16 %v3291
      %v3392 = vpack.c.b16 %v3387, %v3386
      %v3393 = vpack.c.b16 %v3389, %v3388
      %v3394 = vpack.c.b16 %v3391, %v3390
      %v3399 = vsel %vm284, %v3379, 0
      %3401 = vmatprep.subr.bf16.mxu0 0
      %3402 = vmatpush1.bf16.msra.mxu0 0
      %3403 = vmatprep.subr.bf16.mxu0 0
      %3404 = vmatpush1.bf16.msra.mxu0 0
      %3405 = vmatprep.subr.bf16.mxu0 0
      %3406 = vmatpush1.bf16.msra.mxu0 0
      %3407 = vmatprep.subr.bf16.mxu0 0
      %3408 = vmatpush1.bf16.msra.mxu0 0
      %3409 = vmatprep.subr.bf16.mxu0 0
      %3410 = vmatpush1.bf16.msra.mxu0 0
      %3411 = vmatprep.subr.bf16.mxu0 0
      %3412 = vmatpush1.bf16.msra.mxu0 %v3394
      %3413 = vmatprep.subr.bf16.mxu0 0
      %3414 = vmatpush1.bf16.msra.mxu0 %v3393
      %3415 = vmatprep.subr.bf16.mxu0 0
      %3416 = vmatpush1.bf16.msra.mxu0 %v3392
      %3417 = vmatprep.subr.bf16.mxu0 0
      %3418 = vmatpush2.bf16.msra.mxu0 0
      %3419 = vmatprep.subr.bf16.mxu0 0
      %3420 = vmatpush2.bf16.msra.mxu0 0
      %3421 = vmatprep.subr.bf16.mxu0 0
      %3422 = vmatpush2.bf16.msra.mxu0 0
      %3423 = vmatprep.subr.bf16.mxu0 0
      %3424 = vmatpush2.bf16.msra.mxu0 0
      %3425 = vmatprep.subr.bf16.mxu0 0
      %3426 = vmatpush2.bf16.msra.mxu0 0
      %3427 = vmatprep.subr.bf16.mxu0 0
      %3428 = vmatpush2.bf16.msra.mxu0 0
      %3429 = vmatprep.subr.bf16.mxu0 0
      %3430 = vmatpush2.bf16.msra.mxu0 0
      %3431 = vmatprep.subr.bf16.mxu0 0
      %3432 = vmatpush2.bf16.msra.mxu0 0
      %3433 = vmatprep.mubr.bf16.mxu0 0
      %3434 = vmatmul.mubr.bf16.gmra.mxu0 %v3399
      %v3435 = vpop.f32.mrf.mxu0
      %v3436 = vadd.f32 %v3369, %v3435
      %v3437 = vpop.f32.mrf.mxu0
      %v3438 = vpop.f32.mrf.mxu0
      %v3439 = vadd.f32 %v3372, %v3438
      %v3440 = vpop.f32.mrf.mxu0
      %3441 = vdwg.mxu0
      %v3442 = vld [vmem:[#allocation2 + $0x4] sm:$0xe]
      %v3443 = vld [vmem:[%s694] sm:$0xf]
      %v3444 = vld [vmem:[%s694 + $0x4] sm:$0xf]
      %v3445 = vld [vmem:[%s694 + $0x8] sm:$0xf]
      %v3446 = vld [vmem:[%s694 + $0xc] sm:$0xf]
      %v3447 = vld [vmem:[%s694 + $0x10] sm:$0xf]
      %v3448 = vld [vmem:[%s694 + $0x14] sm:$0xf]
      %v3450 = vunpack.c.l.b16 %v3442
      %v3451 = vpack.c.b16 %v3302, %v3450
      %v3452 = vrot.slane %v3451, 1
      %3453 = vrot.lane.b32.xlu0 %v3452, 80
      %v3454 = vpop.permute.xlu0 %3453
      %v3461 = vunpack.c.l.b16 %v3443
      %v3462 = vunpack.c.l.b16 %v3444
      %v3463 = vunpack.c.l.b16 %v3445
      %v3464 = vunpack.c.l.b16 %v3446
      %v3465 = vunpack.c.l.b16 %v3447
      %v3466 = vunpack.c.l.b16 %v3448
      %v3467 = vpack.c.b16 %v3462, %v3461
      %v3468 = vpack.c.b16 %v3464, %v3463
      %v3469 = vpack.c.b16 %v3466, %v3465
      %v3474 = vsel %vm284, %v3454, 0
      %3476 = vmatprep.subr.bf16.mxu0 0
      %3477 = vmatpush1.bf16.msra.mxu0 0
      %3478 = vmatprep.subr.bf16.mxu0 0
      %3479 = vmatpush1.bf16.msra.mxu0 0
      %3480 = vmatprep.subr.bf16.mxu0 0
      %3481 = vmatpush1.bf16.msra.mxu0 0
      %3482 = vmatprep.subr.bf16.mxu0 0
      %3483 = vmatpush1.bf16.msra.mxu0 0
      %3484 = vmatprep.subr.bf16.mxu0 0
      %3485 = vmatpush1.bf16.msra.mxu0 0
      %3486 = vmatprep.subr.bf16.mxu0 0
      %3487 = vmatpush1.bf16.msra.mxu0 %v3469
      %3488 = vmatprep.subr.bf16.mxu0 0
      %3489 = vmatpush1.bf16.msra.mxu0 %v3468
      %3490 = vmatprep.subr.bf16.mxu0 0
      %3491 = vmatpush1.bf16.msra.mxu0 %v3467
      %3492 = vmatprep.subr.bf16.mxu0 0
      %3493 = vmatpush2.bf16.msra.mxu0 0
      %3494 = vmatprep.subr.bf16.mxu0 0
      %3495 = vmatpush2.bf16.msra.mxu0 0
      %3496 = vmatprep.subr.bf16.mxu0 0
      %3497 = vmatpush2.bf16.msra.mxu0 0
      %3498 = vmatprep.subr.bf16.mxu0 0
      %3499 = vmatpush2.bf16.msra.mxu0 0
      %3500 = vmatprep.subr.bf16.mxu0 0
      %3501 = vmatpush2.bf16.msra.mxu0 0
      %3502 = vmatprep.subr.bf16.mxu0 0
      %3503 = vmatpush2.bf16.msra.mxu0 0
      %3504 = vmatprep.subr.bf16.mxu0 0
      %3505 = vmatpush2.bf16.msra.mxu0 0
      %3506 = vmatprep.subr.bf16.mxu0 0
      %3507 = vmatpush2.bf16.msra.mxu0 0
      %3508 = vmatprep.mubr.bf16.mxu0 0
      %3509 = vmatmul.mubr.bf16.gmra.mxu0 %v3474
      %v3510 = vpop.f32.mrf.mxu0
      %v3511 = vadd.f32 0.0, %v3510
      %v3512 = vpop.f32.mrf.mxu0
      %v3513 = vpop.f32.mrf.mxu0
      %v3514 = vadd.f32 0.0, %v3513
      %v3515 = vpop.f32.mrf.mxu0
      %3516 = vdwg.mxu0
      %v3517 = vadd.f32 %v3436, %v3511
      %v3518 = vadd.f32 %v3439, %v3514
      %v3519 = vld [vmem:[%s4] sm:$0x1]
      %v3521 = vlaneseq
      %v3522 = vshrl.u32 %v3521, 7
      %v3523 = vsub.s32 0, %v3522
      %v3524 = vrot.slane %v3519, %v3523
      %v3526 = vadd.f32 %v3517, %v3524
      %v3527 = vadd.f32 %v3518, %v3524
      %3528 = vst [vmem:[%s224 + $0x58] sm:$0xff] %v3526
      %3529 = vst [vmem:[%s224 + $0xb8] sm:$0xf] %v3527
      %p3530 = scmp.lt.s32.totalorder %s16, 1
      %s3531 = scalar_select %p3530, %s16, 1
      %s3532 = smul.addr %s3531, 24
      %s3533 = smul.addr %s3532, 8
      %s3534 = scalar_lea.vmem %s5, %s3533
      // Predicated region
      $region41: #{mynet1_forward.1} parent=39 // pred_check
        %p3535 = pneg %p144
      $region42: #{mynet1_forward.1} parent=39 // pred_check_branch
        %3537 = sbr.rel (%p3535) target = $region44
      $region43: #{mynet1_forward.1} parent=39 // pred_region
        _
      $region44: #{mynet1_forward.1} parent=39 // pred_fallthru
        _
    $region40: #{mynet1_forward.1} parent=5 // pred_fallthru
      _
    %p3538 = scmp.le.s32.totalorder 2, %s11
    // Predicated region
    $region45: #{mynet1_forward.1} parent=5 // pred_check
      %p3539 = pneg %p3538
    $region46: #{mynet1_forward.1} parent=5 // pred_check_branch
      %3541 = sbr.rel (%p3539) target = $region48
    $region47: #{mynet1_forward.1} parent=5 // pred_region
      %s3542 = ssub.s32 %s11, 2
      // Predicated region
      $region49: #{mynet1_forward.1} parent=47 // pred_check
        %p3543 = pneg %p150
      $region50: #{mynet1_forward.1} parent=47 // pred_check_branch
        %3545 = sbr.rel (%p3543) target = $region52
      $region51: #{mynet1_forward.1} parent=47 // pred_region
        %p3546 = scmp.lt.s32.totalorder %s17, 1
        %s3547 = scalar_select %p3546, %s17, 1
        %s3548 = smul.addr %s3547, 24
        %s3549 = smul.addr %s3548, 8
        %s3550 = scalar_lea.vmem %s5, %s3549
      $region52: #{mynet1_forward.1} parent=47 // pred_fallthru
        _
    $region48: #{mynet1_forward.1} parent=5 // pred_fallthru
      _
  $region6: #{mynet1_forward.1} parent=0 // loop_footer
    %s15 = sadd.s32 1, %s11
  $region7: #{mynet1_forward.1} parent=0 // loop_footer_branch
    %10 = sbr.rel target = $region3
  $region8: #{mynet1_forward.1} parent=0 // loop_exit
    _

</llo_original>
